<compile_context>
chip_gen: v6e
topology: v6e:2x2x1
jax: 0.10.0
libtpu: 0.0.40
codegen_flags: <defaults>
</compile_context>

<pallas_src>
import numpy as np
import jax
import jax.numpy as jnp
from jax.experimental import pallas as pl
from jax.experimental.pallas import tpu as pltpu


# ------------------------------------------------------------------------------ kernel --
def _net_fused_kernel(x_ref, w1b_ref, b1t_ref, w2b_ref, b2t_ref,
                      w1f_ref, b1f_ref, w2f_ref, b2f_ref, w3f_ref, b3f_ref,
                      o_ref):
    """Whole Net forward for one batch block, fully VMEM resident, batched matmuls.

    Row layout: every sample owns 28 consecutive sublane rows end-to-end.  Pooled
    activations stay *interleaved* (pooled row i lives at row 2i after pool1 and 4i
    after pool2) so no strided slicing / relayout is ever needed; all row shifts are
    pltpu.roll (XLU) on f32 matmul results.

    x_ref   : [n, 28]       bf16   n = block_b*28 stacked input rows
    w1b_ref : [3, 28, 512]  bf16   conv1 banded weights, lanes = q*256 + jj*16 + co
    b1t_ref : [1, 256]      f32    conv1 bias tiled over the 13 output columns
    w2b_ref : [3, 256, 512] bf16   conv2 banded weights, lanes = q*256 + jj2*32 + co
    b2t_ref : [1, 256]      f32
    w1f_ref : [5, 256, 128] bf16   fc1 blocks (PyTorch flatten order folded in, N padded)
    b1f_ref : [1, 128]      f32
    w2f_ref : [128, 128]    bf16   fc2 weight, zero padded
    b2f_ref : [1, 128]      f32
    w3f_ref : [128, 128]    bf16   fc3 weight, zero padded
    b3f_ref : [1, 128]      f32    lanes 10..127 = -1e30 (lane-dense log_softmax)
    o_ref   : [n, 128]      f32    row b*28 holds sample b's 128-lane log-prob slab
    """
    f32, bf16 = jnp.float32, jnp.bfloat16
    n = x_ref.shape[0]

    def shift_up(t, k):
        # result[i] = t[i + k] (circular; wrapped rows are never consumed downstream).
        return t if k == 0 else pltpu.roll(t, n - k, axis=0)

    x = x_ref[...]                                                      # [n, 28] bf16

    # ---- conv1: 3 parity-fused banded matmuls (one per kernel row dy), batched over B --
    z = None
    for dy in range(3):
        t = shift_up(jnp.dot(x, w1b_ref[dy], preferred_element_type=f32), dy)  # [n, 512]
        z = t if z is None else z + t
    z = jnp.maximum(z[:, :256], z[:, 256:])            # W-pool: 128-aligned parity halves
    z = jnp.maximum(z, shift_up(z, 1))                 # H-pool: rows i, i+1
    p1 = jnp.maximum(z + b1t_ref[...], 0.0).astype(bf16)   # pooled row ii lives at 2*ii

    # ---- conv2: same structure; pooled-row spacing is 2, so the dy shift becomes 2*dy --
    z = None
    for dy in range(3):
        t = shift_up(jnp.dot(p1, w2b_ref[dy], preferred_element_type=f32), 2 * dy)
        z = t if z is None else z + t
    z = jnp.maximum(z[:, :256], z[:, 256:])            # W-pool
    z = jnp.maximum(z, shift_up(z, 2))                 # H-pool: pooled rows 2j, 2j+2
    p2 = jnp.maximum(z + b2t_ref[...], 0.0).astype(bf16)   # pooled row ii2 lives at 4*ii2

    # ---- fc1: 5 batched matmuls (one per pooled row r); roll aligns row 4r onto row 0 --
    a1 = None
    for r in range(5):
        q = shift_up(jnp.dot(p2, w1f_ref[r], preferred_element_type=f32), 4 * r)
        a1 = q if a1 is None else a1 + q
    h1 = jnp.maximum(a1 + b1f_ref[...], 0.0).astype(bf16)              # [n, 128]

    # ---- fc2 -> fc3 -> lane-dense log_softmax (pad logits carry a -1e30 bias) ----------
    h2 = jnp.maximum(jnp.dot(h1, w2f_ref[...], preferred_element_type=f32)
                     + b2f_ref[...], 0.0).astype(bf16)                 # [n, 128]
    logits = jnp.dot(h2, w3f_ref[...], preferred_element_type=f32) + b3f_ref[...]
    s = logits - jnp.max(logits, axis=1, keepdims=True)
    o_ref[...] = s - jnp.log(jnp.sum(jnp.exp(s), axis=1, keepdims=True))


def _const_spec(shape):
    rank = len(shape)
    return pl.BlockSpec(shape, lambda i, rank=rank: (0,) * rank)


@jax.jit
def net_forward(x_nchw, kp):
    """x_nchw: [B, 1, 28, 28] float32 (NCHW).  Returns log-probabilities [B, 10]."""
    B = x_nchw.shape[0]
    assert x_nchw.shape[1:] == (1, 28, 28), x_nchw.shape

    # Pad the batch to an even count so each row block is a multiple of the 8-sublane tile.
    Bp = B + (B % 2)
    x = x_nchw.astype(jnp.bfloat16).reshape(B, 28, 28)      # bf16 input (halved DMA)
    if Bp != B:
        x = jnp.concatenate([x, jnp.zeros((Bp - B, 28, 28), x.dtype)], axis=0)
    x = x.reshape(Bp * 28, 28)                              # C == 1: pure reshape

    # Batch-block grid: shards big batches across TensorCores (v7x) and keeps weights
    # VMEM-resident via constant index_maps; for small B it is a single step.
    if Bp % 8 == 0:
        block_b = 8
    elif Bp % 4 == 0:
        block_b = 4
    else:
        block_b = Bp
    nb = block_b * 28
    grid = (Bp // block_b,)

    out_full = pl.pallas_call(
        _net_fused_kernel,
        out_shape=jax.ShapeDtypeStruct((Bp * 28, 128), jnp.float32),
        grid=grid,
        in_specs=[pl.BlockSpec((nb, 28), lambda i: (i, 0)),
                  _const_spec((3, 28, 512)), _const_spec((1, 256)),
                  _const_spec((3, 256, 512)), _const_spec((1, 256)),
                  _const_spec((5, 256, 128)), _const_spec((1, 128)),
                  _const_spec((128, 128)), _const_spec((1, 128)),
                  _const_spec((128, 128)), _const_spec((1, 128))],
        out_specs=pl.BlockSpec((nb, 128), lambda i: (i, 0)),
        compiler_params=pltpu.CompilerParams(dimension_semantics=("parallel",)),
    )(x, kp["w1band"], kp["b1t"], kp["w2band"], kp["b2t"],
      kp["w1blk"], kp["b1f"], kp["w2fp"], kp["b2f"], kp["w3fp"], kp["b3f"])

    # Sample b's log-probs live at row b*28, lanes 0..9 of the lane-dense output slab.
    return out_full.reshape(Bp, 28, 128)[:B, 0, :10]


# ---------------------------------------------------------------- host-side weight prep --
def prepare_params(tp):
    """Convert PyTorch-convention parameters into the kernel's banded/padded layouts."""
    Wc1 = np.asarray(tp["conv1_w"], np.float32)   # [16, 1, 3, 3]
    bc1 = np.asarray(tp["conv1_b"], np.float32)   # [16]
    Wc2 = np.asarray(tp["conv2_w"], np.float32)   # [32, 16, 3, 3]
    bc2 = np.asarray(tp["conv2_b"], np.float32)   # [32]
    Wf1 = np.asarray(tp["fc1_w"], np.float32)     # [32, 800]
    bf1 = np.asarray(tp["fc1_b"], np.float32)
    Wf2 = np.asarray(tp["fc2_w"], np.float32)     # [84, 32]
    bf2 = np.asarray(tp["fc2_b"], np.float32)
    Wf3 = np.asarray(tp["fc3_w"], np.float32)     # [10, 84]
    bf3 = np.asarray(tp["fc3_b"], np.float32)

    # conv1 banded weights, parity fused along N: lane q*256 + jj*16 + co holds the conv1
    # pre-activation at output column 2*jj+q, channel co (13 jj columns, 48 pad lanes).
    w1band = np.zeros((3, 28, 512), np.float32)
    for dy in range(3):
        for dx in range(3):
            for q in range(2):
                for jj in range(13):
                    w1band[dy, 2 * jj + q + dx,
                           q * 256 + jj * 16: q * 256 + jj * 16 + 16] = Wc1[:, 0, dy, dx]
    b1t = np.zeros((1, 256), np.float32)
    for jj in range(13):
        b1t[0, jj * 16:(jj + 1) * 16] = bc1

    # conv2 banded weights: input lanes (jj*16 + ci) -> output lanes q*256 + jj2*32 + co.
    w2band = np.zeros((3, 256, 512), np.float32)
    for dy in range(3):
        for dx in range(3):
            for q in range(2):
                for jj2 in range(5):
                    jj = 2 * jj2 + q + dx
                    w2band[dy, jj * 16:(jj + 1) * 16,
                           q * 256 + jj2 * 32: q * 256 + jj2 * 32 + 32] = Wc2[:, :, dy, dx].T
    b2t = np.zeros((1, 256), np.float32)
    for jj2 in range(5):
        b2t[0, jj2 * 32:(jj2 + 1) * 32] = bc2

    # fc1 blocks: PyTorch flattens NCHW as k = co*25 + ii2*5 + jj2; the kernel sees pooled
    # conv2 row ii2 = r in lanes (jj2*32 + co).  Output dim padded 32 -> 128.
    w1blk = np.zeros((5, 256, 128), np.float32)
    for r in range(5):
        for jj2 in range(5):
            for co in range(32):
                w1blk[r, jj2 * 32 + co, :32] = Wf1[:, co * 25 + r * 5 + jj2]
    b1f = np.zeros((1, 128), np.float32); b1f[0, :32] = bf1

    w2fp = np.zeros((128, 128), np.float32); w2fp[:32, :84] = Wf2.T
    b2f = np.zeros((1, 128), np.float32); b2f[0, :84] = bf2
    w3fp = np.zeros((128, 128), np.float32); w3fp[:84, :10] = Wf3.T
    # Padded logit lanes get a huge (finite) negative bias so log_softmax can run
    # lane-dense over all 128 lanes without inf-inf NaNs.
    b3f = np.full((1, 128), -1e30, np.float32); b3f[0, :10] = bf3

    bf16 = jnp.bfloat16
    return {
        "w1band": jnp.asarray(w1band, bf16), "b1t": jnp.asarray(b1t),
        "w2band": jnp.asarray(w2band, bf16), "b2t": jnp.asarray(b2t),
        "w1blk": jnp.asarray(w1blk, bf16), "b1f": jnp.asarray(b1f),
        "w2fp": jnp.asarray(w2fp, bf16), "b2f": jnp.asarray(b2f),
        "w3fp": jnp.asarray(w3fp, bf16), "b3f": jnp.asarray(b3f),
    }


def init_torch_style_params(key):
    """Deterministic synthetic parameters in the real PyTorch layouts."""
    ks = jax.random.split(key, 10)
    return {
        "conv1_w": 0.10 * jax.random.normal(ks[0], (16, 1, 3, 3), jnp.float32),
        "conv1_b": 0.10 * jax.random.normal(ks[1], (16,), jnp.float32),
        "conv2_w": 0.05 * jax.random.normal(ks[2], (32, 16, 3, 3), jnp.float32),
        "conv2_b": 0.05 * jax.random.normal(ks[3], (32,), jnp.float32),
        "fc1_w": 0.05 * jax.random.normal(ks[4], (32, 800), jnp.float32),
        "fc1_b": 0.05 * jax.random.normal(ks[5], (32,), jnp.float32),
        "fc2_w": 0.10 * jax.random.normal(ks[6], (84, 32), jnp.float32),
        "fc2_b": 0.10 * jax.random.normal(ks[7], (84,), jnp.float32),
        "fc3_w": 0.10 * jax.random.normal(ks[8], (10, 84), jnp.float32),
        "fc3_b": 0.10 * jax.random.normal(ks[9], (10,), jnp.float32),
    }


# -------------------------------------------------------------------- pure-JAX reference --
def net_forward_ref(x_nchw, tp):
    x = x_nchw.astype(jnp.float32)
    dn = ("NCHW", "OIHW", "NCHW")
    y = jax.lax.conv_general_dilated(x, tp["conv1_w"], (1, 1), "VALID", dimension_numbers=dn)
    y = jnp.maximum(y + tp["conv1_b"][None, :, None, None], 0.0)
    y = jax.lax.reduce_window(y, -jnp.inf, jax.lax.max, (1, 1, 2, 2), (1, 1, 2, 2), "VALID")
    y = jax.lax.conv_general_dilated(y, tp["conv2_w"], (1, 1), "VALID", dimension_numbers=dn)
    y = jnp.maximum(y + tp["conv2_b"][None, :, None, None], 0.0)
    y = jax.lax.reduce_window(y, -jnp.inf, jax.lax.max, (1, 1, 2, 2), (1, 1, 2, 2), "VALID")
    v = y.reshape(y.shape[0], -1)
    a1 = jnp.maximum(v @ tp["fc1_w"].T + tp["fc1_b"], 0.0)
    a2 = jnp.maximum(a1 @ tp["fc2_w"].T + tp["fc2_b"], 0.0)
    logits = a2 @ tp["fc3_w"].T + tp["fc3_b"]
    return jax.nn.log_softmax(logits, axis=1)


if __name__ == "__main__":
    key = jax.random.PRNGKey(0)
    k_x, k_p = jax.random.split(key)
    # Spatial size fixed at 28x28 by the module's fc1 = Linear(32*5*5, 32); small batch.
    x = jax.random.normal(k_x, (2, 1, 28, 28), jnp.float32)
    torch_params = init_torch_style_params(k_p)
    kernel_params = prepare_params(torch_params)

    out = net_forward(x, kernel_params)
    out = jax.block_until_ready(out)

    assert out.shape == (2, 10), out.shape
    assert out.dtype == jnp.float32
    assert bool(jnp.all(jnp.isfinite(out)))
    # log_softmax rows must exponentiate-and-sum to 1 (softmax done in f32 in-kernel).
    row_sums = jnp.exp(out).sum(axis=1)
    assert bool(jnp.allclose(row_sums, 1.0, atol=1e-4)), row_sums
    # Match the pure-JAX/XLA reference (bf16 MXU weights => loose-ish tolerance).
    ref = net_forward_ref(x, torch_params)
    max_err = float(jnp.max(jnp.abs(out - ref)))
    assert max_err < 5e-2, max_err

    print("KERNEL_OK")
</pallas_src>

<mosaic_0001>
module attributes {stable_mosaic.version = 11 : i64} {
  func.func @_net_fused_kernel(%arg0: i32, %arg1: memref<56x28xbf16, #tpu.memory_space<vmem>>, %arg2: memref<3x28x512xbf16, #tpu.memory_space<vmem>>, %arg3: memref<1x256xf32, #tpu.memory_space<vmem>>, %arg4: memref<3x256x512xbf16, #tpu.memory_space<vmem>>, %arg5: memref<1x256xf32, #tpu.memory_space<vmem>>, %arg6: memref<5x256x128xbf16, #tpu.memory_space<vmem>>, %arg7: memref<1x128xf32, #tpu.memory_space<vmem>>, %arg8: memref<128x128xbf16, #tpu.memory_space<vmem>>, %arg9: memref<1x128xf32, #tpu.memory_space<vmem>>, %arg10: memref<128x128xbf16, #tpu.memory_space<vmem>>, %arg11: memref<1x128xf32, #tpu.memory_space<vmem>>, %arg12: memref<56x128xf32, #tpu.memory_space<vmem>>) attributes {dimension_semantics = [#tpu.dimension_semantics<parallel>], iteration_bounds = array<i64: 1>, scalar_prefetch = 0 : i64, scratch_operands = 0 : i64, tpu.core_type = #tpu.core_type<tc>, window_params = [{transform_indices = @transform_0, window_bounds = array<i64: 56, 28>}, {pipeline_mode = #tpu.pipeline_mode<synchronous>, transform_indices = @transform_1, window_bounds = array<i64: 3, 28, 512>}, {pipeline_mode = #tpu.pipeline_mode<synchronous>, transform_indices = @transform_2, window_bounds = array<i64: 1, 256>}, {pipeline_mode = #tpu.pipeline_mode<synchronous>, transform_indices = @transform_3, window_bounds = array<i64: 3, 256, 512>}, {pipeline_mode = #tpu.pipeline_mode<synchronous>, transform_indices = @transform_4, window_bounds = array<i64: 1, 256>}, {pipeline_mode = #tpu.pipeline_mode<synchronous>, transform_indices = @transform_5, window_bounds = array<i64: 5, 256, 128>}, {pipeline_mode = #tpu.pipeline_mode<synchronous>, transform_indices = @transform_6, window_bounds = array<i64: 1, 128>}, {pipeline_mode = #tpu.pipeline_mode<synchronous>, transform_indices = @transform_7, window_bounds = array<i64: 128, 128>}, {pipeline_mode = #tpu.pipeline_mode<synchronous>, transform_indices = @transform_8, window_bounds = array<i64: 1, 128>}, {pipeline_mode = #tpu.pipeline_mode<synchronous>, transform_indices = @transform_9, window_bounds = array<i64: 128, 128>}, {pipeline_mode = #tpu.pipeline_mode<synchronous>, transform_indices = @transform_10, window_bounds = array<i64: 1, 128>}, {transform_indices = @transform_11, window_bounds = array<i64: 56, 128>}]} {
    %c0 = arith.constant 0 : index
    %c0_0 = arith.constant 0 : index
    %0 = vector.load %arg1[%c0, %c0_0] : memref<56x28xbf16, #tpu.memory_space<vmem>>, vector<56x28xbf16>
    %c0_1 = arith.constant 0 : index
    %c0_2 = arith.constant 0 : index
    %c0_3 = arith.constant 0 : index
    %1 = vector.load %arg2[%c0_1, %c0_2, %c0_3] : memref<3x28x512xbf16, #tpu.memory_space<vmem>>, vector<1x28x512xbf16>
    %2 = vector.shape_cast %1 : vector<1x28x512xbf16> to vector<28x512xbf16>
    %cst = arith.constant dense<0.000000e+00> : vector<56x512xf32>
    %3 = tpu.matmul %0, %2, %cst {dimension_numbers = #tpu.dot_dimension_numbers<[1], [0], [0], [1], [0, 0, 1, 1], [], []>} : vector<56x28xbf16>, vector<28x512xbf16>, vector<56x512xf32> -> vector<56x512xf32>
    %c1 = arith.constant 1 : index
    %c0_4 = arith.constant 0 : index
    %c0_5 = arith.constant 0 : index
    %4 = vector.load %arg2[%c1, %c0_4, %c0_5] : memref<3x28x512xbf16, #tpu.memory_space<vmem>>, vector<1x28x512xbf16>
    %5 = vector.shape_cast %4 : vector<1x28x512xbf16> to vector<28x512xbf16>
    %cst_6 = arith.constant dense<0.000000e+00> : vector<56x512xf32>
    %6 = tpu.matmul %0, %5, %cst_6 {dimension_numbers = #tpu.dot_dimension_numbers<[1], [0], [0], [1], [0, 0, 1, 1], [], []>} : vector<56x28xbf16>, vector<28x512xbf16>, vector<56x512xf32> -> vector<56x512xf32>
    %c55_i32 = arith.constant 55 : i32
    %7 = tpu.dynamic_rotate %6 by %c55_i32 dim 0 : vector<56x512xf32>, i32 -> vector<56x512xf32>
    %8 = arith.addf %3, %7 : vector<56x512xf32>
    %c2 = arith.constant 2 : index
    %c0_7 = arith.constant 0 : index
    %c0_8 = arith.constant 0 : index
    %9 = vector.load %arg2[%c2, %c0_7, %c0_8] : memref<3x28x512xbf16, #tpu.memory_space<vmem>>, vector<1x28x512xbf16>
    %10 = vector.shape_cast %9 : vector<1x28x512xbf16> to vector<28x512xbf16>
    %cst_9 = arith.constant dense<0.000000e+00> : vector<56x512xf32>
    %11 = tpu.matmul %0, %10, %cst_9 {dimension_numbers = #tpu.dot_dimension_numbers<[1], [0], [0], [1], [0, 0, 1, 1], [], []>} : vector<56x28xbf16>, vector<28x512xbf16>, vector<56x512xf32> -> vector<56x512xf32>
    %c54_i32 = arith.constant 54 : i32
    %12 = tpu.dynamic_rotate %11 by %c54_i32 dim 0 : vector<56x512xf32>, i32 -> vector<56x512xf32>
    %13 = arith.addf %8, %12 : vector<56x512xf32>
    %14 = vector.extract_strided_slice %13 {offsets = [0, 0], sizes = [56, 256], strides = [1, 1]} : vector<56x512xf32> to vector<56x256xf32>
    %15 = vector.extract_strided_slice %13 {offsets = [0, 256], sizes = [56, 256], strides = [1, 1]} : vector<56x512xf32> to vector<56x256xf32>
    %16 = arith.maximumf %14, %15 : vector<56x256xf32>
    %c55_i32_10 = arith.constant 55 : i32
    %17 = tpu.dynamic_rotate %16 by %c55_i32_10 dim 0 : vector<56x256xf32>, i32 -> vector<56x256xf32>
    %18 = arith.maximumf %16, %17 : vector<56x256xf32>
    %c0_11 = arith.constant 0 : index
    %c0_12 = arith.constant 0 : index
    %19 = vector.load %arg3[%c0_11, %c0_12] : memref<1x256xf32, #tpu.memory_space<vmem>>, vector<1x256xf32>
    %20 = vector.broadcast %19 : vector<1x256xf32> to vector<56x256xf32>
    %21 = arith.addf %18, %20 : vector<56x256xf32>
    %cst_13 = arith.constant 0.000000e+00 : f32
    %22 = vector.broadcast %cst_13 : f32 to vector<56x256xf32>
    %23 = arith.maximumf %21, %22 : vector<56x256xf32>
    %24 = arith.truncf %23 : vector<56x256xf32> to vector<56x256xbf16>
    %c0_14 = arith.constant 0 : index
    %c0_15 = arith.constant 0 : index
    %c0_16 = arith.constant 0 : index
    %25 = vector.load %arg4[%c0_14, %c0_15, %c0_16] : memref<3x256x512xbf16, #tpu.memory_space<vmem>>, vector<1x256x512xbf16>
    %26 = vector.shape_cast %25 : vector<1x256x512xbf16> to vector<256x512xbf16>
    %cst_17 = arith.constant dense<0.000000e+00> : vector<56x512xf32>
    %27 = tpu.matmul %24, %26, %cst_17 {dimension_numbers = #tpu.dot_dimension_numbers<[1], [0], [0], [1], [0, 0, 1, 1], [], []>} : vector<56x256xbf16>, vector<256x512xbf16>, vector<56x512xf32> -> vector<56x512xf32>
    %c1_18 = arith.constant 1 : index
    %c0_19 = arith.constant 0 : index
    %c0_20 = arith.constant 0 : index
    %28 = vector.load %arg4[%c1_18, %c0_19, %c0_20] : memref<3x256x512xbf16, #tpu.memory_space<vmem>>, vector<1x256x512xbf16>
    %29 = vector.shape_cast %28 : vector<1x256x512xbf16> to vector<256x512xbf16>
    %cst_21 = arith.constant dense<0.000000e+00> : vector<56x512xf32>
    %30 = tpu.matmul %24, %29, %cst_21 {dimension_numbers = #tpu.dot_dimension_numbers<[1], [0], [0], [1], [0, 0, 1, 1], [], []>} : vector<56x256xbf16>, vector<256x512xbf16>, vector<56x512xf32> -> vector<56x512xf32>
    %c54_i32_22 = arith.constant 54 : i32
    %31 = tpu.dynamic_rotate %30 by %c54_i32_22 dim 0 : vector<56x512xf32>, i32 -> vector<56x512xf32>
    %32 = arith.addf %27, %31 : vector<56x512xf32>
    %c2_23 = arith.constant 2 : index
    %c0_24 = arith.constant 0 : index
    %c0_25 = arith.constant 0 : index
    %33 = vector.load %arg4[%c2_23, %c0_24, %c0_25] : memref<3x256x512xbf16, #tpu.memory_space<vmem>>, vector<1x256x512xbf16>
    %34 = vector.shape_cast %33 : vector<1x256x512xbf16> to vector<256x512xbf16>
    %cst_26 = arith.constant dense<0.000000e+00> : vector<56x512xf32>
    %35 = tpu.matmul %24, %34, %cst_26 {dimension_numbers = #tpu.dot_dimension_numbers<[1], [0], [0], [1], [0, 0, 1, 1], [], []>} : vector<56x256xbf16>, vector<256x512xbf16>, vector<56x512xf32> -> vector<56x512xf32>
    %c52_i32 = arith.constant 52 : i32
    %36 = tpu.dynamic_rotate %35 by %c52_i32 dim 0 : vector<56x512xf32>, i32 -> vector<56x512xf32>
    %37 = arith.addf %32, %36 : vector<56x512xf32>
    %38 = vector.extract_strided_slice %37 {offsets = [0, 0], sizes = [56, 256], strides = [1, 1]} : vector<56x512xf32> to vector<56x256xf32>
    %39 = vector.extract_strided_slice %37 {offsets = [0, 256], sizes = [56, 256], strides = [1, 1]} : vector<56x512xf32> to vector<56x256xf32>
    %40 = arith.maximumf %38, %39 : vector<56x256xf32>
    %c54_i32_27 = arith.constant 54 : i32
    %41 = tpu.dynamic_rotate %40 by %c54_i32_27 dim 0 : vector<56x256xf32>, i32 -> vector<56x256xf32>
    %42 = arith.maximumf %40, %41 : vector<56x256xf32>
    %c0_28 = arith.constant 0 : index
    %c0_29 = arith.constant 0 : index
    %43 = vector.load %arg5[%c0_28, %c0_29] : memref<1x256xf32, #tpu.memory_space<vmem>>, vector<1x256xf32>
    %44 = vector.broadcast %43 : vector<1x256xf32> to vector<56x256xf32>
    %45 = arith.addf %42, %44 : vector<56x256xf32>
    %cst_30 = arith.constant 0.000000e+00 : f32
    %46 = vector.broadcast %cst_30 : f32 to vector<56x256xf32>
    %47 = arith.maximumf %45, %46 : vector<56x256xf32>
    %48 = arith.truncf %47 : vector<56x256xf32> to vector<56x256xbf16>
    %c0_31 = arith.constant 0 : index
    %c0_32 = arith.constant 0 : index
    %c0_33 = arith.constant 0 : index
    %49 = vector.load %arg6[%c0_31, %c0_32, %c0_33] : memref<5x256x128xbf16, #tpu.memory_space<vmem>>, vector<1x256x128xbf16>
    %50 = vector.shape_cast %49 : vector<1x256x128xbf16> to vector<256x128xbf16>
    %cst_34 = arith.constant dense<0.000000e+00> : vector<56x128xf32>
    %51 = tpu.matmul %48, %50, %cst_34 {dimension_numbers = #tpu.dot_dimension_numbers<[1], [0], [0], [1], [0, 0, 1, 1], [], []>} : vector<56x256xbf16>, vector<256x128xbf16>, vector<56x128xf32> -> vector<56x128xf32>
    %c1_35 = arith.constant 1 : index
    %c0_36 = arith.constant 0 : index
    %c0_37 = arith.constant 0 : index
    %52 = vector.load %arg6[%c1_35, %c0_36, %c0_37] : memref<5x256x128xbf16, #tpu.memory_space<vmem>>, vector<1x256x128xbf16>
    %53 = vector.shape_cast %52 : vector<1x256x128xbf16> to vector<256x128xbf16>
    %cst_38 = arith.constant dense<0.000000e+00> : vector<56x128xf32>
    %54 = tpu.matmul %48, %53, %cst_38 {dimension_numbers = #tpu.dot_dimension_numbers<[1], [0], [0], [1], [0, 0, 1, 1], [], []>} : vector<56x256xbf16>, vector<256x128xbf16>, vector<56x128xf32> -> vector<56x128xf32>
    %c52_i32_39 = arith.constant 52 : i32
    %55 = tpu.dynamic_rotate %54 by %c52_i32_39 dim 0 : vector<56x128xf32>, i32 -> vector<56x128xf32>
    %56 = arith.addf %51, %55 : vector<56x128xf32>
    %c2_40 = arith.constant 2 : index
    %c0_41 = arith.constant 0 : index
    %c0_42 = arith.constant 0 : index
    %57 = vector.load %arg6[%c2_40, %c0_41, %c0_42] : memref<5x256x128xbf16, #tpu.memory_space<vmem>>, vector<1x256x128xbf16>
    %58 = vector.shape_cast %57 : vector<1x256x128xbf16> to vector<256x128xbf16>
    %cst_43 = arith.constant dense<0.000000e+00> : vector<56x128xf32>
    %59 = tpu.matmul %48, %58, %cst_43 {dimension_numbers = #tpu.dot_dimension_numbers<[1], [0], [0], [1], [0, 0, 1, 1], [], []>} : vector<56x256xbf16>, vector<256x128xbf16>, vector<56x128xf32> -> vector<56x128xf32>
    %c48_i32 = arith.constant 48 : i32
    %60 = tpu.dynamic_rotate %59 by %c48_i32 dim 0 : vector<56x128xf32>, i32 -> vector<56x128xf32>
    %61 = arith.addf %56, %60 : vector<56x128xf32>
    %c3 = arith.constant 3 : index
    %c0_44 = arith.constant 0 : index
    %c0_45 = arith.constant 0 : index
    %62 = vector.load %arg6[%c3, %c0_44, %c0_45] : memref<5x256x128xbf16, #tpu.memory_space<vmem>>, vector<1x256x128xbf16>
    %63 = vector.shape_cast %62 : vector<1x256x128xbf16> to vector<256x128xbf16>
    %cst_46 = arith.constant dense<0.000000e+00> : vector<56x128xf32>
    %64 = tpu.matmul %48, %63, %cst_46 {dimension_numbers = #tpu.dot_dimension_numbers<[1], [0], [0], [1], [0, 0, 1, 1], [], []>} : vector<56x256xbf16>, vector<256x128xbf16>, vector<56x128xf32> -> vector<56x128xf32>
    %c44_i32 = arith.constant 44 : i32
    %65 = tpu.dynamic_rotate %64 by %c44_i32 dim 0 : vector<56x128xf32>, i32 -> vector<56x128xf32>
    %66 = arith.addf %61, %65 : vector<56x128xf32>
    %c4 = arith.constant 4 : index
    %c0_47 = arith.constant 0 : index
    %c0_48 = arith.constant 0 : index
    %67 = vector.load %arg6[%c4, %c0_47, %c0_48] : memref<5x256x128xbf16, #tpu.memory_space<vmem>>, vector<1x256x128xbf16>
    %68 = vector.shape_cast %67 : vector<1x256x128xbf16> to vector<256x128xbf16>
    %cst_49 = arith.constant dense<0.000000e+00> : vector<56x128xf32>
    %69 = tpu.matmul %48, %68, %cst_49 {dimension_numbers = #tpu.dot_dimension_numbers<[1], [0], [0], [1], [0, 0, 1, 1], [], []>} : vector<56x256xbf16>, vector<256x128xbf16>, vector<56x128xf32> -> vector<56x128xf32>
    %c40_i32 = arith.constant 40 : i32
    %70 = tpu.dynamic_rotate %69 by %c40_i32 dim 0 : vector<56x128xf32>, i32 -> vector<56x128xf32>
    %71 = arith.addf %66, %70 : vector<56x128xf32>
    %c0_50 = arith.constant 0 : index
    %c0_51 = arith.constant 0 : index
    %72 = vector.load %arg7[%c0_50, %c0_51] : memref<1x128xf32, #tpu.memory_space<vmem>>, vector<1x128xf32>
    %73 = vector.broadcast %72 : vector<1x128xf32> to vector<56x128xf32>
    %74 = arith.addf %71, %73 : vector<56x128xf32>
    %cst_52 = arith.constant 0.000000e+00 : f32
    %75 = vector.broadcast %cst_52 : f32 to vector<56x128xf32>
    %76 = arith.maximumf %74, %75 : vector<56x128xf32>
    %77 = arith.truncf %76 : vector<56x128xf32> to vector<56x128xbf16>
    %c0_53 = arith.constant 0 : index
    %c0_54 = arith.constant 0 : index
    %78 = vector.load %arg8[%c0_53, %c0_54] : memref<128x128xbf16, #tpu.memory_space<vmem>>, vector<128x128xbf16>
    %cst_55 = arith.constant dense<0.000000e+00> : vector<56x128xf32>
    %79 = tpu.matmul %77, %78, %cst_55 {dimension_numbers = #tpu.dot_dimension_numbers<[1], [0], [0], [1], [0, 0, 1, 1], [], []>} : vector<56x128xbf16>, vector<128x128xbf16>, vector<56x128xf32> -> vector<56x128xf32>
    %c0_56 = arith.constant 0 : index
    %c0_57 = arith.constant 0 : index
    %80 = vector.load %arg9[%c0_56, %c0_57] : memref<1x128xf32, #tpu.memory_space<vmem>>, vector<1x128xf32>
    %81 = vector.broadcast %80 : vector<1x128xf32> to vector<56x128xf32>
    %82 = arith.addf %79, %81 : vector<56x128xf32>
    %cst_58 = arith.constant 0.000000e+00 : f32
    %83 = vector.broadcast %cst_58 : f32 to vector<56x128xf32>
    %84 = arith.maximumf %82, %83 : vector<56x128xf32>
    %85 = arith.truncf %84 : vector<56x128xf32> to vector<56x128xbf16>
    %c0_59 = arith.constant 0 : index
    %c0_60 = arith.constant 0 : index
    %86 = vector.load %arg10[%c0_59, %c0_60] : memref<128x128xbf16, #tpu.memory_space<vmem>>, vector<128x128xbf16>
    %cst_61 = arith.constant dense<0.000000e+00> : vector<56x128xf32>
    %87 = tpu.matmul %85, %86, %cst_61 {dimension_numbers = #tpu.dot_dimension_numbers<[1], [0], [0], [1], [0, 0, 1, 1], [], []>} : vector<56x128xbf16>, vector<128x128xbf16>, vector<56x128xf32> -> vector<56x128xf32>
    %c0_62 = arith.constant 0 : index
    %c0_63 = arith.constant 0 : index
    %88 = vector.load %arg11[%c0_62, %c0_63] : memref<1x128xf32, #tpu.memory_space<vmem>>, vector<1x128xf32>
    %89 = vector.broadcast %88 : vector<1x128xf32> to vector<56x128xf32>
    %90 = arith.addf %87, %89 : vector<56x128xf32>
    %cst_64 = arith.constant dense<0xFF800000> : vector<56xf32>
    %91 = vector.multi_reduction <maximumf>, %90, %cst_64 [1] : vector<56x128xf32> to vector<56xf32>
    %92 = vector.shape_cast %91 : vector<56xf32> to vector<56x1xf32>
    %93 = vector.broadcast %92 : vector<56x1xf32> to vector<56x128xf32>
    %94 = arith.subf %90, %93 : vector<56x128xf32>
    %95 = math.exp %94 : vector<56x128xf32>
    %cst_65 = arith.constant dense<0.000000e+00> : vector<56xf32>
    %96 = vector.multi_reduction <add>, %95, %cst_65 [1] : vector<56x128xf32> to vector<56xf32>
    %97 = vector.shape_cast %96 : vector<56xf32> to vector<56x1xf32>
    %98 = math.log %97 : vector<56x1xf32>
    %99 = vector.broadcast %98 : vector<56x1xf32> to vector<56x128xf32>
    %100 = arith.subf %94, %99 : vector<56x128xf32>
    %c0_66 = arith.constant 0 : index
    %c0_67 = arith.constant 0 : index
    %101 = vector.load %arg12[%c0_66, %c0_67] : memref<56x128xf32, #tpu.memory_space<vmem>>, vector<56x128xf32>
    tpu.vector_store %arg12[%c0_66, %c0_67], %100 {strides = array<i32>} : memref<56x128xf32, #tpu.memory_space<vmem>>, vector<56x128xf32>,
    return
  }
  func.func @transform_0(%arg0: i32) -> (i32, i32) {
    %c0_i32 = arith.constant 0 : i32
    %c0_i32_0 = arith.constant 0 : i32
    return %arg0, %c0_i32 : i32, i32
  }
  func.func @transform_1(%arg0: i32) -> (i32, i32, i32) {
    %c0_i32 = arith.constant 0 : i32
    %c0_i32_0 = arith.constant 0 : i32
    %c0_i32_1 = arith.constant 0 : i32
    %c0_i32_2 = arith.constant 0 : i32
    return %c0_i32, %c0_i32_0, %c0_i32_1 : i32, i32, i32
  }
  func.func @transform_2(%arg0: i32) -> (i32, i32) {
    %c0_i32 = arith.constant 0 : i32
    %c0_i32_0 = arith.constant 0 : i32
    %c0_i32_1 = arith.constant 0 : i32
    return %c0_i32, %c0_i32_0 : i32, i32
  }
  func.func @transform_3(%arg0: i32) -> (i32, i32, i32) {
    %c0_i32 = arith.constant 0 : i32
    %c0_i32_0 = arith.constant 0 : i32
    %c0_i32_1 = arith.constant 0 : i32
    %c0_i32_2 = arith.constant 0 : i32
    return %c0_i32, %c0_i32_0, %c0_i32_1 : i32, i32, i32
  }
  func.func @transform_4(%arg0: i32) -> (i32, i32) {
    %c0_i32 = arith.constant 0 : i32
    %c0_i32_0 = arith.constant 0 : i32
    %c0_i32_1 = arith.constant 0 : i32
    return %c0_i32, %c0_i32_0 : i32, i32
  }
  func.func @transform_5(%arg0: i32) -> (i32, i32, i32) {
    %c0_i32 = arith.constant 0 : i32
    %c0_i32_0 = arith.constant 0 : i32
    %c0_i32_1 = arith.constant 0 : i32
    %c0_i32_2 = arith.constant 0 : i32
    return %c0_i32, %c0_i32_0, %c0_i32_1 : i32, i32, i32
  }
  func.func @transform_6(%arg0: i32) -> (i32, i32) {
    %c0_i32 = arith.constant 0 : i32
    %c0_i32_0 = arith.constant 0 : i32
    %c0_i32_1 = arith.constant 0 : i32
    return %c0_i32, %c0_i32_0 : i32, i32
  }
  func.func @transform_7(%arg0: i32) -> (i32, i32) {
    %c0_i32 = arith.constant 0 : i32
    %c0_i32_0 = arith.constant 0 : i32
    %c0_i32_1 = arith.constant 0 : i32
    return %c0_i32, %c0_i32_0 : i32, i32
  }
  func.func @transform_8(%arg0: i32) -> (i32, i32) {
    %c0_i32 = arith.constant 0 : i32
    %c0_i32_0 = arith.constant 0 : i32
    %c0_i32_1 = arith.constant 0 : i32
    return %c0_i32, %c0_i32_0 : i32, i32
  }
  func.func @transform_9(%arg0: i32) -> (i32, i32) {
    %c0_i32 = arith.constant 0 : i32
    %c0_i32_0 = arith.constant 0 : i32
    %c0_i32_1 = arith.constant 0 : i32
    return %c0_i32, %c0_i32_0 : i32, i32
  }
  func.func @transform_10(%arg0: i32) -> (i32, i32) {
    %c0_i32 = arith.constant 0 : i32
    %c0_i32_0 = arith.constant 0 : i32
    %c0_i32_1 = arith.constant 0 : i32
    return %c0_i32, %c0_i32_0 : i32, i32
  }
  func.func @transform_11(%arg0: i32) -> (i32, i32) {
    %c0_i32 = arith.constant 0 : i32
    %c0_i32_0 = arith.constant 0 : i32
    return %arg0, %c0_i32 : i32, i32
  }
}

</mosaic_0001>

<llo_original>
// kernel: net_forward.1
$region0: #{net_forward.1}
  #allocation0 [shape = 'u32[]', space=smem, size = 0x4, offset = 0x4, fixed_abs, tag = 'smem constant byte address 0x4 - core index']
  #allocation1 [shape = 'u32[144,128]{1,0:T(1,128)}', space=vmem, size = 0x12000, scoped, tag = 'internal scratch']
  %s0 = inlined_call_operand.vmem [shape: bf16[56,28], index: 0, kind: input, shape index: {}]
  %s1 = inlined_call_operand.hbm [shape: bf16[3,28,512], index: 1, kind: input, shape index: {}]
  %s2 = inlined_call_operand.vmem [shape: f32[1,256], index: 2, kind: input, shape index: {}]
  %s3 = inlined_call_operand.hbm [shape: bf16[3,256,512], index: 3, kind: input, shape index: {}]
  %s4 = inlined_call_operand.vmem [shape: f32[1,256], index: 4, kind: input, shape index: {}]
  %s5 = inlined_call_operand.hbm [shape: bf16[5,256,128], index: 5, kind: input, shape index: {}]
  %s6 = inlined_call_operand.vmem [shape: f32[1,128], index: 6, kind: input, shape index: {}]
  %s7 = inlined_call_operand.vmem [shape: bf16[128,128], index: 7, kind: input, shape index: {}]
  %s8 = inlined_call_operand.vmem [shape: f32[1,128], index: 8, kind: input, shape index: {}]
  %s9 = inlined_call_operand.vmem [shape: bf16[128,128], index: 9, kind: input, shape index: {}]
  %s10 = inlined_call_operand.vmem [shape: f32[1,128], index: 10, kind: input, shape index: {}]
  %s11 = inlined_call_operand.vmem [shape: f32[56,128], index: 11, kind: output, shape index: {}]
  %s12 = sld [smem:[#allocation0]]
  $region66: #{net_forward.1} parent=0
    _
  %s14 = ssub.s32 1, %s12
  %s15 = scalar_select 0, %s14, %s12
  $region1: #{net_forward.1} parent=0
    #allocation2 [shape = 'u8[98304]{0}', space=vmem, size = 0x18000, scoped, tag = 'input window, operand 1, single buffered']
    #allocation3 [shape = 's32[1]{0}', space=sflag, size = 0x4, scoped, tag = 'scoped memory for net_forward.1']
    #allocation4 [shape = 'u8[786432]{0}', space=vmem, size = 0xc0000, scoped, tag = 'input window, operand 3, single buffered']
    #allocation5 [shape = 's32[1]{0}', space=sflag, size = 0x4, scoped, tag = 'scoped memory for net_forward.1']
    #allocation6 [shape = 'u8[327680]{0}', space=vmem, size = 0x50000, scoped, tag = 'input window, operand 5, single buffered']
    %16 = vsyncpa [#allocation3], 0
    %17 = vsyncpa [#allocation5], 0
    // Predicated region
    $region2: #{net_forward.1} parent=1 // pred_check
      _
    $region3: #{net_forward.1} parent=1 // pred_check_branch
      %19 = sbr.rel (0) target = $region5
    $region4: #{net_forward.1} parent=1 // pred_region
      _
    $region5: #{net_forward.1} parent=1 // pred_fallthru
      _
    // Predicated region
    $region6: #{net_forward.1} parent=1 // pred_check
      _
    $region7: #{net_forward.1} parent=1 // pred_check_branch
      %21 = sbr.rel (0) target = $region9
    $region8: #{net_forward.1} parent=1 // pred_region
      %s23 = ssub.s32 3072, 3072
      %24 = vsyncadd [#allocation3], %s23
      %s25 = sshll.u32 [#allocation2], 4
      %s26 = int_to_ptr.vmem [resolvable:$true] %s25
      %31 = dma.hbm_to_vmem [thread:$0]  %s1, 3072, %s26, [#allocation3], 256, 256, 16
    $region9: #{net_forward.1} parent=1 // pred_fallthru
      _
    // Predicated region
    $region10: #{net_forward.1} parent=1 // pred_check
      _
    $region11: #{net_forward.1} parent=1 // pred_check_branch
      %33 = sbr.rel (0) target = $region13
    $region12: #{net_forward.1} parent=1 // pred_region
      _
    $region13: #{net_forward.1} parent=1 // pred_fallthru
      _
    // Predicated region
    $region14: #{net_forward.1} parent=1 // pred_check
      _
    $region15: #{net_forward.1} parent=1 // pred_check_branch
      %35 = sbr.rel (0) target = $region17
    $region16: #{net_forward.1} parent=1 // pred_region
      %s37 = ssub.s32 24576, 24576
      %38 = vsyncadd [#allocation5], %s37
      %s39 = sshll.u32 [#allocation4], 4
      %s40 = int_to_ptr.vmem [resolvable:$true] %s39
      %45 = dma.hbm_to_vmem [thread:$0]  %s3, 24576, %s40, [#allocation5], 256, 256, 16
    $region17: #{net_forward.1} parent=1 // pred_fallthru
      _
    // Predicated region
    $region18: #{net_forward.1} parent=1 // pred_check
      _
    $region19: #{net_forward.1} parent=1 // pred_check_branch
      %47 = sbr.rel (0) target = $region21
    $region20: #{net_forward.1} parent=1 // pred_region
      _
    $region21: #{net_forward.1} parent=1 // pred_fallthru
      _
    // Predicated region
    $region22: #{net_forward.1} parent=1 // pred_check
      _
    $region23: #{net_forward.1} parent=1 // pred_check_branch
      %49 = sbr.rel (0) target = $region25
    $region24: #{net_forward.1} parent=1 // pred_region
      %s51 = ssub.s32 10240, 10240
      %52 = vsyncadd [#allocation5], %s51
      %s53 = sshll.u32 [#allocation6], 4
      %s54 = int_to_ptr.vmem [resolvable:$true] %s53
      %59 = dma.hbm_to_vmem [thread:$0]  %s5, 10240, %s54, [#allocation5], 64, 64, 4
    $region25: #{net_forward.1} parent=1 // pred_fallthru
      _
    // Predicated region
    $region26: #{net_forward.1} parent=1 // pred_check
      _
    $region27: #{net_forward.1} parent=1 // pred_check_branch
      %61 = sbr.rel (0) target = $region29
    $region28: #{net_forward.1} parent=1 // pred_region
      _
    $region29: #{net_forward.1} parent=1 // pred_fallthru
      _
    // Predicated region
    $region30: #{net_forward.1} parent=1 // pred_check
      _
    $region31: #{net_forward.1} parent=1 // pred_check_branch
      %63 = sbr.rel (0) target = $region33
    $region32: #{net_forward.1} parent=1 // pred_region
      _
    $region33: #{net_forward.1} parent=1 // pred_fallthru
      _
    // Predicated region
    $region34: #{net_forward.1} parent=1 // pred_check
      _
    $region35: #{net_forward.1} parent=1 // pred_check_branch
      %65 = sbr.rel (0) target = $region37
    $region36: #{net_forward.1} parent=1 // pred_region
      _
    $region37: #{net_forward.1} parent=1 // pred_fallthru
      _
    // Predicated region
    $region38: #{net_forward.1} parent=1 // pred_check
      _
    $region39: #{net_forward.1} parent=1 // pred_check_branch
      %67 = sbr.rel (0) target = $region41
    $region40: #{net_forward.1} parent=1 // pred_region
      _
    $region41: #{net_forward.1} parent=1 // pred_fallthru
      _
    // Predicated region
    $region42: #{net_forward.1} parent=1 // pred_check
      _
    $region43: #{net_forward.1} parent=1 // pred_check_branch
      %69 = sbr.rel (0) target = $region45
    $region44: #{net_forward.1} parent=1 // pred_region
      _
    $region45: #{net_forward.1} parent=1 // pred_fallthru
      _
    // Predicated region
    $region46: #{net_forward.1} parent=1 // pred_check
      _
    $region47: #{net_forward.1} parent=1 // pred_check_branch
      %71 = sbr.rel (0) target = $region49
    $region48: #{net_forward.1} parent=1 // pred_region
      %72 = dma.done [#allocation3], 3072
    $region49: #{net_forward.1} parent=1 // pred_fallthru
      _
    // Predicated region
    $region50: #{net_forward.1} parent=1 // pred_check
      _
    $region51: #{net_forward.1} parent=1 // pred_check_branch
      %74 = sbr.rel (0) target = $region53
    $region52: #{net_forward.1} parent=1 // pred_region
      %75 = dma.done [#allocation5], 24576
    $region53: #{net_forward.1} parent=1 // pred_fallthru
      _
    // Predicated region
    $region54: #{net_forward.1} parent=1 // pred_check
      _
    $region55: #{net_forward.1} parent=1 // pred_check_branch
      %77 = sbr.rel (0) target = $region57
    $region56: #{net_forward.1} parent=1 // pred_region
      %78 = dma.done [#allocation5], 10240
    $region57: #{net_forward.1} parent=1 // pred_fallthru
      _
    %v80 = vld [vmem:[%s0] sm:$0xf]
    %v81 = vld [vmem:[%s0 + $0x4] sm:$0xf]
    %v82 = vld [vmem:[%s0 + $0x8] sm:$0xf]
    %v83 = vld [vmem:[%s0 + $0xc] sm:$0xf]
    %v84 = vld [vmem:[%s0 + $0x10] sm:$0xf]
    %v85 = vld [vmem:[%s0 + $0x14] sm:$0xf]
    %v86 = vld [vmem:[%s0 + $0x18] sm:$0xf]
    %v87 = vld [vmem:[#allocation2] sm:$0xff]
    %v88 = vld [vmem:[#allocation2 + $0x8] sm:$0xff]
    %v89 = vld [vmem:[#allocation2 + $0x10] sm:$0xff]
    %v90 = vld [vmem:[#allocation2 + $0x18] sm:$0xff]
    %v91 = vld [vmem:[#allocation2 + $0x20] sm:$0xff]
    %v92 = vld [vmem:[#allocation2 + $0x28] sm:$0xff]
    %v93 = vld [vmem:[#allocation2 + $0x30] sm:$0x33]
    %v94 = vld [vmem:[#allocation2 + $0x38] sm:$0x33]
    %s95 = scalar_lea.vmem [#allocation2], 64
    %v96 = vld [vmem:[%s95] sm:$0xff]
    %v97 = vld [vmem:[%s95 + $0x8] sm:$0xff]
    %v98 = vld [vmem:[%s95 + $0x10] sm:$0xff]
    %v99 = vld [vmem:[%s95 + $0x18] sm:$0xff]
    %v100 = vld [vmem:[%s95 + $0x20] sm:$0xff]
    %v101 = vld [vmem:[%s95 + $0x28] sm:$0xff]
    %v102 = vld [vmem:[%s95 + $0x30] sm:$0x33]
    %v103 = vld [vmem:[%s95 + $0x38] sm:$0x33]
    %v111 = vunpack.c.l.b16 %v80
    %v112 = vunpack.c.l.b16 %v81
    %v113 = vunpack.c.l.b16 %v82
    %v114 = vunpack.c.l.b16 %v83
    %v115 = vunpack.c.l.b16 %v84
    %v116 = vunpack.c.l.b16 %v85
    %v117 = vunpack.c.l.b16 %v86
    %v118 = vpack.c.b16 %v112, %v111
    %v119 = vpack.c.b16 %v114, %v113
    %v120 = vpack.c.b16 %v116, %v115
    %v121 = vpack.c.b16 %v117, %v117
    %v130 = vunpack.c.l.b16 %v96
    %v131 = vunpack.c.h.b16 %v96
    %v132 = vunpack.c.l.b16 %v97
    %v133 = vunpack.c.h.b16 %v97
    %v134 = vunpack.c.l.b16 %v98
    %v135 = vunpack.c.h.b16 %v98
    %v136 = vunpack.c.l.b16 %v99
    %v137 = vunpack.c.h.b16 %v99
    %v138 = vunpack.c.l.b16 %v100
    %v139 = vunpack.c.h.b16 %v100
    %v140 = vunpack.c.l.b16 %v101
    %v141 = vunpack.c.h.b16 %v101
    %v142 = vunpack.c.l.b16 %v102
    %v143 = vunpack.c.h.b16 %v102
    %v144 = vunpack.c.l.b16 %v103
    %v145 = vunpack.c.h.b16 %v103
    %v146 = vpack.c.b16 %v134, %v130
    %v147 = vpack.c.b16 %v135, %v131
    %v148 = vpack.c.b16 %v136, %v132
    %v149 = vpack.c.b16 %v137, %v133
    %v150 = vpack.c.b16 %v142, %v138
    %v151 = vpack.c.b16 %v143, %v139
    %v152 = vpack.c.b16 %v144, %v140
    %v153 = vpack.c.b16 %v145, %v141
    %vm158 = vcmask 228352
    %v160 = vsel %vm158, %v118, 0
    %v163 = vsel %vm158, %v119, 0
    %v166 = vsel %vm158, %v120, 0
    %v169 = vsel %vm158, %v121, 0
    %vm171 = vcmask 1045504
    %v173 = vsel %vm171, %v150, 0
    %v176 = vsel %vm171, %v151, 0
    %v179 = vsel %vm171, %v152, 0
    %v182 = vsel %vm171, %v153, 0
    %184 = vmatprep.subr.bf16.mxu0 0
    %185 = vmatpush1.bf16.msra.mxu0 0
    %186 = vmatprep.subr.bf16.mxu0 0
    %187 = vmatpush1.bf16.msra.mxu0 0
    %188 = vmatprep.subr.bf16.mxu0 0
    %189 = vmatpush1.bf16.msra.mxu0 0
    %190 = vmatprep.subr.bf16.mxu0 0
    %191 = vmatpush1.bf16.msra.mxu0 0
    %192 = vmatprep.subr.bf16.mxu0 0
    %193 = vmatpush1.bf16.msra.mxu0 0
    %194 = vmatprep.subr.bf16.mxu0 0
    %195 = vmatpush1.bf16.msra.mxu0 0
    %196 = vmatprep.subr.bf16.mxu0 %v176
    %197 = vmatpush1.bf16.msra.mxu0 %v173
    %198 = vmatprep.subr.bf16.mxu0 %v147
    %199 = vmatpush1.bf16.msra.mxu0 %v146
    %200 = vmatprep.subr.bf16.mxu0 0
    %201 = vmatpush2.bf16.msra.mxu0 0
    %202 = vmatprep.subr.bf16.mxu0 0
    %203 = vmatpush2.bf16.msra.mxu0 0
    %204 = vmatprep.subr.bf16.mxu0 0
    %205 = vmatpush2.bf16.msra.mxu0 0
    %206 = vmatprep.subr.bf16.mxu0 0
    %207 = vmatpush2.bf16.msra.mxu0 0
    %208 = vmatprep.subr.bf16.mxu0 0
    %209 = vmatpush2.bf16.msra.mxu0 0
    %210 = vmatprep.subr.bf16.mxu0 0
    %211 = vmatpush2.bf16.msra.mxu0 0
    %212 = vmatprep.subr.bf16.mxu0 0
    %213 = vmatpush2.bf16.msra.mxu0 0
    %214 = vmatprep.subr.bf16.mxu0 0
    %215 = vmatpush2.bf16.msra.mxu0 0
    %216 = vmatprep.mubr.bf16.mxu0 0
    %217 = vmatmul.mubr.bf16.gmra.mxu0 %v160
    %v218 = vpop.f32.mrf.mxu0
    %v219 = vadd.f32 0.0, %v218
    %v220 = vpop.f32.mrf.mxu0
    %v221 = vadd.f32 0.0, %v220
    %v222 = vpop.f32.mrf.mxu0
    %v223 = vadd.f32 0.0, %v222
    %v224 = vpop.f32.mrf.mxu0
    %v225 = vadd.f32 0.0, %v224
    %226 = vmatprep.mubr.bf16.mxu0 0
    %227 = vmatmul.mubr.bf16.gmra.mxu0 %v163
    %v228 = vpop.f32.mrf.mxu0
    %v229 = vadd.f32 0.0, %v228
    %v230 = vpop.f32.mrf.mxu0
    %v231 = vadd.f32 0.0, %v230
    %v232 = vpop.f32.mrf.mxu0
    %v233 = vadd.f32 0.0, %v232
    %v234 = vpop.f32.mrf.mxu0
    %v235 = vadd.f32 0.0, %v234
    %236 = vmatprep.mubr.bf16.mxu0 0
    %237 = vmatmul.mubr.bf16.gmra.mxu0 %v166
    %v238 = vpop.f32.mrf.mxu0
    %v239 = vadd.f32 0.0, %v238
    %v240 = vpop.f32.mrf.mxu0
    %v241 = vadd.f32 0.0, %v240
    %v242 = vpop.f32.mrf.mxu0
    %v243 = vadd.f32 0.0, %v242
    %v244 = vpop.f32.mrf.mxu0
    %v245 = vadd.f32 0.0, %v244
    %246 = vmatprep.mubr.bf16.mxu0 0
    %247 = vmatmul.mubr.bf16.gmra.mxu0 %v169
    %v248 = vpop.f32.mrf.mxu0
    %v249 = vadd.f32 0.0, %v248
    %v250 = vpop.f32.mrf.mxu0
    %v251 = vadd.f32 0.0, %v250
    %v252 = vpop.f32.mrf.mxu0
    %v253 = vpop.f32.mrf.mxu0
    %254 = vdwg.mxu0
    %255 = vmatprep.subr.bf16.mxu0 0
    %256 = vmatpush1.bf16.msra.mxu0 0
    %257 = vmatprep.subr.bf16.mxu0 0
    %258 = vmatpush1.bf16.msra.mxu0 0
    %259 = vmatprep.subr.bf16.mxu0 0
    %260 = vmatpush1.bf16.msra.mxu0 0
    %261 = vmatprep.subr.bf16.mxu0 0
    %262 = vmatpush1.bf16.msra.mxu0 0
    %263 = vmatprep.subr.bf16.mxu0 0
    %264 = vmatpush1.bf16.msra.mxu0 0
    %265 = vmatprep.subr.bf16.mxu0 0
    %266 = vmatpush1.bf16.msra.mxu0 0
    %267 = vmatprep.subr.bf16.mxu0 %v182
    %268 = vmatpush1.bf16.msra.mxu0 %v179
    %269 = vmatprep.subr.bf16.mxu0 %v149
    %270 = vmatpush1.bf16.msra.mxu0 %v148
    %271 = vmatprep.subr.bf16.mxu0 0
    %272 = vmatpush2.bf16.msra.mxu0 0
    %273 = vmatprep.subr.bf16.mxu0 0
    %274 = vmatpush2.bf16.msra.mxu0 0
    %275 = vmatprep.subr.bf16.mxu0 0
    %276 = vmatpush2.bf16.msra.mxu0 0
    %277 = vmatprep.subr.bf16.mxu0 0
    %278 = vmatpush2.bf16.msra.mxu0 0
    %279 = vmatprep.subr.bf16.mxu0 0
    %280 = vmatpush2.bf16.msra.mxu0 0
    %281 = vmatprep.subr.bf16.mxu0 0
    %282 = vmatpush2.bf16.msra.mxu0 0
    %283 = vmatprep.subr.bf16.mxu0 0
    %284 = vmatpush2.bf16.msra.mxu0 0
    %285 = vmatprep.subr.bf16.mxu0 0
    %286 = vmatpush2.bf16.msra.mxu0 0
    %287 = vmatprep.mubr.bf16.mxu0 0
    %288 = vmatmul.mubr.bf16.gmra.mxu0 %v160
    %v289 = vpop.f32.mrf.mxu0
    %v290 = vadd.f32 0.0, %v289
    %v291 = vpop.f32.mrf.mxu0
    %v292 = vadd.f32 0.0, %v291
    %v293 = vpop.f32.mrf.mxu0
    %v294 = vadd.f32 0.0, %v293
    %v295 = vpop.f32.mrf.mxu0
    %v296 = vadd.f32 0.0, %v295
    %297 = vmatprep.mubr.bf16.mxu0 0
    %298 = vmatmul.mubr.bf16.gmra.mxu0 %v163
    %v299 = vpop.f32.mrf.mxu0
    %v300 = vadd.f32 0.0, %v299
    %v301 = vpop.f32.mrf.mxu0
    %v302 = vadd.f32 0.0, %v301
    %v303 = vpop.f32.mrf.mxu0
    %v304 = vadd.f32 0.0, %v303
    %v305 = vpop.f32.mrf.mxu0
    %v306 = vadd.f32 0.0, %v305
    %307 = vmatprep.mubr.bf16.mxu0 0
    %308 = vmatmul.mubr.bf16.gmra.mxu0 %v166
    %v309 = vpop.f32.mrf.mxu0
    %v310 = vadd.f32 0.0, %v309
    %v311 = vpop.f32.mrf.mxu0
    %v312 = vadd.f32 0.0, %v311
    %v313 = vpop.f32.mrf.mxu0
    %v314 = vadd.f32 0.0, %v313
    %v315 = vpop.f32.mrf.mxu0
    %v316 = vadd.f32 0.0, %v315
    %317 = vmatprep.mubr.bf16.mxu0 0
    %318 = vmatmul.mubr.bf16.gmra.mxu0 %v169
    %v319 = vpop.f32.mrf.mxu0
    %v320 = vadd.f32 0.0, %v319
    %v321 = vpop.f32.mrf.mxu0
    %v322 = vadd.f32 0.0, %v321
    %v323 = vpop.f32.mrf.mxu0
    %v324 = vpop.f32.mrf.mxu0
    %325 = vdwg.mxu0
    %v326 = vrot.slane %v219, 1
    %v327 = vrot.slane %v221, 1
    %v328 = vrot.slane %v290, 1
    %v329 = vrot.slane %v292, 1
    %v330 = vrot.slane %v223, 1
    %v331 = vrot.slane %v225, 1
    %v332 = vrot.slane %v294, 1
    %v333 = vrot.slane %v296, 1
    %v334 = vrot.slane %v229, 1
    %v335 = vrot.slane %v231, 1
    %v336 = vrot.slane %v300, 1
    %v337 = vrot.slane %v302, 1
    %v338 = vrot.slane %v233, 1
    %v339 = vrot.slane %v235, 1
    %v340 = vrot.slane %v304, 1
    %v341 = vrot.slane %v306, 1
    %v342 = vrot.slane %v239, 1
    %v343 = vrot.slane %v241, 1
    %v344 = vrot.slane %v310, 1
    %v345 = vrot.slane %v312, 1
    %v346 = vrot.slane %v243, 1
    %v347 = vrot.slane %v245, 1
    %v348 = vrot.slane %v314, 1
    %v349 = vrot.slane %v316, 1
    %v350 = vrot.slane %v249, 1
    %v351 = vrot.slane %v251, 1
    %v352 = vrot.slane %v320, 1
    %v353 = vrot.slane %v322, 1
    %v354 = vlaneseq
    %v355 = vshrl.u32 %v354, 7
    %vm356 = vcmp.lt.s32.totalorder %v355, 7
    %v357 = vsel %vm356, %v346, %v350
    %v358 = vsel %vm356, %v347, %v351
    %v359 = vsel %vm356, %v348, %v352
    %v360 = vsel %vm356, %v349, %v353
    %v361 = vsel %vm356, %v342, %v346
    %v362 = vsel %vm356, %v343, %v347
    %v363 = vsel %vm356, %v344, %v348
    %v364 = vsel %vm356, %v345, %v349
    %v365 = vsel %vm356, %v338, %v342
    %v366 = vsel %vm356, %v339, %v343
    %v367 = vsel %vm356, %v340, %v344
    %v368 = vsel %vm356, %v341, %v345
    %v369 = vsel %vm356, %v334, %v338
    %v370 = vsel %vm356, %v335, %v339
    %v371 = vsel %vm356, %v336, %v340
    %v372 = vsel %vm356, %v337, %v341
    %v373 = vsel %vm356, %v330, %v334
    %v374 = vsel %vm356, %v331, %v335
    %v375 = vsel %vm356, %v332, %v336
    %v376 = vsel %vm356, %v333, %v337
    %v377 = vsel %vm356, %v326, %v330
    %v378 = vsel %vm356, %v327, %v331
    %v379 = vsel %vm356, %v328, %v332
    %v380 = vsel %vm356, %v329, %v333
    %v381 = vsel %vm356, %v350, %v326
    %v382 = vsel %vm356, %v351, %v327
    %v383 = vsel %vm356, %v352, %v328
    %v384 = vsel %vm356, %v353, %v329
    %v393 = vunpack.c.l.b16 %v87
    %v394 = vunpack.c.h.b16 %v87
    %v395 = vunpack.c.l.b16 %v88
    %v396 = vunpack.c.h.b16 %v88
    %v397 = vunpack.c.l.b16 %v89
    %v398 = vunpack.c.h.b16 %v89
    %v399 = vunpack.c.l.b16 %v90
    %v400 = vunpack.c.h.b16 %v90
    %v401 = vunpack.c.l.b16 %v91
    %v402 = vunpack.c.h.b16 %v91
    %v403 = vunpack.c.l.b16 %v92
    %v404 = vunpack.c.h.b16 %v92
    %v405 = vunpack.c.l.b16 %v93
    %v406 = vunpack.c.h.b16 %v93
    %v407 = vunpack.c.l.b16 %v94
    %v408 = vunpack.c.h.b16 %v94
    %v409 = vpack.c.b16 %v397, %v393
    %v410 = vpack.c.b16 %v398, %v394
    %v411 = vpack.c.b16 %v399, %v395
    %v412 = vpack.c.b16 %v400, %v396
    %v413 = vpack.c.b16 %v405, %v401
    %v414 = vpack.c.b16 %v406, %v402
    %v415 = vpack.c.b16 %v407, %v403
    %v416 = vpack.c.b16 %v408, %v404
    %v422 = vsel %vm171, %v413, 0
    %v425 = vsel %vm171, %v414, 0
    %v428 = vsel %vm171, %v415, 0
    %v431 = vsel %vm171, %v416, 0
    %433 = vmatprep.subr.bf16.mxu0 0
    %434 = vmatpush1.bf16.msra.mxu0 0
    %435 = vmatprep.subr.bf16.mxu0 0
    %436 = vmatpush1.bf16.msra.mxu0 0
    %437 = vmatprep.subr.bf16.mxu0 0
    %438 = vmatpush1.bf16.msra.mxu0 0
    %439 = vmatprep.subr.bf16.mxu0 0
    %440 = vmatpush1.bf16.msra.mxu0 0
    %441 = vmatprep.subr.bf16.mxu0 0
    %442 = vmatpush1.bf16.msra.mxu0 0
    %443 = vmatprep.subr.bf16.mxu0 0
    %444 = vmatpush1.bf16.msra.mxu0 0
    %445 = vmatprep.subr.bf16.mxu0 %v425
    %446 = vmatpush1.bf16.msra.mxu0 %v422
    %447 = vmatprep.subr.bf16.mxu0 %v410
    %448 = vmatpush1.bf16.msra.mxu0 %v409
    %449 = vmatprep.subr.bf16.mxu0 0
    %450 = vmatpush2.bf16.msra.mxu0 0
    %451 = vmatprep.subr.bf16.mxu0 0
    %452 = vmatpush2.bf16.msra.mxu0 0
    %453 = vmatprep.subr.bf16.mxu0 0
    %454 = vmatpush2.bf16.msra.mxu0 0
    %455 = vmatprep.subr.bf16.mxu0 0
    %456 = vmatpush2.bf16.msra.mxu0 0
    %457 = vmatprep.subr.bf16.mxu0 0
    %458 = vmatpush2.bf16.msra.mxu0 0
    %459 = vmatprep.subr.bf16.mxu0 0
    %460 = vmatpush2.bf16.msra.mxu0 0
    %461 = vmatprep.subr.bf16.mxu0 0
    %462 = vmatpush2.bf16.msra.mxu0 0
    %463 = vmatprep.subr.bf16.mxu0 0
    %464 = vmatpush2.bf16.msra.mxu0 0
    %465 = vmatprep.mubr.bf16.mxu0 0
    %466 = vmatmul.mubr.bf16.gmra.mxu0 %v160
    %v467 = vpop.f32.mrf.mxu0
    %v468 = vadd.f32 %v377, %v467
    %v469 = vpop.f32.mrf.mxu0
    %v470 = vadd.f32 %v378, %v469
    %v471 = vpop.f32.mrf.mxu0
    %v472 = vadd.f32 %v373, %v471
    %v473 = vpop.f32.mrf.mxu0
    %v474 = vadd.f32 %v374, %v473
    %475 = vmatprep.mubr.bf16.mxu0 0
    %476 = vmatmul.mubr.bf16.gmra.mxu0 %v163
    %v477 = vpop.f32.mrf.mxu0
    %v478 = vadd.f32 %v369, %v477
    %v479 = vpop.f32.mrf.mxu0
    %v480 = vadd.f32 %v370, %v479
    %v481 = vpop.f32.mrf.mxu0
    %v482 = vadd.f32 %v365, %v481
    %v483 = vpop.f32.mrf.mxu0
    %v484 = vadd.f32 %v366, %v483
    %485 = vmatprep.mubr.bf16.mxu0 0
    %486 = vmatmul.mubr.bf16.gmra.mxu0 %v166
    %v487 = vpop.f32.mrf.mxu0
    %v488 = vadd.f32 %v361, %v487
    %v489 = vpop.f32.mrf.mxu0
    %v490 = vadd.f32 %v362, %v489
    %v491 = vpop.f32.mrf.mxu0
    %v492 = vadd.f32 %v357, %v491
    %v493 = vpop.f32.mrf.mxu0
    %v494 = vadd.f32 %v358, %v493
    %495 = vmatprep.mubr.bf16.mxu0 0
    %496 = vmatmul.mubr.bf16.gmra.mxu0 %v169
    %v497 = vpop.f32.mrf.mxu0
    %v498 = vadd.f32 %v381, %v497
    %v499 = vpop.f32.mrf.mxu0
    %v500 = vadd.f32 %v382, %v499
    %v501 = vpop.f32.mrf.mxu0
    %v502 = vpop.f32.mrf.mxu0
    %503 = vdwg.mxu0
    %504 = vmatprep.subr.bf16.mxu0 0
    %505 = vmatpush1.bf16.msra.mxu0 0
    %506 = vmatprep.subr.bf16.mxu0 0
    %507 = vmatpush1.bf16.msra.mxu0 0
    %508 = vmatprep.subr.bf16.mxu0 0
    %509 = vmatpush1.bf16.msra.mxu0 0
    %510 = vmatprep.subr.bf16.mxu0 0
    %511 = vmatpush1.bf16.msra.mxu0 0
    %512 = vmatprep.subr.bf16.mxu0 0
    %513 = vmatpush1.bf16.msra.mxu0 0
    %514 = vmatprep.subr.bf16.mxu0 0
    %515 = vmatpush1.bf16.msra.mxu0 0
    %516 = vmatprep.subr.bf16.mxu0 %v431
    %517 = vmatpush1.bf16.msra.mxu0 %v428
    %518 = vmatprep.subr.bf16.mxu0 %v412
    %519 = vmatpush1.bf16.msra.mxu0 %v411
    %520 = vmatprep.subr.bf16.mxu0 0
    %521 = vmatpush2.bf16.msra.mxu0 0
    %522 = vmatprep.subr.bf16.mxu0 0
    %523 = vmatpush2.bf16.msra.mxu0 0
    %524 = vmatprep.subr.bf16.mxu0 0
    %525 = vmatpush2.bf16.msra.mxu0 0
    %526 = vmatprep.subr.bf16.mxu0 0
    %527 = vmatpush2.bf16.msra.mxu0 0
    %528 = vmatprep.subr.bf16.mxu0 0
    %529 = vmatpush2.bf16.msra.mxu0 0
    %530 = vmatprep.subr.bf16.mxu0 0
    %531 = vmatpush2.bf16.msra.mxu0 0
    %532 = vmatprep.subr.bf16.mxu0 0
    %533 = vmatpush2.bf16.msra.mxu0 0
    %534 = vmatprep.subr.bf16.mxu0 0
    %535 = vmatpush2.bf16.msra.mxu0 0
    %536 = vmatprep.mubr.bf16.mxu0 0
    %537 = vmatmul.mubr.bf16.gmra.mxu0 %v160
    %v538 = vpop.f32.mrf.mxu0
    %v539 = vadd.f32 %v379, %v538
    %v540 = vpop.f32.mrf.mxu0
    %v541 = vadd.f32 %v380, %v540
    %v542 = vpop.f32.mrf.mxu0
    %v543 = vadd.f32 %v375, %v542
    %v544 = vpop.f32.mrf.mxu0
    %v545 = vadd.f32 %v376, %v544
    %546 = vmatprep.mubr.bf16.mxu0 0
    %547 = vmatmul.mubr.bf16.gmra.mxu0 %v163
    %v548 = vpop.f32.mrf.mxu0
    %v549 = vadd.f32 %v371, %v548
    %v550 = vpop.f32.mrf.mxu0
    %v551 = vadd.f32 %v372, %v550
    %v552 = vpop.f32.mrf.mxu0
    %v553 = vadd.f32 %v367, %v552
    %v554 = vpop.f32.mrf.mxu0
    %v555 = vadd.f32 %v368, %v554
    %556 = vmatprep.mubr.bf16.mxu0 0
    %557 = vmatmul.mubr.bf16.gmra.mxu0 %v166
    %v558 = vpop.f32.mrf.mxu0
    %v559 = vadd.f32 %v363, %v558
    %v560 = vpop.f32.mrf.mxu0
    %v561 = vadd.f32 %v364, %v560
    %v562 = vpop.f32.mrf.mxu0
    %v563 = vadd.f32 %v359, %v562
    %v564 = vpop.f32.mrf.mxu0
    %v565 = vadd.f32 %v360, %v564
    %566 = vmatprep.mubr.bf16.mxu0 0
    %567 = vmatmul.mubr.bf16.gmra.mxu0 %v169
    %v568 = vpop.f32.mrf.mxu0
    %v569 = vadd.f32 %v383, %v568
    %v570 = vpop.f32.mrf.mxu0
    %v571 = vadd.f32 %v384, %v570
    %v572 = vpop.f32.mrf.mxu0
    %v573 = vpop.f32.mrf.mxu0
    %574 = vdwg.mxu0
    %s575 = scalar_lea.vmem [#allocation2], 128
    %v576 = vld [vmem:[%s575] sm:$0xff]
    %v577 = vld [vmem:[%s575 + $0x8] sm:$0xff]
    %v578 = vld [vmem:[%s575 + $0x10] sm:$0xff]
    %v579 = vld [vmem:[%s575 + $0x18] sm:$0xff]
    %v580 = vld [vmem:[%s575 + $0x20] sm:$0xff]
    %v581 = vld [vmem:[%s575 + $0x28] sm:$0xff]
    %v582 = vld [vmem:[%s575 + $0x30] sm:$0x33]
    %v583 = vld [vmem:[%s575 + $0x38] sm:$0x33]
    %v592 = vunpack.c.l.b16 %v576
    %v593 = vunpack.c.h.b16 %v576
    %v594 = vunpack.c.l.b16 %v577
    %v595 = vunpack.c.h.b16 %v577
    %v596 = vunpack.c.l.b16 %v578
    %v597 = vunpack.c.h.b16 %v578
    %v598 = vunpack.c.l.b16 %v579
    %v599 = vunpack.c.h.b16 %v579
    %v600 = vunpack.c.l.b16 %v580
    %v601 = vunpack.c.h.b16 %v580
    %v602 = vunpack.c.l.b16 %v581
    %v603 = vunpack.c.h.b16 %v581
    %v604 = vunpack.c.l.b16 %v582
    %v605 = vunpack.c.h.b16 %v582
    %v606 = vunpack.c.l.b16 %v583
    %v607 = vunpack.c.h.b16 %v583
    %v608 = vpack.c.b16 %v596, %v592
    %v609 = vpack.c.b16 %v597, %v593
    %v610 = vpack.c.b16 %v598, %v594
    %v611 = vpack.c.b16 %v599, %v595
    %v612 = vpack.c.b16 %v604, %v600
    %v613 = vpack.c.b16 %v605, %v601
    %v614 = vpack.c.b16 %v606, %v602
    %v615 = vpack.c.b16 %v607, %v603
    %v621 = vsel %vm171, %v612, 0
    %v624 = vsel %vm171, %v613, 0
    %v627 = vsel %vm171, %v614, 0
    %v630 = vsel %vm171, %v615, 0
    %632 = vmatprep.subr.bf16.mxu0 0
    %633 = vmatpush1.bf16.msra.mxu0 0
    %634 = vmatprep.subr.bf16.mxu0 0
    %635 = vmatpush1.bf16.msra.mxu0 0
    %636 = vmatprep.subr.bf16.mxu0 0
    %637 = vmatpush1.bf16.msra.mxu0 0
    %638 = vmatprep.subr.bf16.mxu0 0
    %639 = vmatpush1.bf16.msra.mxu0 0
    %640 = vmatprep.subr.bf16.mxu0 0
    %641 = vmatpush1.bf16.msra.mxu0 0
    %642 = vmatprep.subr.bf16.mxu0 0
    %643 = vmatpush1.bf16.msra.mxu0 0
    %644 = vmatprep.subr.bf16.mxu0 %v624
    %645 = vmatpush1.bf16.msra.mxu0 %v621
    %646 = vmatprep.subr.bf16.mxu0 %v609
    %647 = vmatpush1.bf16.msra.mxu0 %v608
    %648 = vmatprep.subr.bf16.mxu0 0
    %649 = vmatpush2.bf16.msra.mxu0 0
    %650 = vmatprep.subr.bf16.mxu0 0
    %651 = vmatpush2.bf16.msra.mxu0 0
    %652 = vmatprep.subr.bf16.mxu0 0
    %653 = vmatpush2.bf16.msra.mxu0 0
    %654 = vmatprep.subr.bf16.mxu0 0
    %655 = vmatpush2.bf16.msra.mxu0 0
    %656 = vmatprep.subr.bf16.mxu0 0
    %657 = vmatpush2.bf16.msra.mxu0 0
    %658 = vmatprep.subr.bf16.mxu0 0
    %659 = vmatpush2.bf16.msra.mxu0 0
    %660 = vmatprep.subr.bf16.mxu0 0
    %661 = vmatpush2.bf16.msra.mxu0 0
    %662 = vmatprep.subr.bf16.mxu0 0
    %663 = vmatpush2.bf16.msra.mxu0 0
    %664 = vmatprep.mubr.bf16.mxu0 0
    %665 = vmatmul.mubr.bf16.gmra.mxu0 %v160
    %v666 = vpop.f32.mrf.mxu0
    %v667 = vadd.f32 0.0, %v666
    %v668 = vpop.f32.mrf.mxu0
    %v669 = vadd.f32 0.0, %v668
    %v670 = vpop.f32.mrf.mxu0
    %v671 = vadd.f32 0.0, %v670
    %v672 = vpop.f32.mrf.mxu0
    %v673 = vadd.f32 0.0, %v672
    %674 = vmatprep.mubr.bf16.mxu0 0
    %675 = vmatmul.mubr.bf16.gmra.mxu0 %v163
    %v676 = vpop.f32.mrf.mxu0
    %v677 = vadd.f32 0.0, %v676
    %v678 = vpop.f32.mrf.mxu0
    %v679 = vadd.f32 0.0, %v678
    %v680 = vpop.f32.mrf.mxu0
    %v681 = vadd.f32 0.0, %v680
    %v682 = vpop.f32.mrf.mxu0
    %v683 = vadd.f32 0.0, %v682
    %684 = vmatprep.mubr.bf16.mxu0 0
    %685 = vmatmul.mubr.bf16.gmra.mxu0 %v166
    %v686 = vpop.f32.mrf.mxu0
    %v687 = vadd.f32 0.0, %v686
    %v688 = vpop.f32.mrf.mxu0
    %v689 = vadd.f32 0.0, %v688
    %v690 = vpop.f32.mrf.mxu0
    %v691 = vadd.f32 0.0, %v690
    %v692 = vpop.f32.mrf.mxu0
    %v693 = vadd.f32 0.0, %v692
    %694 = vmatprep.mubr.bf16.mxu0 0
    %695 = vmatmul.mubr.bf16.gmra.mxu0 %v169
    %v696 = vpop.f32.mrf.mxu0
    %v697 = vadd.f32 0.0, %v696
    %v698 = vpop.f32.mrf.mxu0
    %v699 = vadd.f32 0.0, %v698
    %v700 = vpop.f32.mrf.mxu0
    %v701 = vpop.f32.mrf.mxu0
    %702 = vdwg.mxu0
    %703 = vmatprep.subr.bf16.mxu0 0
    %704 = vmatpush1.bf16.msra.mxu0 0
    %705 = vmatprep.subr.bf16.mxu0 0
    %706 = vmatpush1.bf16.msra.mxu0 0
    %707 = vmatprep.subr.bf16.mxu0 0
    %708 = vmatpush1.bf16.msra.mxu0 0
    %709 = vmatprep.subr.bf16.mxu0 0
    %710 = vmatpush1.bf16.msra.mxu0 0
    %711 = vmatprep.subr.bf16.mxu0 0
    %712 = vmatpush1.bf16.msra.mxu0 0
    %713 = vmatprep.subr.bf16.mxu0 0
    %714 = vmatpush1.bf16.msra.mxu0 0
    %715 = vmatprep.subr.bf16.mxu0 %v630
    %716 = vmatpush1.bf16.msra.mxu0 %v627
    %717 = vmatprep.subr.bf16.mxu0 %v611
    %718 = vmatpush1.bf16.msra.mxu0 %v610
    %719 = vmatprep.subr.bf16.mxu0 0
    %720 = vmatpush2.bf16.msra.mxu0 0
    %721 = vmatprep.subr.bf16.mxu0 0
    %722 = vmatpush2.bf16.msra.mxu0 0
    %723 = vmatprep.subr.bf16.mxu0 0
    %724 = vmatpush2.bf16.msra.mxu0 0
    %725 = vmatprep.subr.bf16.mxu0 0
    %726 = vmatpush2.bf16.msra.mxu0 0
    %727 = vmatprep.subr.bf16.mxu0 0
    %728 = vmatpush2.bf16.msra.mxu0 0
    %729 = vmatprep.subr.bf16.mxu0 0
    %730 = vmatpush2.bf16.msra.mxu0 0
    %731 = vmatprep.subr.bf16.mxu0 0
    %732 = vmatpush2.bf16.msra.mxu0 0
    %733 = vmatprep.subr.bf16.mxu0 0
    %734 = vmatpush2.bf16.msra.mxu0 0
    %735 = vmatprep.mubr.bf16.mxu0 0
    %736 = vmatmul.mubr.bf16.gmra.mxu0 %v160
    %v737 = vpop.f32.mrf.mxu0
    %v738 = vadd.f32 0.0, %v737
    %v739 = vpop.f32.mrf.mxu0
    %v740 = vadd.f32 0.0, %v739
    %v741 = vpop.f32.mrf.mxu0
    %v742 = vadd.f32 0.0, %v741
    %v743 = vpop.f32.mrf.mxu0
    %v744 = vadd.f32 0.0, %v743
    %745 = vmatprep.mubr.bf16.mxu0 0
    %746 = vmatmul.mubr.bf16.gmra.mxu0 %v163
    %v747 = vpop.f32.mrf.mxu0
    %v748 = vadd.f32 0.0, %v747
    %v749 = vpop.f32.mrf.mxu0
    %v750 = vadd.f32 0.0, %v749
    %v751 = vpop.f32.mrf.mxu0
    %v752 = vadd.f32 0.0, %v751
    %v753 = vpop.f32.mrf.mxu0
    %v754 = vadd.f32 0.0, %v753
    %755 = vmatprep.mubr.bf16.mxu0 0
    %756 = vmatmul.mubr.bf16.gmra.mxu0 %v166
    %v757 = vpop.f32.mrf.mxu0
    %v758 = vadd.f32 0.0, %v757
    %v759 = vpop.f32.mrf.mxu0
    %v760 = vadd.f32 0.0, %v759
    %v761 = vpop.f32.mrf.mxu0
    %v762 = vadd.f32 0.0, %v761
    %v763 = vpop.f32.mrf.mxu0
    %v764 = vadd.f32 0.0, %v763
    %765 = vmatprep.mubr.bf16.mxu0 0
    %766 = vmatmul.mubr.bf16.gmra.mxu0 %v169
    %v767 = vpop.f32.mrf.mxu0
    %v768 = vadd.f32 0.0, %v767
    %v769 = vpop.f32.mrf.mxu0
    %v770 = vadd.f32 0.0, %v769
    %v771 = vpop.f32.mrf.mxu0
    %v772 = vpop.f32.mrf.mxu0
    %773 = vdwg.mxu0
    %v774 = vrot.slane %v667, 2
    %v775 = vrot.slane %v669, 2
    %v776 = vrot.slane %v738, 2
    %v777 = vrot.slane %v740, 2
    %v778 = vrot.slane %v671, 2
    %v779 = vrot.slane %v673, 2
    %v780 = vrot.slane %v742, 2
    %v781 = vrot.slane %v744, 2
    %v782 = vrot.slane %v677, 2
    %v783 = vrot.slane %v679, 2
    %v784 = vrot.slane %v748, 2
    %v785 = vrot.slane %v750, 2
    %v786 = vrot.slane %v681, 2
    %v787 = vrot.slane %v683, 2
    %v788 = vrot.slane %v752, 2
    %v789 = vrot.slane %v754, 2
    %v790 = vrot.slane %v687, 2
    %v791 = vrot.slane %v689, 2
    %v792 = vrot.slane %v758, 2
    %v793 = vrot.slane %v760, 2
    %v794 = vrot.slane %v691, 2
    %v795 = vrot.slane %v693, 2
    %v796 = vrot.slane %v762, 2
    %v797 = vrot.slane %v764, 2
    %v798 = vrot.slane %v697, 2
    %v799 = vrot.slane %v699, 2
    %v800 = vrot.slane %v768, 2
    %v801 = vrot.slane %v770, 2
    %vm802 = vcmp.lt.s32.totalorder %v355, 6
    %v803 = vsel %vm802, %v794, %v798
    %v804 = vsel %vm802, %v795, %v799
    %v805 = vsel %vm802, %v796, %v800
    %v806 = vsel %vm802, %v797, %v801
    %v807 = vsel %vm802, %v790, %v794
    %v808 = vsel %vm802, %v791, %v795
    %v809 = vsel %vm802, %v792, %v796
    %v810 = vsel %vm802, %v793, %v797
    %v811 = vsel %vm802, %v786, %v790
    %v812 = vsel %vm802, %v787, %v791
    %v813 = vsel %vm802, %v788, %v792
    %v814 = vsel %vm802, %v789, %v793
    %v815 = vsel %vm802, %v782, %v786
    %v816 = vsel %vm802, %v783, %v787
    %v817 = vsel %vm802, %v784, %v788
    %v818 = vsel %vm802, %v785, %v789
    %v819 = vsel %vm802, %v778, %v782
    %v820 = vsel %vm802, %v779, %v783
    %v821 = vsel %vm802, %v780, %v784
    %v822 = vsel %vm802, %v781, %v785
    %v823 = vsel %vm802, %v774, %v778
    %v824 = vsel %vm802, %v775, %v779
    %v825 = vsel %vm802, %v776, %v780
    %v826 = vsel %vm802, %v777, %v781
    %v827 = vsel %vm802, %v798, %v774
    %v828 = vsel %vm802, %v799, %v775
    %v829 = vsel %vm802, %v800, %v776
    %v830 = vsel %vm802, %v801, %v777
    %v831 = vadd.f32 %v468, %v823
    %v832 = vadd.f32 %v470, %v824
    %v833 = vadd.f32 %v539, %v825
    %v834 = vadd.f32 %v541, %v826
    %v835 = vadd.f32 %v472, %v819
    %v836 = vadd.f32 %v474, %v820
    %v837 = vadd.f32 %v543, %v821
    %v838 = vadd.f32 %v545, %v822
    %v839 = vadd.f32 %v478, %v815
    %v840 = vadd.f32 %v480, %v816
    %v841 = vadd.f32 %v549, %v817
    %v842 = vadd.f32 %v551, %v818
    %v843 = vadd.f32 %v482, %v811
    %v844 = vadd.f32 %v484, %v812
    %v845 = vadd.f32 %v553, %v813
    %v846 = vadd.f32 %v555, %v814
    %v847 = vadd.f32 %v488, %v807
    %v848 = vadd.f32 %v490, %v808
    %v849 = vadd.f32 %v559, %v809
    %v850 = vadd.f32 %v561, %v810
    %v851 = vadd.f32 %v492, %v803
    %v852 = vadd.f32 %v494, %v804
    %v853 = vadd.f32 %v563, %v805
    %v854 = vadd.f32 %v565, %v806
    %v855 = vadd.f32 %v498, %v827
    %v856 = vadd.f32 %v500, %v828
    %v857 = vadd.f32 %v569, %v829
    %v858 = vadd.f32 %v571, %v830
    %v859 = vmax.f32 %v831, %v833
    %v860 = vmax.f32 %v832, %v834
    %v861 = vmax.f32 %v835, %v837
    %v862 = vmax.f32 %v836, %v838
    %v863 = vmax.f32 %v839, %v841
    %v864 = vmax.f32 %v840, %v842
    %v865 = vmax.f32 %v843, %v845
    %v866 = vmax.f32 %v844, %v846
    %v867 = vmax.f32 %v847, %v849
    %v868 = vmax.f32 %v848, %v850
    %v869 = vmax.f32 %v851, %v853
    %v870 = vmax.f32 %v852, %v854
    %v871 = vmax.f32 %v855, %v857
    %v872 = vmax.f32 %v856, %v858
    %v873 = vrot.slane %v859, 1
    %v874 = vrot.slane %v860, 1
    %v875 = vrot.slane %v861, 1
    %v876 = vrot.slane %v862, 1
    %v877 = vrot.slane %v863, 1
    %v878 = vrot.slane %v864, 1
    %v879 = vrot.slane %v865, 1
    %v880 = vrot.slane %v866, 1
    %v881 = vrot.slane %v867, 1
    %v882 = vrot.slane %v868, 1
    %v883 = vrot.slane %v869, 1
    %v884 = vrot.slane %v870, 1
    %v885 = vrot.slane %v871, 1
    %v886 = vrot.slane %v872, 1
    %v887 = vsel %vm356, %v883, %v885
    %v888 = vsel %vm356, %v884, %v886
    %v889 = vsel %vm356, %v881, %v883
    %v890 = vsel %vm356, %v882, %v884
    %v891 = vsel %vm356, %v879, %v881
    %v892 = vsel %vm356, %v880, %v882
    %v893 = vsel %vm356, %v877, %v879
    %v894 = vsel %vm356, %v878, %v880
    %v895 = vsel %vm356, %v875, %v877
    %v896 = vsel %vm356, %v876, %v878
    %v897 = vsel %vm356, %v873, %v875
    %v898 = vsel %vm356, %v874, %v876
    %v899 = vsel %vm356, %v885, %v873
    %v900 = vsel %vm356, %v886, %v874
    %v901 = vmax.f32 %v859, %v897
    %v902 = vmax.f32 %v860, %v898
    %v903 = vmax.f32 %v861, %v895
    %v904 = vmax.f32 %v862, %v896
    %v905 = vmax.f32 %v863, %v893
    %v906 = vmax.f32 %v864, %v894
    %v907 = vmax.f32 %v865, %v891
    %v908 = vmax.f32 %v866, %v892
    %v909 = vmax.f32 %v867, %v889
    %v910 = vmax.f32 %v868, %v890
    %v911 = vmax.f32 %v869, %v887
    %v912 = vmax.f32 %v870, %v888
    %v913 = vmax.f32 %v871, %v899
    %v914 = vmax.f32 %v872, %v900
    %v915 = vld [vmem:[%s2] sm:$0x3]
    %v917 = vlaneseq
    %v918 = vshrl.u32 %v917, 7
    %v919 = vsub.s32 0, %v918
    %v920 = vrot.slane %v915, %v919
    %v921 = vlaneseq
    %v922 = vshrl.u32 %v921, 7
    %v923 = vsub.s32 1, %v922
    %v924 = vrot.slane %v915, %v923
    %v927 = vadd.f32 %v901, %v920
    %v928 = vadd.f32 %v902, %v924
    %v929 = vadd.f32 %v903, %v920
    %v930 = vadd.f32 %v904, %v924
    %v931 = vadd.f32 %v905, %v920
    %v932 = vadd.f32 %v906, %v924
    %v933 = vadd.f32 %v907, %v920
    %v934 = vadd.f32 %v908, %v924
    %v935 = vadd.f32 %v909, %v920
    %v936 = vadd.f32 %v910, %v924
    %v937 = vadd.f32 %v911, %v920
    %v938 = vadd.f32 %v912, %v924
    %v939 = vadd.f32 %v913, %v920
    %v940 = vadd.f32 %v914, %v924
    %v941 = vmax.f32 %v927, 0.0
    %v942 = vmax.f32 %v928, 0.0
    %v943 = vmax.f32 %v929, 0.0
    %v944 = vmax.f32 %v930, 0.0
    %v945 = vmax.f32 %v931, 0.0
    %v946 = vmax.f32 %v932, 0.0
    %v947 = vmax.f32 %v933, 0.0
    %v948 = vmax.f32 %v934, 0.0
    %v949 = vmax.f32 %v935, 0.0
    %v950 = vmax.f32 %v936, 0.0
    %v951 = vmax.f32 %v937, 0.0
    %v952 = vmax.f32 %v938, 0.0
    %v953 = vmax.f32 %v939, 0.0
    %v954 = vmax.f32 %v940, 0.0
    %v955 = vpack.c.bf16 %v943, %v941
    %v956 = vpack.c.bf16 %v944, %v942
    %v957 = vpack.c.bf16 %v947, %v945
    %v958 = vpack.c.bf16 %v948, %v946
    %v959 = vpack.c.bf16 %v951, %v949
    %v960 = vpack.c.bf16 %v952, %v950
    %v961 = vpack.c.bf16 %v953, %v953
    %v962 = vpack.c.bf16 %v954, %v954
    %v963 = vld [vmem:[#allocation4] sm:$0xff]
    %v964 = vld [vmem:[#allocation4 + $0x8] sm:$0xff]
    %v965 = vld [vmem:[#allocation4 + $0x10] sm:$0xff]
    %v966 = vld [vmem:[#allocation4 + $0x18] sm:$0xff]
    %v967 = vld [vmem:[#allocation4 + $0x20] sm:$0xff]
    %v968 = vld [vmem:[#allocation4 + $0x28] sm:$0xff]
    %v969 = vld [vmem:[#allocation4 + $0x30] sm:$0xff]
    %v970 = vld [vmem:[#allocation4 + $0x38] sm:$0xff]
    %v971 = vld [vmem:[#allocation4 + $0x40] sm:$0xff]
    %v972 = vld [vmem:[#allocation4 + $0x48] sm:$0xff]
    %v973 = vld [vmem:[#allocation4 + $0x50] sm:$0xff]
    %v974 = vld [vmem:[#allocation4 + $0x58] sm:$0xff]
    %v975 = vld [vmem:[#allocation4 + $0x60] sm:$0xff]
    %v976 = vld [vmem:[#allocation4 + $0x68] sm:$0xff]
    %v977 = vld [vmem:[#allocation4 + $0x70] sm:$0xff]
    %v978 = vld [vmem:[#allocation4 + $0x78] sm:$0xff]
    %v979 = vld [vmem:[#allocation4 + $0x80] sm:$0xff]
    %v980 = vld [vmem:[#allocation4 + $0x88] sm:$0xff]
    %v981 = vld [vmem:[#allocation4 + $0x90] sm:$0xff]
    %v982 = vld [vmem:[#allocation4 + $0x98] sm:$0xff]
    %v983 = vld [vmem:[#allocation4 + $0xa0] sm:$0xff]
    %v984 = vld [vmem:[#allocation4 + $0xa8] sm:$0xff]
    %v985 = vld [vmem:[#allocation4 + $0xb0] sm:$0xff]
    %v986 = vld [vmem:[#allocation4 + $0xb8] sm:$0xff]
    %v987 = vld [vmem:[#allocation4 + $0xc0] sm:$0xff]
    %v988 = vld [vmem:[#allocation4 + $0xc8] sm:$0xff]
    %v989 = vld [vmem:[#allocation4 + $0xd0] sm:$0xff]
    %v990 = vld [vmem:[#allocation4 + $0xd8] sm:$0xff]
    %v991 = vld [vmem:[#allocation4 + $0xe0] sm:$0xff]
    %v992 = vld [vmem:[#allocation4 + $0xe8] sm:$0xff]
    %v993 = vld [vmem:[#allocation4 + $0xf0] sm:$0xff]
    %v994 = vld [vmem:[#allocation4 + $0xf8] sm:$0xff]
    %v995 = vld [vmem:[#allocation4 + $0x100] sm:$0xff]
    %v996 = vld [vmem:[#allocation4 + $0x108] sm:$0xff]
    %v997 = vld [vmem:[#allocation4 + $0x110] sm:$0xff]
    %v998 = vld [vmem:[#allocation4 + $0x118] sm:$0xff]
    %v999 = vld [vmem:[#allocation4 + $0x120] sm:$0xff]
    %v1000 = vld [vmem:[#allocation4 + $0x128] sm:$0xff]
    %v1001 = vld [vmem:[#allocation4 + $0x130] sm:$0xff]
    %v1002 = vld [vmem:[#allocation4 + $0x138] sm:$0xff]
    %v1003 = vld [vmem:[#allocation4 + $0x140] sm:$0xff]
    %v1004 = vld [vmem:[#allocation4 + $0x148] sm:$0xff]
    %v1005 = vld [vmem:[#allocation4 + $0x150] sm:$0xff]
    %v1006 = vld [vmem:[#allocation4 + $0x158] sm:$0xff]
    %v1007 = vld [vmem:[#allocation4 + $0x160] sm:$0xff]
    %v1008 = vld [vmem:[#allocation4 + $0x168] sm:$0xff]
    %v1009 = vld [vmem:[#allocation4 + $0x170] sm:$0xff]
    %v1010 = vld [vmem:[#allocation4 + $0x178] sm:$0xff]
    %v1011 = vld [vmem:[#allocation4 + $0x180] sm:$0xff]
    %v1012 = vld [vmem:[#allocation4 + $0x188] sm:$0xff]
    %v1013 = vld [vmem:[#allocation4 + $0x190] sm:$0xff]
    %v1014 = vld [vmem:[#allocation4 + $0x198] sm:$0xff]
    %v1015 = vld [vmem:[#allocation4 + $0x1a0] sm:$0xff]
    %v1016 = vld [vmem:[#allocation4 + $0x1a8] sm:$0xff]
    %v1017 = vld [vmem:[#allocation4 + $0x1b0] sm:$0xff]
    %v1018 = vld [vmem:[#allocation4 + $0x1b8] sm:$0xff]
    %v1019 = vld [vmem:[#allocation4 + $0x1c0] sm:$0xff]
    %v1020 = vld [vmem:[#allocation4 + $0x1c8] sm:$0xff]
    %v1021 = vld [vmem:[#allocation4 + $0x1d0] sm:$0xff]
    %v1022 = vld [vmem:[#allocation4 + $0x1d8] sm:$0xff]
    %v1023 = vld [vmem:[#allocation4 + $0x1e0] sm:$0xff]
    %v1024 = vld [vmem:[#allocation4 + $0x1e8] sm:$0xff]
    %v1025 = vld [vmem:[#allocation4 + $0x1f0] sm:$0xff]
    %v1026 = vld [vmem:[#allocation4 + $0x1f8] sm:$0xff]
    %s1027 = scalar_lea.vmem [#allocation4], 512
    %v1028 = vld [vmem:[%s1027] sm:$0xff]
    %v1029 = vld [vmem:[%s1027 + $0x8] sm:$0xff]
    %v1030 = vld [vmem:[%s1027 + $0x10] sm:$0xff]
    %v1031 = vld [vmem:[%s1027 + $0x18] sm:$0xff]
    %v1032 = vld [vmem:[%s1027 + $0x20] sm:$0xff]
    %v1033 = vld [vmem:[%s1027 + $0x28] sm:$0xff]
    %v1034 = vld [vmem:[%s1027 + $0x30] sm:$0xff]
    %v1035 = vld [vmem:[%s1027 + $0x38] sm:$0xff]
    %v1036 = vld [vmem:[%s1027 + $0x40] sm:$0xff]
    %v1037 = vld [vmem:[%s1027 + $0x48] sm:$0xff]
    %v1038 = vld [vmem:[%s1027 + $0x50] sm:$0xff]
    %v1039 = vld [vmem:[%s1027 + $0x58] sm:$0xff]
    %v1040 = vld [vmem:[%s1027 + $0x60] sm:$0xff]
    %v1041 = vld [vmem:[%s1027 + $0x68] sm:$0xff]
    %v1042 = vld [vmem:[%s1027 + $0x70] sm:$0xff]
    %v1043 = vld [vmem:[%s1027 + $0x78] sm:$0xff]
    %v1044 = vld [vmem:[%s1027 + $0x80] sm:$0xff]
    %v1045 = vld [vmem:[%s1027 + $0x88] sm:$0xff]
    %v1046 = vld [vmem:[%s1027 + $0x90] sm:$0xff]
    %v1047 = vld [vmem:[%s1027 + $0x98] sm:$0xff]
    %v1048 = vld [vmem:[%s1027 + $0xa0] sm:$0xff]
    %v1049 = vld [vmem:[%s1027 + $0xa8] sm:$0xff]
    %v1050 = vld [vmem:[%s1027 + $0xb0] sm:$0xff]
    %v1051 = vld [vmem:[%s1027 + $0xb8] sm:$0xff]
    %v1052 = vld [vmem:[%s1027 + $0xc0] sm:$0xff]
    %v1053 = vld [vmem:[%s1027 + $0xc8] sm:$0xff]
    %v1054 = vld [vmem:[%s1027 + $0xd0] sm:$0xff]
    %v1055 = vld [vmem:[%s1027 + $0xd8] sm:$0xff]
    %v1056 = vld [vmem:[%s1027 + $0xe0] sm:$0xff]
    %v1057 = vld [vmem:[%s1027 + $0xe8] sm:$0xff]
    %v1058 = vld [vmem:[%s1027 + $0xf0] sm:$0xff]
    %v1059 = vld [vmem:[%s1027 + $0xf8] sm:$0xff]
    %v1060 = vld [vmem:[%s1027 + $0x100] sm:$0xff]
    %v1061 = vld [vmem:[%s1027 + $0x108] sm:$0xff]
    %v1062 = vld [vmem:[%s1027 + $0x110] sm:$0xff]
    %v1063 = vld [vmem:[%s1027 + $0x118] sm:$0xff]
    %v1064 = vld [vmem:[%s1027 + $0x120] sm:$0xff]
    %v1065 = vld [vmem:[%s1027 + $0x128] sm:$0xff]
    %v1066 = vld [vmem:[%s1027 + $0x130] sm:$0xff]
    %v1067 = vld [vmem:[%s1027 + $0x138] sm:$0xff]
    %v1068 = vld [vmem:[%s1027 + $0x140] sm:$0xff]
    %v1069 = vld [vmem:[%s1027 + $0x148] sm:$0xff]
    %v1070 = vld [vmem:[%s1027 + $0x150] sm:$0xff]
    %v1071 = vld [vmem:[%s1027 + $0x158] sm:$0xff]
    %v1072 = vld [vmem:[%s1027 + $0x160] sm:$0xff]
    %v1073 = vld [vmem:[%s1027 + $0x168] sm:$0xff]
    %v1074 = vld [vmem:[%s1027 + $0x170] sm:$0xff]
    %v1075 = vld [vmem:[%s1027 + $0x178] sm:$0xff]
    %v1076 = vld [vmem:[%s1027 + $0x180] sm:$0xff]
    %v1077 = vld [vmem:[%s1027 + $0x188] sm:$0xff]
    %v1078 = vld [vmem:[%s1027 + $0x190] sm:$0xff]
    %v1079 = vld [vmem:[%s1027 + $0x198] sm:$0xff]
    %v1080 = vld [vmem:[%s1027 + $0x1a0] sm:$0xff]
    %v1081 = vld [vmem:[%s1027 + $0x1a8] sm:$0xff]
    %v1082 = vld [vmem:[%s1027 + $0x1b0] sm:$0xff]
    %v1083 = vld [vmem:[%s1027 + $0x1b8] sm:$0xff]
    %v1084 = vld [vmem:[%s1027 + $0x1c0] sm:$0xff]
    %v1085 = vld [vmem:[%s1027 + $0x1c8] sm:$0xff]
    %v1086 = vld [vmem:[%s1027 + $0x1d0] sm:$0xff]
    %v1087 = vld [vmem:[%s1027 + $0x1d8] sm:$0xff]
    %v1088 = vld [vmem:[%s1027 + $0x1e0] sm:$0xff]
    %v1089 = vld [vmem:[%s1027 + $0x1e8] sm:$0xff]
    %v1090 = vld [vmem:[%s1027 + $0x1f0] sm:$0xff]
    %v1091 = vld [vmem:[%s1027 + $0x1f8] sm:$0xff]
    %v1156 = vunpack.c.l.b16 %v1028
    %v1157 = vunpack.c.h.b16 %v1028
    %v1158 = vunpack.c.l.b16 %v1029
    %v1159 = vunpack.c.h.b16 %v1029
    %v1160 = vunpack.c.l.b16 %v1030
    %v1161 = vunpack.c.h.b16 %v1030
    %v1162 = vunpack.c.l.b16 %v1031
    %v1163 = vunpack.c.h.b16 %v1031
    %v1164 = vunpack.c.l.b16 %v1032
    %v1165 = vunpack.c.h.b16 %v1032
    %v1166 = vunpack.c.l.b16 %v1033
    %v1167 = vunpack.c.h.b16 %v1033
    %v1168 = vunpack.c.l.b16 %v1034
    %v1169 = vunpack.c.h.b16 %v1034
    %v1170 = vunpack.c.l.b16 %v1035
    %v1171 = vunpack.c.h.b16 %v1035
    %v1172 = vunpack.c.l.b16 %v1036
    %v1173 = vunpack.c.h.b16 %v1036
    %v1174 = vunpack.c.l.b16 %v1037
    %v1175 = vunpack.c.h.b16 %v1037
    %v1176 = vunpack.c.l.b16 %v1038
    %v1177 = vunpack.c.h.b16 %v1038
    %v1178 = vunpack.c.l.b16 %v1039
    %v1179 = vunpack.c.h.b16 %v1039
    %v1180 = vunpack.c.l.b16 %v1040
    %v1181 = vunpack.c.h.b16 %v1040
    %v1182 = vunpack.c.l.b16 %v1041
    %v1183 = vunpack.c.h.b16 %v1041
    %v1184 = vunpack.c.l.b16 %v1042
    %v1185 = vunpack.c.h.b16 %v1042
    %v1186 = vunpack.c.l.b16 %v1043
    %v1187 = vunpack.c.h.b16 %v1043
    %v1188 = vunpack.c.l.b16 %v1044
    %v1189 = vunpack.c.h.b16 %v1044
    %v1190 = vunpack.c.l.b16 %v1045
    %v1191 = vunpack.c.h.b16 %v1045
    %v1192 = vunpack.c.l.b16 %v1046
    %v1193 = vunpack.c.h.b16 %v1046
    %v1194 = vunpack.c.l.b16 %v1047
    %v1195 = vunpack.c.h.b16 %v1047
    %v1196 = vunpack.c.l.b16 %v1048
    %v1197 = vunpack.c.h.b16 %v1048
    %v1198 = vunpack.c.l.b16 %v1049
    %v1199 = vunpack.c.h.b16 %v1049
    %v1200 = vunpack.c.l.b16 %v1050
    %v1201 = vunpack.c.h.b16 %v1050
    %v1202 = vunpack.c.l.b16 %v1051
    %v1203 = vunpack.c.h.b16 %v1051
    %v1204 = vunpack.c.l.b16 %v1052
    %v1205 = vunpack.c.h.b16 %v1052
    %v1206 = vunpack.c.l.b16 %v1053
    %v1207 = vunpack.c.h.b16 %v1053
    %v1208 = vunpack.c.l.b16 %v1054
    %v1209 = vunpack.c.h.b16 %v1054
    %v1210 = vunpack.c.l.b16 %v1055
    %v1211 = vunpack.c.h.b16 %v1055
    %v1212 = vunpack.c.l.b16 %v1056
    %v1213 = vunpack.c.h.b16 %v1056
    %v1214 = vunpack.c.l.b16 %v1057
    %v1215 = vunpack.c.h.b16 %v1057
    %v1216 = vunpack.c.l.b16 %v1058
    %v1217 = vunpack.c.h.b16 %v1058
    %v1218 = vunpack.c.l.b16 %v1059
    %v1219 = vunpack.c.h.b16 %v1059
    %v1220 = vunpack.c.l.b16 %v1060
    %v1221 = vunpack.c.h.b16 %v1060
    %v1222 = vunpack.c.l.b16 %v1061
    %v1223 = vunpack.c.h.b16 %v1061
    %v1224 = vunpack.c.l.b16 %v1062
    %v1225 = vunpack.c.h.b16 %v1062
    %v1226 = vunpack.c.l.b16 %v1063
    %v1227 = vunpack.c.h.b16 %v1063
    %v1228 = vunpack.c.l.b16 %v1064
    %v1229 = vunpack.c.h.b16 %v1064
    %v1230 = vunpack.c.l.b16 %v1065
    %v1231 = vunpack.c.h.b16 %v1065
    %v1232 = vunpack.c.l.b16 %v1066
    %v1233 = vunpack.c.h.b16 %v1066
    %v1234 = vunpack.c.l.b16 %v1067
    %v1235 = vunpack.c.h.b16 %v1067
    %v1236 = vunpack.c.l.b16 %v1068
    %v1237 = vunpack.c.h.b16 %v1068
    %v1238 = vunpack.c.l.b16 %v1069
    %v1239 = vunpack.c.h.b16 %v1069
    %v1240 = vunpack.c.l.b16 %v1070
    %v1241 = vunpack.c.h.b16 %v1070
    %v1242 = vunpack.c.l.b16 %v1071
    %v1243 = vunpack.c.h.b16 %v1071
    %v1244 = vunpack.c.l.b16 %v1072
    %v1245 = vunpack.c.h.b16 %v1072
    %v1246 = vunpack.c.l.b16 %v1073
    %v1247 = vunpack.c.h.b16 %v1073
    %v1248 = vunpack.c.l.b16 %v1074
    %v1249 = vunpack.c.h.b16 %v1074
    %v1250 = vunpack.c.l.b16 %v1075
    %v1251 = vunpack.c.h.b16 %v1075
    %v1252 = vunpack.c.l.b16 %v1076
    %v1253 = vunpack.c.h.b16 %v1076
    %v1254 = vunpack.c.l.b16 %v1077
    %v1255 = vunpack.c.h.b16 %v1077
    %v1256 = vunpack.c.l.b16 %v1078
    %v1257 = vunpack.c.h.b16 %v1078
    %v1258 = vunpack.c.l.b16 %v1079
    %v1259 = vunpack.c.h.b16 %v1079
    %v1260 = vunpack.c.l.b16 %v1080
    %v1261 = vunpack.c.h.b16 %v1080
    %v1262 = vunpack.c.l.b16 %v1081
    %v1263 = vunpack.c.h.b16 %v1081
    %v1264 = vunpack.c.l.b16 %v1082
    %v1265 = vunpack.c.h.b16 %v1082
    %v1266 = vunpack.c.l.b16 %v1083
    %v1267 = vunpack.c.h.b16 %v1083
    %v1268 = vunpack.c.l.b16 %v1084
    %v1269 = vunpack.c.h.b16 %v1084
    %v1270 = vunpack.c.l.b16 %v1085
    %v1271 = vunpack.c.h.b16 %v1085
    %v1272 = vunpack.c.l.b16 %v1086
    %v1273 = vunpack.c.h.b16 %v1086
    %v1274 = vunpack.c.l.b16 %v1087
    %v1275 = vunpack.c.h.b16 %v1087
    %v1276 = vunpack.c.l.b16 %v1088
    %v1277 = vunpack.c.h.b16 %v1088
    %v1278 = vunpack.c.l.b16 %v1089
    %v1279 = vunpack.c.h.b16 %v1089
    %v1280 = vunpack.c.l.b16 %v1090
    %v1281 = vunpack.c.h.b16 %v1090
    %v1282 = vunpack.c.l.b16 %v1091
    %v1283 = vunpack.c.h.b16 %v1091
    %v1284 = vpack.c.b16 %v1160, %v1156
    %v1285 = vpack.c.b16 %v1161, %v1157
    %v1286 = vpack.c.b16 %v1162, %v1158
    %v1287 = vpack.c.b16 %v1163, %v1159
    %v1288 = vpack.c.b16 %v1168, %v1164
    %v1289 = vpack.c.b16 %v1169, %v1165
    %v1290 = vpack.c.b16 %v1170, %v1166
    %v1291 = vpack.c.b16 %v1171, %v1167
    %v1292 = vpack.c.b16 %v1176, %v1172
    %v1293 = vpack.c.b16 %v1177, %v1173
    %v1294 = vpack.c.b16 %v1178, %v1174
    %v1295 = vpack.c.b16 %v1179, %v1175
    %v1296 = vpack.c.b16 %v1184, %v1180
    %v1297 = vpack.c.b16 %v1185, %v1181
    %v1298 = vpack.c.b16 %v1186, %v1182
    %v1299 = vpack.c.b16 %v1187, %v1183
    %v1300 = vpack.c.b16 %v1192, %v1188
    %v1301 = vpack.c.b16 %v1193, %v1189
    %v1302 = vpack.c.b16 %v1194, %v1190
    %v1303 = vpack.c.b16 %v1195, %v1191
    %v1304 = vpack.c.b16 %v1200, %v1196
    %v1305 = vpack.c.b16 %v1201, %v1197
    %v1306 = vpack.c.b16 %v1202, %v1198
    %v1307 = vpack.c.b16 %v1203, %v1199
    %v1308 = vpack.c.b16 %v1208, %v1204
    %v1309 = vpack.c.b16 %v1209, %v1205
    %v1310 = vpack.c.b16 %v1210, %v1206
    %v1311 = vpack.c.b16 %v1211, %v1207
    %v1312 = vpack.c.b16 %v1216, %v1212
    %v1313 = vpack.c.b16 %v1217, %v1213
    %v1314 = vpack.c.b16 %v1218, %v1214
    %v1315 = vpack.c.b16 %v1219, %v1215
    %v1316 = vpack.c.b16 %v1224, %v1220
    %v1317 = vpack.c.b16 %v1225, %v1221
    %v1318 = vpack.c.b16 %v1226, %v1222
    %v1319 = vpack.c.b16 %v1227, %v1223
    %v1320 = vpack.c.b16 %v1232, %v1228
    %v1321 = vpack.c.b16 %v1233, %v1229
    %v1322 = vpack.c.b16 %v1234, %v1230
    %v1323 = vpack.c.b16 %v1235, %v1231
    %v1324 = vpack.c.b16 %v1240, %v1236
    %v1325 = vpack.c.b16 %v1241, %v1237
    %v1326 = vpack.c.b16 %v1242, %v1238
    %v1327 = vpack.c.b16 %v1243, %v1239
    %v1328 = vpack.c.b16 %v1248, %v1244
    %v1329 = vpack.c.b16 %v1249, %v1245
    %v1330 = vpack.c.b16 %v1250, %v1246
    %v1331 = vpack.c.b16 %v1251, %v1247
    %v1332 = vpack.c.b16 %v1256, %v1252
    %v1333 = vpack.c.b16 %v1257, %v1253
    %v1334 = vpack.c.b16 %v1258, %v1254
    %v1335 = vpack.c.b16 %v1259, %v1255
    %v1336 = vpack.c.b16 %v1264, %v1260
    %v1337 = vpack.c.b16 %v1265, %v1261
    %v1338 = vpack.c.b16 %v1266, %v1262
    %v1339 = vpack.c.b16 %v1267, %v1263
    %v1340 = vpack.c.b16 %v1272, %v1268
    %v1341 = vpack.c.b16 %v1273, %v1269
    %v1342 = vpack.c.b16 %v1274, %v1270
    %v1343 = vpack.c.b16 %v1275, %v1271
    %v1344 = vpack.c.b16 %v1280, %v1276
    %v1345 = vpack.c.b16 %v1281, %v1277
    %v1346 = vpack.c.b16 %v1282, %v1278
    %v1347 = vpack.c.b16 %v1283, %v1279
    %1412 = vmatprep.subr.bf16.mxu0 %v1313
    %1413 = vmatpush1.bf16.msra.mxu0 %v1312
    %1414 = vmatprep.subr.bf16.mxu0 %v1309
    %1415 = vmatpush1.bf16.msra.mxu0 %v1308
    %1416 = vmatprep.subr.bf16.mxu0 %v1305
    %1417 = vmatpush1.bf16.msra.mxu0 %v1304
    %1418 = vmatprep.subr.bf16.mxu0 %v1301
    %1419 = vmatpush1.bf16.msra.mxu0 %v1300
    %1420 = vmatprep.subr.bf16.mxu0 %v1297
    %1421 = vmatpush1.bf16.msra.mxu0 %v1296
    %1422 = vmatprep.subr.bf16.mxu0 %v1293
    %1423 = vmatpush1.bf16.msra.mxu0 %v1292
    %1424 = vmatprep.subr.bf16.mxu0 %v1289
    %1425 = vmatpush1.bf16.msra.mxu0 %v1288
    %1426 = vmatprep.subr.bf16.mxu0 %v1285
    %1427 = vmatpush1.bf16.msra.mxu0 %v1284
    %1428 = vmatprep.subr.bf16.mxu0 %v1345
    %1429 = vmatpush2.bf16.msra.mxu0 %v1344
    %1430 = vmatprep.subr.bf16.mxu0 %v1341
    %1431 = vmatpush2.bf16.msra.mxu0 %v1340
    %1432 = vmatprep.subr.bf16.mxu0 %v1337
    %1433 = vmatpush2.bf16.msra.mxu0 %v1336
    %1434 = vmatprep.subr.bf16.mxu0 %v1333
    %1435 = vmatpush2.bf16.msra.mxu0 %v1332
    %1436 = vmatprep.subr.bf16.mxu0 %v1329
    %1437 = vmatpush2.bf16.msra.mxu0 %v1328
    %1438 = vmatprep.subr.bf16.mxu0 %v1325
    %1439 = vmatpush2.bf16.msra.mxu0 %v1324
    %1440 = vmatprep.subr.bf16.mxu0 %v1321
    %1441 = vmatpush2.bf16.msra.mxu0 %v1320
    %1442 = vmatprep.subr.bf16.mxu0 %v1317
    %1443 = vmatpush2.bf16.msra.mxu0 %v1316
    %1444 = vmatprep.mubr.bf16.mxu0 %v956
    %1445 = vmatmul.mubr.bf16.gmra.mxu0 %v955
    %v1446 = vpop.f32.mrf.mxu0
    %v1447 = vadd.f32 0.0, %v1446
    %v1448 = vpop.f32.mrf.mxu0
    %v1449 = vadd.f32 0.0, %v1448
    %v1450 = vpop.f32.mrf.mxu0
    %v1451 = vadd.f32 0.0, %v1450
    %v1452 = vpop.f32.mrf.mxu0
    %v1453 = vadd.f32 0.0, %v1452
    %1454 = vmatprep.mubr.bf16.mxu0 %v958
    %1455 = vmatmul.mubr.bf16.gmra.mxu0 %v957
    %v1456 = vpop.f32.mrf.mxu0
    %v1457 = vadd.f32 0.0, %v1456
    %v1458 = vpop.f32.mrf.mxu0
    %v1459 = vadd.f32 0.0, %v1458
    %v1460 = vpop.f32.mrf.mxu0
    %v1461 = vadd.f32 0.0, %v1460
    %v1462 = vpop.f32.mrf.mxu0
    %v1463 = vadd.f32 0.0, %v1462
    %1464 = vmatprep.mubr.bf16.mxu0 %v960
    %1465 = vmatmul.mubr.bf16.gmra.mxu0 %v959
    %v1466 = vpop.f32.mrf.mxu0
    %v1467 = vadd.f32 0.0, %v1466
    %v1468 = vpop.f32.mrf.mxu0
    %v1469 = vadd.f32 0.0, %v1468
    %v1470 = vpop.f32.mrf.mxu0
    %v1471 = vadd.f32 0.0, %v1470
    %v1472 = vpop.f32.mrf.mxu0
    %v1473 = vadd.f32 0.0, %v1472
    %1474 = vmatprep.mubr.bf16.mxu0 %v962
    %1475 = vmatmul.mubr.bf16.gmra.mxu0 %v961
    %v1476 = vpop.f32.mrf.mxu0
    %v1477 = vadd.f32 0.0, %v1476
    %v1478 = vpop.f32.mrf.mxu0
    %v1479 = vadd.f32 0.0, %v1478
    %v1480 = vpop.f32.mrf.mxu0
    %v1481 = vpop.f32.mrf.mxu0
    %1482 = vdwg.mxu0
    %1483 = vmatprep.subr.bf16.mxu0 %v1315
    %1484 = vmatpush1.bf16.msra.mxu0 %v1314
    %1485 = vmatprep.subr.bf16.mxu0 %v1311
    %1486 = vmatpush1.bf16.msra.mxu0 %v1310
    %1487 = vmatprep.subr.bf16.mxu0 %v1307
    %1488 = vmatpush1.bf16.msra.mxu0 %v1306
    %1489 = vmatprep.subr.bf16.mxu0 %v1303
    %1490 = vmatpush1.bf16.msra.mxu0 %v1302
    %1491 = vmatprep.subr.bf16.mxu0 %v1299
    %1492 = vmatpush1.bf16.msra.mxu0 %v1298
    %1493 = vmatprep.subr.bf16.mxu0 %v1295
    %1494 = vmatpush1.bf16.msra.mxu0 %v1294
    %1495 = vmatprep.subr.bf16.mxu0 %v1291
    %1496 = vmatpush1.bf16.msra.mxu0 %v1290
    %1497 = vmatprep.subr.bf16.mxu0 %v1287
    %1498 = vmatpush1.bf16.msra.mxu0 %v1286
    %1499 = vmatprep.subr.bf16.mxu0 %v1347
    %1500 = vmatpush2.bf16.msra.mxu0 %v1346
    %1501 = vmatprep.subr.bf16.mxu0 %v1343
    %1502 = vmatpush2.bf16.msra.mxu0 %v1342
    %1503 = vmatprep.subr.bf16.mxu0 %v1339
    %1504 = vmatpush2.bf16.msra.mxu0 %v1338
    %1505 = vmatprep.subr.bf16.mxu0 %v1335
    %1506 = vmatpush2.bf16.msra.mxu0 %v1334
    %1507 = vmatprep.subr.bf16.mxu0 %v1331
    %1508 = vmatpush2.bf16.msra.mxu0 %v1330
    %1509 = vmatprep.subr.bf16.mxu0 %v1327
    %1510 = vmatpush2.bf16.msra.mxu0 %v1326
    %1511 = vmatprep.subr.bf16.mxu0 %v1323
    %1512 = vmatpush2.bf16.msra.mxu0 %v1322
    %1513 = vmatprep.subr.bf16.mxu0 %v1319
    %1514 = vmatpush2.bf16.msra.mxu0 %v1318
    %1515 = vmatprep.mubr.bf16.mxu0 %v956
    %1516 = vmatmul.mubr.bf16.gmra.mxu0 %v955
    %v1517 = vpop.f32.mrf.mxu0
    %v1518 = vadd.f32 0.0, %v1517
    %v1519 = vpop.f32.mrf.mxu0
    %v1520 = vadd.f32 0.0, %v1519
    %v1521 = vpop.f32.mrf.mxu0
    %v1522 = vadd.f32 0.0, %v1521
    %v1523 = vpop.f32.mrf.mxu0
    %v1524 = vadd.f32 0.0, %v1523
    %1525 = vmatprep.mubr.bf16.mxu0 %v958
    %1526 = vmatmul.mubr.bf16.gmra.mxu0 %v957
    %v1527 = vpop.f32.mrf.mxu0
    %v1528 = vadd.f32 0.0, %v1527
    %v1529 = vpop.f32.mrf.mxu0
    %v1530 = vadd.f32 0.0, %v1529
    %v1531 = vpop.f32.mrf.mxu0
    %v1532 = vadd.f32 0.0, %v1531
    %v1533 = vpop.f32.mrf.mxu0
    %v1534 = vadd.f32 0.0, %v1533
    %1535 = vmatprep.mubr.bf16.mxu0 %v960
    %1536 = vmatmul.mubr.bf16.gmra.mxu0 %v959
    %v1537 = vpop.f32.mrf.mxu0
    %v1538 = vadd.f32 0.0, %v1537
    %v1539 = vpop.f32.mrf.mxu0
    %v1540 = vadd.f32 0.0, %v1539
    %v1541 = vpop.f32.mrf.mxu0
    %v1542 = vadd.f32 0.0, %v1541
    %v1543 = vpop.f32.mrf.mxu0
    %v1544 = vadd.f32 0.0, %v1543
    %1545 = vmatprep.mubr.bf16.mxu0 %v962
    %1546 = vmatmul.mubr.bf16.gmra.mxu0 %v961
    %v1547 = vpop.f32.mrf.mxu0
    %v1548 = vadd.f32 0.0, %v1547
    %v1549 = vpop.f32.mrf.mxu0
    %v1550 = vadd.f32 0.0, %v1549
    %v1551 = vpop.f32.mrf.mxu0
    %v1552 = vpop.f32.mrf.mxu0
    %1553 = vdwg.mxu0
    %v1554 = vrot.slane %v1447, 2
    %v1555 = vrot.slane %v1449, 2
    %v1556 = vrot.slane %v1518, 2
    %v1557 = vrot.slane %v1520, 2
    %v1558 = vrot.slane %v1451, 2
    %v1559 = vrot.slane %v1453, 2
    %v1560 = vrot.slane %v1522, 2
    %v1561 = vrot.slane %v1524, 2
    %v1562 = vrot.slane %v1457, 2
    %v1563 = vrot.slane %v1459, 2
    %v1564 = vrot.slane %v1528, 2
    %v1565 = vrot.slane %v1530, 2
    %v1566 = vrot.slane %v1461, 2
    %v1567 = vrot.slane %v1463, 2
    %v1568 = vrot.slane %v1532, 2
    %v1569 = vrot.slane %v1534, 2
    %v1570 = vrot.slane %v1467, 2
    %v1571 = vrot.slane %v1469, 2
    %v1572 = vrot.slane %v1538, 2
    %v1573 = vrot.slane %v1540, 2
    %v1574 = vrot.slane %v1471, 2
    %v1575 = vrot.slane %v1473, 2
    %v1576 = vrot.slane %v1542, 2
    %v1577 = vrot.slane %v1544, 2
    %v1578 = vrot.slane %v1477, 2
    %v1579 = vrot.slane %v1479, 2
    %v1580 = vrot.slane %v1548, 2
    %v1581 = vrot.slane %v1550, 2
    %v1582 = vsel %vm802, %v1574, %v1578
    %v1583 = vsel %vm802, %v1575, %v1579
    %v1584 = vsel %vm802, %v1576, %v1580
    %v1585 = vsel %vm802, %v1577, %v1581
    %v1586 = vsel %vm802, %v1570, %v1574
    %v1587 = vsel %vm802, %v1571, %v1575
    %v1588 = vsel %vm802, %v1572, %v1576
    %v1589 = vsel %vm802, %v1573, %v1577
    %v1590 = vsel %vm802, %v1566, %v1570
    %v1591 = vsel %vm802, %v1567, %v1571
    %v1592 = vsel %vm802, %v1568, %v1572
    %v1593 = vsel %vm802, %v1569, %v1573
    %v1594 = vsel %vm802, %v1562, %v1566
    %v1595 = vsel %vm802, %v1563, %v1567
    %v1596 = vsel %vm802, %v1564, %v1568
    %v1597 = vsel %vm802, %v1565, %v1569
    %v1598 = vsel %vm802, %v1558, %v1562
    %v1599 = vsel %vm802, %v1559, %v1563
    %v1600 = vsel %vm802, %v1560, %v1564
    %v1601 = vsel %vm802, %v1561, %v1565
    %v1602 = vsel %vm802, %v1554, %v1558
    %v1603 = vsel %vm802, %v1555, %v1559
    %v1604 = vsel %vm802, %v1556, %v1560
    %v1605 = vsel %vm802, %v1557, %v1561
    %v1606 = vsel %vm802, %v1578, %v1554
    %v1607 = vsel %vm802, %v1579, %v1555
    %v1608 = vsel %vm802, %v1580, %v1556
    %v1609 = vsel %vm802, %v1581, %v1557
    %v1674 = vunpack.c.l.b16 %v963
    %v1675 = vunpack.c.h.b16 %v963
    %v1676 = vunpack.c.l.b16 %v964
    %v1677 = vunpack.c.h.b16 %v964
    %v1678 = vunpack.c.l.b16 %v965
    %v1679 = vunpack.c.h.b16 %v965
    %v1680 = vunpack.c.l.b16 %v966
    %v1681 = vunpack.c.h.b16 %v966
    %v1682 = vunpack.c.l.b16 %v967
    %v1683 = vunpack.c.h.b16 %v967
    %v1684 = vunpack.c.l.b16 %v968
    %v1685 = vunpack.c.h.b16 %v968
    %v1686 = vunpack.c.l.b16 %v969
    %v1687 = vunpack.c.h.b16 %v969
    %v1688 = vunpack.c.l.b16 %v970
    %v1689 = vunpack.c.h.b16 %v970
    %v1690 = vunpack.c.l.b16 %v971
    %v1691 = vunpack.c.h.b16 %v971
    %v1692 = vunpack.c.l.b16 %v972
    %v1693 = vunpack.c.h.b16 %v972
    %v1694 = vunpack.c.l.b16 %v973
    %v1695 = vunpack.c.h.b16 %v973
    %v1696 = vunpack.c.l.b16 %v974
    %v1697 = vunpack.c.h.b16 %v974
    %v1698 = vunpack.c.l.b16 %v975
    %v1699 = vunpack.c.h.b16 %v975
    %v1700 = vunpack.c.l.b16 %v976
    %v1701 = vunpack.c.h.b16 %v976
    %v1702 = vunpack.c.l.b16 %v977
    %v1703 = vunpack.c.h.b16 %v977
    %v1704 = vunpack.c.l.b16 %v978
    %v1705 = vunpack.c.h.b16 %v978
    %v1706 = vunpack.c.l.b16 %v979
    %v1707 = vunpack.c.h.b16 %v979
    %v1708 = vunpack.c.l.b16 %v980
    %v1709 = vunpack.c.h.b16 %v980
    %v1710 = vunpack.c.l.b16 %v981
    %v1711 = vunpack.c.h.b16 %v981
    %v1712 = vunpack.c.l.b16 %v982
    %v1713 = vunpack.c.h.b16 %v982
    %v1714 = vunpack.c.l.b16 %v983
    %v1715 = vunpack.c.h.b16 %v983
    %v1716 = vunpack.c.l.b16 %v984
    %v1717 = vunpack.c.h.b16 %v984
    %v1718 = vunpack.c.l.b16 %v985
    %v1719 = vunpack.c.h.b16 %v985
    %v1720 = vunpack.c.l.b16 %v986
    %v1721 = vunpack.c.h.b16 %v986
    %v1722 = vunpack.c.l.b16 %v987
    %v1723 = vunpack.c.h.b16 %v987
    %v1724 = vunpack.c.l.b16 %v988
    %v1725 = vunpack.c.h.b16 %v988
    %v1726 = vunpack.c.l.b16 %v989
    %v1727 = vunpack.c.h.b16 %v989
    %v1728 = vunpack.c.l.b16 %v990
    %v1729 = vunpack.c.h.b16 %v990
    %v1730 = vunpack.c.l.b16 %v991
    %v1731 = vunpack.c.h.b16 %v991
    %v1732 = vunpack.c.l.b16 %v992
    %v1733 = vunpack.c.h.b16 %v992
    %v1734 = vunpack.c.l.b16 %v993
    %v1735 = vunpack.c.h.b16 %v993
    %v1736 = vunpack.c.l.b16 %v994
    %v1737 = vunpack.c.h.b16 %v994
    %v1738 = vunpack.c.l.b16 %v995
    %v1739 = vunpack.c.h.b16 %v995
    %v1740 = vunpack.c.l.b16 %v996
    %v1741 = vunpack.c.h.b16 %v996
    %v1742 = vunpack.c.l.b16 %v997
    %v1743 = vunpack.c.h.b16 %v997
    %v1744 = vunpack.c.l.b16 %v998
    %v1745 = vunpack.c.h.b16 %v998
    %v1746 = vunpack.c.l.b16 %v999
    %v1747 = vunpack.c.h.b16 %v999
    %v1748 = vunpack.c.l.b16 %v1000
    %v1749 = vunpack.c.h.b16 %v1000
    %v1750 = vunpack.c.l.b16 %v1001
    %v1751 = vunpack.c.h.b16 %v1001
    %v1752 = vunpack.c.l.b16 %v1002
    %v1753 = vunpack.c.h.b16 %v1002
    %v1754 = vunpack.c.l.b16 %v1003
    %v1755 = vunpack.c.h.b16 %v1003
    %v1756 = vunpack.c.l.b16 %v1004
    %v1757 = vunpack.c.h.b16 %v1004
    %v1758 = vunpack.c.l.b16 %v1005
    %v1759 = vunpack.c.h.b16 %v1005
    %v1760 = vunpack.c.l.b16 %v1006
    %v1761 = vunpack.c.h.b16 %v1006
    %v1762 = vunpack.c.l.b16 %v1007
    %v1763 = vunpack.c.h.b16 %v1007
    %v1764 = vunpack.c.l.b16 %v1008
    %v1765 = vunpack.c.h.b16 %v1008
    %v1766 = vunpack.c.l.b16 %v1009
    %v1767 = vunpack.c.h.b16 %v1009
    %v1768 = vunpack.c.l.b16 %v1010
    %v1769 = vunpack.c.h.b16 %v1010
    %v1770 = vunpack.c.l.b16 %v1011
    %v1771 = vunpack.c.h.b16 %v1011
    %v1772 = vunpack.c.l.b16 %v1012
    %v1773 = vunpack.c.h.b16 %v1012
    %v1774 = vunpack.c.l.b16 %v1013
    %v1775 = vunpack.c.h.b16 %v1013
    %v1776 = vunpack.c.l.b16 %v1014
    %v1777 = vunpack.c.h.b16 %v1014
    %v1778 = vunpack.c.l.b16 %v1015
    %v1779 = vunpack.c.h.b16 %v1015
    %v1780 = vunpack.c.l.b16 %v1016
    %v1781 = vunpack.c.h.b16 %v1016
    %v1782 = vunpack.c.l.b16 %v1017
    %v1783 = vunpack.c.h.b16 %v1017
    %v1784 = vunpack.c.l.b16 %v1018
    %v1785 = vunpack.c.h.b16 %v1018
    %v1786 = vunpack.c.l.b16 %v1019
    %v1787 = vunpack.c.h.b16 %v1019
    %v1788 = vunpack.c.l.b16 %v1020
    %v1789 = vunpack.c.h.b16 %v1020
    %v1790 = vunpack.c.l.b16 %v1021
    %v1791 = vunpack.c.h.b16 %v1021
    %v1792 = vunpack.c.l.b16 %v1022
    %v1793 = vunpack.c.h.b16 %v1022
    %v1794 = vunpack.c.l.b16 %v1023
    %v1795 = vunpack.c.h.b16 %v1023
    %v1796 = vunpack.c.l.b16 %v1024
    %v1797 = vunpack.c.h.b16 %v1024
    %v1798 = vunpack.c.l.b16 %v1025
    %v1799 = vunpack.c.h.b16 %v1025
    %v1800 = vunpack.c.l.b16 %v1026
    %v1801 = vunpack.c.h.b16 %v1026
    %v1802 = vpack.c.b16 %v1678, %v1674
    %v1803 = vpack.c.b16 %v1679, %v1675
    %v1804 = vpack.c.b16 %v1680, %v1676
    %v1805 = vpack.c.b16 %v1681, %v1677
    %v1806 = vpack.c.b16 %v1686, %v1682
    %v1807 = vpack.c.b16 %v1687, %v1683
    %v1808 = vpack.c.b16 %v1688, %v1684
    %v1809 = vpack.c.b16 %v1689, %v1685
    %v1810 = vpack.c.b16 %v1694, %v1690
    %v1811 = vpack.c.b16 %v1695, %v1691
    %v1812 = vpack.c.b16 %v1696, %v1692
    %v1813 = vpack.c.b16 %v1697, %v1693
    %v1814 = vpack.c.b16 %v1702, %v1698
    %v1815 = vpack.c.b16 %v1703, %v1699
    %v1816 = vpack.c.b16 %v1704, %v1700
    %v1817 = vpack.c.b16 %v1705, %v1701
    %v1818 = vpack.c.b16 %v1710, %v1706
    %v1819 = vpack.c.b16 %v1711, %v1707
    %v1820 = vpack.c.b16 %v1712, %v1708
    %v1821 = vpack.c.b16 %v1713, %v1709
    %v1822 = vpack.c.b16 %v1718, %v1714
    %v1823 = vpack.c.b16 %v1719, %v1715
    %v1824 = vpack.c.b16 %v1720, %v1716
    %v1825 = vpack.c.b16 %v1721, %v1717
    %v1826 = vpack.c.b16 %v1726, %v1722
    %v1827 = vpack.c.b16 %v1727, %v1723
    %v1828 = vpack.c.b16 %v1728, %v1724
    %v1829 = vpack.c.b16 %v1729, %v1725
    %v1830 = vpack.c.b16 %v1734, %v1730
    %v1831 = vpack.c.b16 %v1735, %v1731
    %v1832 = vpack.c.b16 %v1736, %v1732
    %v1833 = vpack.c.b16 %v1737, %v1733
    %v1834 = vpack.c.b16 %v1742, %v1738
    %v1835 = vpack.c.b16 %v1743, %v1739
    %v1836 = vpack.c.b16 %v1744, %v1740
    %v1837 = vpack.c.b16 %v1745, %v1741
    %v1838 = vpack.c.b16 %v1750, %v1746
    %v1839 = vpack.c.b16 %v1751, %v1747
    %v1840 = vpack.c.b16 %v1752, %v1748
    %v1841 = vpack.c.b16 %v1753, %v1749
    %v1842 = vpack.c.b16 %v1758, %v1754
    %v1843 = vpack.c.b16 %v1759, %v1755
    %v1844 = vpack.c.b16 %v1760, %v1756
    %v1845 = vpack.c.b16 %v1761, %v1757
    %v1846 = vpack.c.b16 %v1766, %v1762
    %v1847 = vpack.c.b16 %v1767, %v1763
    %v1848 = vpack.c.b16 %v1768, %v1764
    %v1849 = vpack.c.b16 %v1769, %v1765
    %v1850 = vpack.c.b16 %v1774, %v1770
    %v1851 = vpack.c.b16 %v1775, %v1771
    %v1852 = vpack.c.b16 %v1776, %v1772
    %v1853 = vpack.c.b16 %v1777, %v1773
    %v1854 = vpack.c.b16 %v1782, %v1778
    %v1855 = vpack.c.b16 %v1783, %v1779
    %v1856 = vpack.c.b16 %v1784, %v1780
    %v1857 = vpack.c.b16 %v1785, %v1781
    %v1858 = vpack.c.b16 %v1790, %v1786
    %v1859 = vpack.c.b16 %v1791, %v1787
    %v1860 = vpack.c.b16 %v1792, %v1788
    %v1861 = vpack.c.b16 %v1793, %v1789
    %v1862 = vpack.c.b16 %v1798, %v1794
    %v1863 = vpack.c.b16 %v1799, %v1795
    %v1864 = vpack.c.b16 %v1800, %v1796
    %v1865 = vpack.c.b16 %v1801, %v1797
    %1930 = vmatprep.subr.bf16.mxu0 %v1831
    %1931 = vmatpush1.bf16.msra.mxu0 %v1830
    %1932 = vmatprep.subr.bf16.mxu0 %v1827
    %1933 = vmatpush1.bf16.msra.mxu0 %v1826
    %1934 = vmatprep.subr.bf16.mxu0 %v1823
    %1935 = vmatpush1.bf16.msra.mxu0 %v1822
    %1936 = vmatprep.subr.bf16.mxu0 %v1819
    %1937 = vmatpush1.bf16.msra.mxu0 %v1818
    %1938 = vmatprep.subr.bf16.mxu0 %v1815
    %1939 = vmatpush1.bf16.msra.mxu0 %v1814
    %1940 = vmatprep.subr.bf16.mxu0 %v1811
    %1941 = vmatpush1.bf16.msra.mxu0 %v1810
    %1942 = vmatprep.subr.bf16.mxu0 %v1807
    %1943 = vmatpush1.bf16.msra.mxu0 %v1806
    %1944 = vmatprep.subr.bf16.mxu0 %v1803
    %1945 = vmatpush1.bf16.msra.mxu0 %v1802
    %1946 = vmatprep.subr.bf16.mxu0 %v1863
    %1947 = vmatpush2.bf16.msra.mxu0 %v1862
    %1948 = vmatprep.subr.bf16.mxu0 %v1859
    %1949 = vmatpush2.bf16.msra.mxu0 %v1858
    %1950 = vmatprep.subr.bf16.mxu0 %v1855
    %1951 = vmatpush2.bf16.msra.mxu0 %v1854
    %1952 = vmatprep.subr.bf16.mxu0 %v1851
    %1953 = vmatpush2.bf16.msra.mxu0 %v1850
    %1954 = vmatprep.subr.bf16.mxu0 %v1847
    %1955 = vmatpush2.bf16.msra.mxu0 %v1846
    %1956 = vmatprep.subr.bf16.mxu0 %v1843
    %1957 = vmatpush2.bf16.msra.mxu0 %v1842
    %1958 = vmatprep.subr.bf16.mxu0 %v1839
    %1959 = vmatpush2.bf16.msra.mxu0 %v1838
    %1960 = vmatprep.subr.bf16.mxu0 %v1835
    %1961 = vmatpush2.bf16.msra.mxu0 %v1834
    %1962 = vmatprep.mubr.bf16.mxu0 %v956
    %1963 = vmatmul.mubr.bf16.gmra.mxu0 %v955
    %v1964 = vpop.f32.mrf.mxu0
    %v1965 = vadd.f32 %v1602, %v1964
    %v1966 = vpop.f32.mrf.mxu0
    %v1967 = vadd.f32 %v1603, %v1966
    %v1968 = vpop.f32.mrf.mxu0
    %v1969 = vadd.f32 %v1598, %v1968
    %v1970 = vpop.f32.mrf.mxu0
    %v1971 = vadd.f32 %v1599, %v1970
    %1972 = vmatprep.mubr.bf16.mxu0 %v958
    %1973 = vmatmul.mubr.bf16.gmra.mxu0 %v957
    %v1974 = vpop.f32.mrf.mxu0
    %v1975 = vadd.f32 %v1594, %v1974
    %v1976 = vpop.f32.mrf.mxu0
    %v1977 = vadd.f32 %v1595, %v1976
    %v1978 = vpop.f32.mrf.mxu0
    %v1979 = vadd.f32 %v1590, %v1978
    %v1980 = vpop.f32.mrf.mxu0
    %v1981 = vadd.f32 %v1591, %v1980
    %1982 = vmatprep.mubr.bf16.mxu0 %v960
    %1983 = vmatmul.mubr.bf16.gmra.mxu0 %v959
    %v1984 = vpop.f32.mrf.mxu0
    %v1985 = vadd.f32 %v1586, %v1984
    %v1986 = vpop.f32.mrf.mxu0
    %v1987 = vadd.f32 %v1587, %v1986
    %v1988 = vpop.f32.mrf.mxu0
    %v1989 = vadd.f32 %v1582, %v1988
    %v1990 = vpop.f32.mrf.mxu0
    %v1991 = vadd.f32 %v1583, %v1990
    %1992 = vmatprep.mubr.bf16.mxu0 %v962
    %1993 = vmatmul.mubr.bf16.gmra.mxu0 %v961
    %v1994 = vpop.f32.mrf.mxu0
    %v1995 = vadd.f32 %v1606, %v1994
    %v1996 = vpop.f32.mrf.mxu0
    %v1997 = vadd.f32 %v1607, %v1996
    %v1998 = vpop.f32.mrf.mxu0
    %v1999 = vpop.f32.mrf.mxu0
    %2000 = vdwg.mxu0
    %2001 = vmatprep.subr.bf16.mxu0 %v1833
    %2002 = vmatpush1.bf16.msra.mxu0 %v1832
    %2003 = vmatprep.subr.bf16.mxu0 %v1829
    %2004 = vmatpush1.bf16.msra.mxu0 %v1828
    %2005 = vmatprep.subr.bf16.mxu0 %v1825
    %2006 = vmatpush1.bf16.msra.mxu0 %v1824
    %2007 = vmatprep.subr.bf16.mxu0 %v1821
    %2008 = vmatpush1.bf16.msra.mxu0 %v1820
    %2009 = vmatprep.subr.bf16.mxu0 %v1817
    %2010 = vmatpush1.bf16.msra.mxu0 %v1816
    %2011 = vmatprep.subr.bf16.mxu0 %v1813
    %2012 = vmatpush1.bf16.msra.mxu0 %v1812
    %2013 = vmatprep.subr.bf16.mxu0 %v1809
    %2014 = vmatpush1.bf16.msra.mxu0 %v1808
    %2015 = vmatprep.subr.bf16.mxu0 %v1805
    %2016 = vmatpush1.bf16.msra.mxu0 %v1804
    %2017 = vmatprep.subr.bf16.mxu0 %v1865
    %2018 = vmatpush2.bf16.msra.mxu0 %v1864
    %2019 = vmatprep.subr.bf16.mxu0 %v1861
    %2020 = vmatpush2.bf16.msra.mxu0 %v1860
    %2021 = vmatprep.subr.bf16.mxu0 %v1857
    %2022 = vmatpush2.bf16.msra.mxu0 %v1856
    %2023 = vmatprep.subr.bf16.mxu0 %v1853
    %2024 = vmatpush2.bf16.msra.mxu0 %v1852
    %2025 = vmatprep.subr.bf16.mxu0 %v1849
    %2026 = vmatpush2.bf16.msra.mxu0 %v1848
    %2027 = vmatprep.subr.bf16.mxu0 %v1845
    %2028 = vmatpush2.bf16.msra.mxu0 %v1844
    %2029 = vmatprep.subr.bf16.mxu0 %v1841
    %2030 = vmatpush2.bf16.msra.mxu0 %v1840
    %2031 = vmatprep.subr.bf16.mxu0 %v1837
    %2032 = vmatpush2.bf16.msra.mxu0 %v1836
    %2033 = vmatprep.mubr.bf16.mxu0 %v956
    %2034 = vmatmul.mubr.bf16.gmra.mxu0 %v955
    %v2035 = vpop.f32.mrf.mxu0
    %v2036 = vadd.f32 %v1604, %v2035
    %v2037 = vpop.f32.mrf.mxu0
    %v2038 = vadd.f32 %v1605, %v2037
    %v2039 = vpop.f32.mrf.mxu0
    %v2040 = vadd.f32 %v1600, %v2039
    %v2041 = vpop.f32.mrf.mxu0
    %v2042 = vadd.f32 %v1601, %v2041
    %2043 = vmatprep.mubr.bf16.mxu0 %v958
    %2044 = vmatmul.mubr.bf16.gmra.mxu0 %v957
    %v2045 = vpop.f32.mrf.mxu0
    %v2046 = vadd.f32 %v1596, %v2045
    %v2047 = vpop.f32.mrf.mxu0
    %v2048 = vadd.f32 %v1597, %v2047
    %v2049 = vpop.f32.mrf.mxu0
    %v2050 = vadd.f32 %v1592, %v2049
    %v2051 = vpop.f32.mrf.mxu0
    %v2052 = vadd.f32 %v1593, %v2051
    %2053 = vmatprep.mubr.bf16.mxu0 %v960
    %2054 = vmatmul.mubr.bf16.gmra.mxu0 %v959
    %v2055 = vpop.f32.mrf.mxu0
    %v2056 = vadd.f32 %v1588, %v2055
    %v2057 = vpop.f32.mrf.mxu0
    %v2058 = vadd.f32 %v1589, %v2057
    %v2059 = vpop.f32.mrf.mxu0
    %v2060 = vadd.f32 %v1584, %v2059
    %v2061 = vpop.f32.mrf.mxu0
    %v2062 = vadd.f32 %v1585, %v2061
    %2063 = vmatprep.mubr.bf16.mxu0 %v962
    %2064 = vmatmul.mubr.bf16.gmra.mxu0 %v961
    %v2065 = vpop.f32.mrf.mxu0
    %v2066 = vadd.f32 %v1608, %v2065
    %v2067 = vpop.f32.mrf.mxu0
    %v2068 = vadd.f32 %v1609, %v2067
    %v2069 = vpop.f32.mrf.mxu0
    %v2070 = vpop.f32.mrf.mxu0
    %2071 = vdwg.mxu0
    %s2072 = scalar_lea.vmem [#allocation4], 1024
    %v2073 = vld [vmem:[%s2072] sm:$0xff]
    %v2074 = vld [vmem:[%s2072 + $0x8] sm:$0xff]
    %v2075 = vld [vmem:[%s2072 + $0x10] sm:$0xff]
    %v2076 = vld [vmem:[%s2072 + $0x18] sm:$0xff]
    %v2077 = vld [vmem:[%s2072 + $0x20] sm:$0xff]
    %v2078 = vld [vmem:[%s2072 + $0x28] sm:$0xff]
    %v2079 = vld [vmem:[%s2072 + $0x30] sm:$0xff]
    %v2080 = vld [vmem:[%s2072 + $0x38] sm:$0xff]
    %v2081 = vld [vmem:[%s2072 + $0x40] sm:$0xff]
    %v2082 = vld [vmem:[%s2072 + $0x48] sm:$0xff]
    %v2083 = vld [vmem:[%s2072 + $0x50] sm:$0xff]
    %v2084 = vld [vmem:[%s2072 + $0x58] sm:$0xff]
    %v2085 = vld [vmem:[%s2072 + $0x60] sm:$0xff]
    %v2086 = vld [vmem:[%s2072 + $0x68] sm:$0xff]
    %v2087 = vld [vmem:[%s2072 + $0x70] sm:$0xff]
    %v2088 = vld [vmem:[%s2072 + $0x78] sm:$0xff]
    %v2089 = vld [vmem:[%s2072 + $0x80] sm:$0xff]
    %v2090 = vld [vmem:[%s2072 + $0x88] sm:$0xff]
    %v2091 = vld [vmem:[%s2072 + $0x90] sm:$0xff]
    %v2092 = vld [vmem:[%s2072 + $0x98] sm:$0xff]
    %v2093 = vld [vmem:[%s2072 + $0xa0] sm:$0xff]
    %v2094 = vld [vmem:[%s2072 + $0xa8] sm:$0xff]
    %v2095 = vld [vmem:[%s2072 + $0xb0] sm:$0xff]
    %v2096 = vld [vmem:[%s2072 + $0xb8] sm:$0xff]
    %v2097 = vld [vmem:[%s2072 + $0xc0] sm:$0xff]
    %v2098 = vld [vmem:[%s2072 + $0xc8] sm:$0xff]
    %v2099 = vld [vmem:[%s2072 + $0xd0] sm:$0xff]
    %v2100 = vld [vmem:[%s2072 + $0xd8] sm:$0xff]
    %v2101 = vld [vmem:[%s2072 + $0xe0] sm:$0xff]
    %v2102 = vld [vmem:[%s2072 + $0xe8] sm:$0xff]
    %v2103 = vld [vmem:[%s2072 + $0xf0] sm:$0xff]
    %v2104 = vld [vmem:[%s2072 + $0xf8] sm:$0xff]
    %v2105 = vld [vmem:[%s2072 + $0x100] sm:$0xff]
    %v2106 = vld [vmem:[%s2072 + $0x108] sm:$0xff]
    %v2107 = vld [vmem:[%s2072 + $0x110] sm:$0xff]
    %v2108 = vld [vmem:[%s2072 + $0x118] sm:$0xff]
    %v2109 = vld [vmem:[%s2072 + $0x120] sm:$0xff]
    %v2110 = vld [vmem:[%s2072 + $0x128] sm:$0xff]
    %v2111 = vld [vmem:[%s2072 + $0x130] sm:$0xff]
    %v2112 = vld [vmem:[%s2072 + $0x138] sm:$0xff]
    %v2113 = vld [vmem:[%s2072 + $0x140] sm:$0xff]
    %v2114 = vld [vmem:[%s2072 + $0x148] sm:$0xff]
    %v2115 = vld [vmem:[%s2072 + $0x150] sm:$0xff]
    %v2116 = vld [vmem:[%s2072 + $0x158] sm:$0xff]
    %v2117 = vld [vmem:[%s2072 + $0x160] sm:$0xff]
    %v2118 = vld [vmem:[%s2072 + $0x168] sm:$0xff]
    %v2119 = vld [vmem:[%s2072 + $0x170] sm:$0xff]
    %v2120 = vld [vmem:[%s2072 + $0x178] sm:$0xff]
    %v2121 = vld [vmem:[%s2072 + $0x180] sm:$0xff]
    %v2122 = vld [vmem:[%s2072 + $0x188] sm:$0xff]
    %v2123 = vld [vmem:[%s2072 + $0x190] sm:$0xff]
    %v2124 = vld [vmem:[%s2072 + $0x198] sm:$0xff]
    %v2125 = vld [vmem:[%s2072 + $0x1a0] sm:$0xff]
    %v2126 = vld [vmem:[%s2072 + $0x1a8] sm:$0xff]
    %v2127 = vld [vmem:[%s2072 + $0x1b0] sm:$0xff]
    %v2128 = vld [vmem:[%s2072 + $0x1b8] sm:$0xff]
    %v2129 = vld [vmem:[%s2072 + $0x1c0] sm:$0xff]
    %v2130 = vld [vmem:[%s2072 + $0x1c8] sm:$0xff]
    %v2131 = vld [vmem:[%s2072 + $0x1d0] sm:$0xff]
    %v2132 = vld [vmem:[%s2072 + $0x1d8] sm:$0xff]
    %v2133 = vld [vmem:[%s2072 + $0x1e0] sm:$0xff]
    %v2134 = vld [vmem:[%s2072 + $0x1e8] sm:$0xff]
    %v2135 = vld [vmem:[%s2072 + $0x1f0] sm:$0xff]
    %v2136 = vld [vmem:[%s2072 + $0x1f8] sm:$0xff]
    %v2201 = vunpack.c.l.b16 %v2073
    %v2202 = vunpack.c.h.b16 %v2073
    %v2203 = vunpack.c.l.b16 %v2074
    %v2204 = vunpack.c.h.b16 %v2074
    %v2205 = vunpack.c.l.b16 %v2075
    %v2206 = vunpack.c.h.b16 %v2075
    %v2207 = vunpack.c.l.b16 %v2076
    %v2208 = vunpack.c.h.b16 %v2076
    %v2209 = vunpack.c.l.b16 %v2077
    %v2210 = vunpack.c.h.b16 %v2077
    %v2211 = vunpack.c.l.b16 %v2078
    %v2212 = vunpack.c.h.b16 %v2078
    %v2213 = vunpack.c.l.b16 %v2079
    %v2214 = vunpack.c.h.b16 %v2079
    %v2215 = vunpack.c.l.b16 %v2080
    %v2216 = vunpack.c.h.b16 %v2080
    %v2217 = vunpack.c.l.b16 %v2081
    %v2218 = vunpack.c.h.b16 %v2081
    %v2219 = vunpack.c.l.b16 %v2082
    %v2220 = vunpack.c.h.b16 %v2082
    %v2221 = vunpack.c.l.b16 %v2083
    %v2222 = vunpack.c.h.b16 %v2083
    %v2223 = vunpack.c.l.b16 %v2084
    %v2224 = vunpack.c.h.b16 %v2084
    %v2225 = vunpack.c.l.b16 %v2085
    %v2226 = vunpack.c.h.b16 %v2085
    %v2227 = vunpack.c.l.b16 %v2086
    %v2228 = vunpack.c.h.b16 %v2086
    %v2229 = vunpack.c.l.b16 %v2087
    %v2230 = vunpack.c.h.b16 %v2087
    %v2231 = vunpack.c.l.b16 %v2088
    %v2232 = vunpack.c.h.b16 %v2088
    %v2233 = vunpack.c.l.b16 %v2089
    %v2234 = vunpack.c.h.b16 %v2089
    %v2235 = vunpack.c.l.b16 %v2090
    %v2236 = vunpack.c.h.b16 %v2090
    %v2237 = vunpack.c.l.b16 %v2091
    %v2238 = vunpack.c.h.b16 %v2091
    %v2239 = vunpack.c.l.b16 %v2092
    %v2240 = vunpack.c.h.b16 %v2092
    %v2241 = vunpack.c.l.b16 %v2093
    %v2242 = vunpack.c.h.b16 %v2093
    %v2243 = vunpack.c.l.b16 %v2094
    %v2244 = vunpack.c.h.b16 %v2094
    %v2245 = vunpack.c.l.b16 %v2095
    %v2246 = vunpack.c.h.b16 %v2095
    %v2247 = vunpack.c.l.b16 %v2096
    %v2248 = vunpack.c.h.b16 %v2096
    %v2249 = vunpack.c.l.b16 %v2097
    %v2250 = vunpack.c.h.b16 %v2097
    %v2251 = vunpack.c.l.b16 %v2098
    %v2252 = vunpack.c.h.b16 %v2098
    %v2253 = vunpack.c.l.b16 %v2099
    %v2254 = vunpack.c.h.b16 %v2099
    %v2255 = vunpack.c.l.b16 %v2100
    %v2256 = vunpack.c.h.b16 %v2100
    %v2257 = vunpack.c.l.b16 %v2101
    %v2258 = vunpack.c.h.b16 %v2101
    %v2259 = vunpack.c.l.b16 %v2102
    %v2260 = vunpack.c.h.b16 %v2102
    %v2261 = vunpack.c.l.b16 %v2103
    %v2262 = vunpack.c.h.b16 %v2103
    %v2263 = vunpack.c.l.b16 %v2104
    %v2264 = vunpack.c.h.b16 %v2104
    %v2265 = vunpack.c.l.b16 %v2105
    %v2266 = vunpack.c.h.b16 %v2105
    %v2267 = vunpack.c.l.b16 %v2106
    %v2268 = vunpack.c.h.b16 %v2106
    %v2269 = vunpack.c.l.b16 %v2107
    %v2270 = vunpack.c.h.b16 %v2107
    %v2271 = vunpack.c.l.b16 %v2108
    %v2272 = vunpack.c.h.b16 %v2108
    %v2273 = vunpack.c.l.b16 %v2109
    %v2274 = vunpack.c.h.b16 %v2109
    %v2275 = vunpack.c.l.b16 %v2110
    %v2276 = vunpack.c.h.b16 %v2110
    %v2277 = vunpack.c.l.b16 %v2111
    %v2278 = vunpack.c.h.b16 %v2111
    %v2279 = vunpack.c.l.b16 %v2112
    %v2280 = vunpack.c.h.b16 %v2112
    %v2281 = vunpack.c.l.b16 %v2113
    %v2282 = vunpack.c.h.b16 %v2113
    %v2283 = vunpack.c.l.b16 %v2114
    %v2284 = vunpack.c.h.b16 %v2114
    %v2285 = vunpack.c.l.b16 %v2115
    %v2286 = vunpack.c.h.b16 %v2115
    %v2287 = vunpack.c.l.b16 %v2116
    %v2288 = vunpack.c.h.b16 %v2116
    %v2289 = vunpack.c.l.b16 %v2117
    %v2290 = vunpack.c.h.b16 %v2117
    %v2291 = vunpack.c.l.b16 %v2118
    %v2292 = vunpack.c.h.b16 %v2118
    %v2293 = vunpack.c.l.b16 %v2119
    %v2294 = vunpack.c.h.b16 %v2119
    %v2295 = vunpack.c.l.b16 %v2120
    %v2296 = vunpack.c.h.b16 %v2120
    %v2297 = vunpack.c.l.b16 %v2121
    %v2298 = vunpack.c.h.b16 %v2121
    %v2299 = vunpack.c.l.b16 %v2122
    %v2300 = vunpack.c.h.b16 %v2122
    %v2301 = vunpack.c.l.b16 %v2123
    %v2302 = vunpack.c.h.b16 %v2123
    %v2303 = vunpack.c.l.b16 %v2124
    %v2304 = vunpack.c.h.b16 %v2124
    %v2305 = vunpack.c.l.b16 %v2125
    %v2306 = vunpack.c.h.b16 %v2125
    %v2307 = vunpack.c.l.b16 %v2126
    %v2308 = vunpack.c.h.b16 %v2126
    %v2309 = vunpack.c.l.b16 %v2127
    %v2310 = vunpack.c.h.b16 %v2127
    %v2311 = vunpack.c.l.b16 %v2128
    %v2312 = vunpack.c.h.b16 %v2128
    %v2313 = vunpack.c.l.b16 %v2129
    %v2314 = vunpack.c.h.b16 %v2129
    %v2315 = vunpack.c.l.b16 %v2130
    %v2316 = vunpack.c.h.b16 %v2130
    %v2317 = vunpack.c.l.b16 %v2131
    %v2318 = vunpack.c.h.b16 %v2131
    %v2319 = vunpack.c.l.b16 %v2132
    %v2320 = vunpack.c.h.b16 %v2132
    %v2321 = vunpack.c.l.b16 %v2133
    %v2322 = vunpack.c.h.b16 %v2133
    %v2323 = vunpack.c.l.b16 %v2134
    %v2324 = vunpack.c.h.b16 %v2134
    %v2325 = vunpack.c.l.b16 %v2135
    %v2326 = vunpack.c.h.b16 %v2135
    %v2327 = vunpack.c.l.b16 %v2136
    %v2328 = vunpack.c.h.b16 %v2136
    %v2329 = vpack.c.b16 %v2205, %v2201
    %v2330 = vpack.c.b16 %v2206, %v2202
    %v2331 = vpack.c.b16 %v2207, %v2203
    %v2332 = vpack.c.b16 %v2208, %v2204
    %v2333 = vpack.c.b16 %v2213, %v2209
    %v2334 = vpack.c.b16 %v2214, %v2210
    %v2335 = vpack.c.b16 %v2215, %v2211
    %v2336 = vpack.c.b16 %v2216, %v2212
    %v2337 = vpack.c.b16 %v2221, %v2217
    %v2338 = vpack.c.b16 %v2222, %v2218
    %v2339 = vpack.c.b16 %v2223, %v2219
    %v2340 = vpack.c.b16 %v2224, %v2220
    %v2341 = vpack.c.b16 %v2229, %v2225
    %v2342 = vpack.c.b16 %v2230, %v2226
    %v2343 = vpack.c.b16 %v2231, %v2227
    %v2344 = vpack.c.b16 %v2232, %v2228
    %v2345 = vpack.c.b16 %v2237, %v2233
    %v2346 = vpack.c.b16 %v2238, %v2234
    %v2347 = vpack.c.b16 %v2239, %v2235
    %v2348 = vpack.c.b16 %v2240, %v2236
    %v2349 = vpack.c.b16 %v2245, %v2241
    %v2350 = vpack.c.b16 %v2246, %v2242
    %v2351 = vpack.c.b16 %v2247, %v2243
    %v2352 = vpack.c.b16 %v2248, %v2244
    %v2353 = vpack.c.b16 %v2253, %v2249
    %v2354 = vpack.c.b16 %v2254, %v2250
    %v2355 = vpack.c.b16 %v2255, %v2251
    %v2356 = vpack.c.b16 %v2256, %v2252
    %v2357 = vpack.c.b16 %v2261, %v2257
    %v2358 = vpack.c.b16 %v2262, %v2258
    %v2359 = vpack.c.b16 %v2263, %v2259
    %v2360 = vpack.c.b16 %v2264, %v2260
    %v2361 = vpack.c.b16 %v2269, %v2265
    %v2362 = vpack.c.b16 %v2270, %v2266
    %v2363 = vpack.c.b16 %v2271, %v2267
    %v2364 = vpack.c.b16 %v2272, %v2268
    %v2365 = vpack.c.b16 %v2277, %v2273
    %v2366 = vpack.c.b16 %v2278, %v2274
    %v2367 = vpack.c.b16 %v2279, %v2275
    %v2368 = vpack.c.b16 %v2280, %v2276
    %v2369 = vpack.c.b16 %v2285, %v2281
    %v2370 = vpack.c.b16 %v2286, %v2282
    %v2371 = vpack.c.b16 %v2287, %v2283
    %v2372 = vpack.c.b16 %v2288, %v2284
    %v2373 = vpack.c.b16 %v2293, %v2289
    %v2374 = vpack.c.b16 %v2294, %v2290
    %v2375 = vpack.c.b16 %v2295, %v2291
    %v2376 = vpack.c.b16 %v2296, %v2292
    %v2377 = vpack.c.b16 %v2301, %v2297
    %v2378 = vpack.c.b16 %v2302, %v2298
    %v2379 = vpack.c.b16 %v2303, %v2299
    %v2380 = vpack.c.b16 %v2304, %v2300
    %v2381 = vpack.c.b16 %v2309, %v2305
    %v2382 = vpack.c.b16 %v2310, %v2306
    %v2383 = vpack.c.b16 %v2311, %v2307
    %v2384 = vpack.c.b16 %v2312, %v2308
    %v2385 = vpack.c.b16 %v2317, %v2313
    %v2386 = vpack.c.b16 %v2318, %v2314
    %v2387 = vpack.c.b16 %v2319, %v2315
    %v2388 = vpack.c.b16 %v2320, %v2316
    %v2389 = vpack.c.b16 %v2325, %v2321
    %v2390 = vpack.c.b16 %v2326, %v2322
    %v2391 = vpack.c.b16 %v2327, %v2323
    %v2392 = vpack.c.b16 %v2328, %v2324
    %2457 = vmatprep.subr.bf16.mxu0 %v2358
    %2458 = vmatpush1.bf16.msra.mxu0 %v2357
    %2459 = vmatprep.subr.bf16.mxu0 %v2354
    %2460 = vmatpush1.bf16.msra.mxu0 %v2353
    %2461 = vmatprep.subr.bf16.mxu0 %v2350
    %2462 = vmatpush1.bf16.msra.mxu0 %v2349
    %2463 = vmatprep.subr.bf16.mxu0 %v2346
    %2464 = vmatpush1.bf16.msra.mxu0 %v2345
    %2465 = vmatprep.subr.bf16.mxu0 %v2342
    %2466 = vmatpush1.bf16.msra.mxu0 %v2341
    %2467 = vmatprep.subr.bf16.mxu0 %v2338
    %2468 = vmatpush1.bf16.msra.mxu0 %v2337
    %2469 = vmatprep.subr.bf16.mxu0 %v2334
    %2470 = vmatpush1.bf16.msra.mxu0 %v2333
    %2471 = vmatprep.subr.bf16.mxu0 %v2330
    %2472 = vmatpush1.bf16.msra.mxu0 %v2329
    %2473 = vmatprep.subr.bf16.mxu0 %v2390
    %2474 = vmatpush2.bf16.msra.mxu0 %v2389
    %2475 = vmatprep.subr.bf16.mxu0 %v2386
    %2476 = vmatpush2.bf16.msra.mxu0 %v2385
    %2477 = vmatprep.subr.bf16.mxu0 %v2382
    %2478 = vmatpush2.bf16.msra.mxu0 %v2381
    %2479 = vmatprep.subr.bf16.mxu0 %v2378
    %2480 = vmatpush2.bf16.msra.mxu0 %v2377
    %2481 = vmatprep.subr.bf16.mxu0 %v2374
    %2482 = vmatpush2.bf16.msra.mxu0 %v2373
    %2483 = vmatprep.subr.bf16.mxu0 %v2370
    %2484 = vmatpush2.bf16.msra.mxu0 %v2369
    %2485 = vmatprep.subr.bf16.mxu0 %v2366
    %2486 = vmatpush2.bf16.msra.mxu0 %v2365
    %2487 = vmatprep.subr.bf16.mxu0 %v2362
    %2488 = vmatpush2.bf16.msra.mxu0 %v2361
    %2489 = vmatprep.mubr.bf16.mxu0 %v956
    %2490 = vmatmul.mubr.bf16.gmra.mxu0 %v955
    %v2491 = vpop.f32.mrf.mxu0
    %v2492 = vadd.f32 0.0, %v2491
    %v2493 = vpop.f32.mrf.mxu0
    %v2494 = vadd.f32 0.0, %v2493
    %v2495 = vpop.f32.mrf.mxu0
    %v2496 = vadd.f32 0.0, %v2495
    %v2497 = vpop.f32.mrf.mxu0
    %v2498 = vadd.f32 0.0, %v2497
    %2499 = vmatprep.mubr.bf16.mxu0 %v958
    %2500 = vmatmul.mubr.bf16.gmra.mxu0 %v957
    %v2501 = vpop.f32.mrf.mxu0
    %v2502 = vadd.f32 0.0, %v2501
    %v2503 = vpop.f32.mrf.mxu0
    %v2504 = vadd.f32 0.0, %v2503
    %v2505 = vpop.f32.mrf.mxu0
    %v2506 = vadd.f32 0.0, %v2505
    %v2507 = vpop.f32.mrf.mxu0
    %v2508 = vadd.f32 0.0, %v2507
    %2509 = vmatprep.mubr.bf16.mxu0 %v960
    %2510 = vmatmul.mubr.bf16.gmra.mxu0 %v959
    %v2511 = vpop.f32.mrf.mxu0
    %v2512 = vadd.f32 0.0, %v2511
    %v2513 = vpop.f32.mrf.mxu0
    %v2514 = vadd.f32 0.0, %v2513
    %v2515 = vpop.f32.mrf.mxu0
    %v2516 = vadd.f32 0.0, %v2515
    %v2517 = vpop.f32.mrf.mxu0
    %v2518 = vadd.f32 0.0, %v2517
    %2519 = vmatprep.mubr.bf16.mxu0 %v962
    %2520 = vmatmul.mubr.bf16.gmra.mxu0 %v961
    %v2521 = vpop.f32.mrf.mxu0
    %v2522 = vadd.f32 0.0, %v2521
    %v2523 = vpop.f32.mrf.mxu0
    %v2524 = vadd.f32 0.0, %v2523
    %v2525 = vpop.f32.mrf.mxu0
    %v2526 = vpop.f32.mrf.mxu0
    %2527 = vdwg.mxu0
    %2528 = vmatprep.subr.bf16.mxu0 %v2360
    %2529 = vmatpush1.bf16.msra.mxu0 %v2359
    %2530 = vmatprep.subr.bf16.mxu0 %v2356
    %2531 = vmatpush1.bf16.msra.mxu0 %v2355
    %2532 = vmatprep.subr.bf16.mxu0 %v2352
    %2533 = vmatpush1.bf16.msra.mxu0 %v2351
    %2534 = vmatprep.subr.bf16.mxu0 %v2348
    %2535 = vmatpush1.bf16.msra.mxu0 %v2347
    %2536 = vmatprep.subr.bf16.mxu0 %v2344
    %2537 = vmatpush1.bf16.msra.mxu0 %v2343
    %2538 = vmatprep.subr.bf16.mxu0 %v2340
    %2539 = vmatpush1.bf16.msra.mxu0 %v2339
    %2540 = vmatprep.subr.bf16.mxu0 %v2336
    %2541 = vmatpush1.bf16.msra.mxu0 %v2335
    %2542 = vmatprep.subr.bf16.mxu0 %v2332
    %2543 = vmatpush1.bf16.msra.mxu0 %v2331
    %2544 = vmatprep.subr.bf16.mxu0 %v2392
    %2545 = vmatpush2.bf16.msra.mxu0 %v2391
    %2546 = vmatprep.subr.bf16.mxu0 %v2388
    %2547 = vmatpush2.bf16.msra.mxu0 %v2387
    %2548 = vmatprep.subr.bf16.mxu0 %v2384
    %2549 = vmatpush2.bf16.msra.mxu0 %v2383
    %2550 = vmatprep.subr.bf16.mxu0 %v2380
    %2551 = vmatpush2.bf16.msra.mxu0 %v2379
    %2552 = vmatprep.subr.bf16.mxu0 %v2376
    %2553 = vmatpush2.bf16.msra.mxu0 %v2375
    %2554 = vmatprep.subr.bf16.mxu0 %v2372
    %2555 = vmatpush2.bf16.msra.mxu0 %v2371
    %2556 = vmatprep.subr.bf16.mxu0 %v2368
    %2557 = vmatpush2.bf16.msra.mxu0 %v2367
    %2558 = vmatprep.subr.bf16.mxu0 %v2364
    %2559 = vmatpush2.bf16.msra.mxu0 %v2363
    %2560 = vmatprep.mubr.bf16.mxu0 %v956
    %2561 = vmatmul.mubr.bf16.gmra.mxu0 %v955
    %v2562 = vpop.f32.mrf.mxu0
    %v2563 = vadd.f32 0.0, %v2562
    %v2564 = vpop.f32.mrf.mxu0
    %v2565 = vadd.f32 0.0, %v2564
    %v2566 = vpop.f32.mrf.mxu0
    %v2567 = vadd.f32 0.0, %v2566
    %v2568 = vpop.f32.mrf.mxu0
    %v2569 = vadd.f32 0.0, %v2568
    %2570 = vmatprep.mubr.bf16.mxu0 %v958
    %2571 = vmatmul.mubr.bf16.gmra.mxu0 %v957
    %v2572 = vpop.f32.mrf.mxu0
    %v2573 = vadd.f32 0.0, %v2572
    %v2574 = vpop.f32.mrf.mxu0
    %v2575 = vadd.f32 0.0, %v2574
    %v2576 = vpop.f32.mrf.mxu0
    %v2577 = vadd.f32 0.0, %v2576
    %v2578 = vpop.f32.mrf.mxu0
    %v2579 = vadd.f32 0.0, %v2578
    %2580 = vmatprep.mubr.bf16.mxu0 %v960
    %2581 = vmatmul.mubr.bf16.gmra.mxu0 %v959
    %v2582 = vpop.f32.mrf.mxu0
    %v2583 = vadd.f32 0.0, %v2582
    %v2584 = vpop.f32.mrf.mxu0
    %v2585 = vadd.f32 0.0, %v2584
    %v2586 = vpop.f32.mrf.mxu0
    %v2587 = vadd.f32 0.0, %v2586
    %v2588 = vpop.f32.mrf.mxu0
    %v2589 = vadd.f32 0.0, %v2588
    %2590 = vmatprep.mubr.bf16.mxu0 %v962
    %2591 = vmatmul.mubr.bf16.gmra.mxu0 %v961
    %v2592 = vpop.f32.mrf.mxu0
    %v2593 = vadd.f32 0.0, %v2592
    %v2594 = vpop.f32.mrf.mxu0
    %v2595 = vadd.f32 0.0, %v2594
    %v2596 = vpop.f32.mrf.mxu0
    %v2597 = vpop.f32.mrf.mxu0
    %2598 = vdwg.mxu0
    %v2599 = vrot.slane %v2492, 4
    %v2600 = vrot.slane %v2494, 4
    %v2601 = vrot.slane %v2563, 4
    %v2602 = vrot.slane %v2565, 4
    %v2603 = vrot.slane %v2496, 4
    %v2604 = vrot.slane %v2498, 4
    %v2605 = vrot.slane %v2567, 4
    %v2606 = vrot.slane %v2569, 4
    %v2607 = vrot.slane %v2502, 4
    %v2608 = vrot.slane %v2504, 4
    %v2609 = vrot.slane %v2573, 4
    %v2610 = vrot.slane %v2575, 4
    %v2611 = vrot.slane %v2506, 4
    %v2612 = vrot.slane %v2508, 4
    %v2613 = vrot.slane %v2577, 4
    %v2614 = vrot.slane %v2579, 4
    %v2615 = vrot.slane %v2512, 4
    %v2616 = vrot.slane %v2514, 4
    %v2617 = vrot.slane %v2583, 4
    %v2618 = vrot.slane %v2585, 4
    %v2619 = vrot.slane %v2516, 4
    %v2620 = vrot.slane %v2518, 4
    %v2621 = vrot.slane %v2587, 4
    %v2622 = vrot.slane %v2589, 4
    %v2623 = vrot.slane %v2522, 4
    %v2624 = vrot.slane %v2524, 4
    %v2625 = vrot.slane %v2593, 4
    %v2626 = vrot.slane %v2595, 4
    %vm2627 = vcmp.lt.s32.totalorder %v355, 4
    %v2628 = vsel %vm2627, %v2619, %v2623
    %v2629 = vsel %vm2627, %v2620, %v2624
    %v2630 = vsel %vm2627, %v2621, %v2625
    %v2631 = vsel %vm2627, %v2622, %v2626
    %v2632 = vsel %vm2627, %v2615, %v2619
    %v2633 = vsel %vm2627, %v2616, %v2620
    %v2634 = vsel %vm2627, %v2617, %v2621
    %v2635 = vsel %vm2627, %v2618, %v2622
    %v2636 = vsel %vm2627, %v2611, %v2615
    %v2637 = vsel %vm2627, %v2612, %v2616
    %v2638 = vsel %vm2627, %v2613, %v2617
    %v2639 = vsel %vm2627, %v2614, %v2618
    %v2640 = vsel %vm2627, %v2607, %v2611
    %v2641 = vsel %vm2627, %v2608, %v2612
    %v2642 = vsel %vm2627, %v2609, %v2613
    %v2643 = vsel %vm2627, %v2610, %v2614
    %v2644 = vsel %vm2627, %v2603, %v2607
    %v2645 = vsel %vm2627, %v2604, %v2608
    %v2646 = vsel %vm2627, %v2605, %v2609
    %v2647 = vsel %vm2627, %v2606, %v2610
    %v2648 = vsel %vm2627, %v2599, %v2603
    %v2649 = vsel %vm2627, %v2600, %v2604
    %v2650 = vsel %vm2627, %v2601, %v2605
    %v2651 = vsel %vm2627, %v2602, %v2606
    %v2652 = vsel %vm2627, %v2623, %v2599
    %v2653 = vsel %vm2627, %v2624, %v2600
    %v2654 = vsel %vm2627, %v2625, %v2601
    %v2655 = vsel %vm2627, %v2626, %v2602
    %v2656 = vadd.f32 %v1965, %v2648
    %v2657 = vadd.f32 %v1967, %v2649
    %v2658 = vadd.f32 %v2036, %v2650
    %v2659 = vadd.f32 %v2038, %v2651
    %v2660 = vadd.f32 %v1969, %v2644
    %v2661 = vadd.f32 %v1971, %v2645
    %v2662 = vadd.f32 %v2040, %v2646
    %v2663 = vadd.f32 %v2042, %v2647
    %v2664 = vadd.f32 %v1975, %v2640
    %v2665 = vadd.f32 %v1977, %v2641
    %v2666 = vadd.f32 %v2046, %v2642
    %v2667 = vadd.f32 %v2048, %v2643
    %v2668 = vadd.f32 %v1979, %v2636
    %v2669 = vadd.f32 %v1981, %v2637
    %v2670 = vadd.f32 %v2050, %v2638
    %v2671 = vadd.f32 %v2052, %v2639
    %v2672 = vadd.f32 %v1985, %v2632
    %v2673 = vadd.f32 %v1987, %v2633
    %v2674 = vadd.f32 %v2056, %v2634
    %v2675 = vadd.f32 %v2058, %v2635
    %v2676 = vadd.f32 %v1989, %v2628
    %v2677 = vadd.f32 %v1991, %v2629
    %v2678 = vadd.f32 %v2060, %v2630
    %v2679 = vadd.f32 %v2062, %v2631
    %v2680 = vadd.f32 %v1995, %v2652
    %v2681 = vadd.f32 %v1997, %v2653
    %v2682 = vadd.f32 %v2066, %v2654
    %v2683 = vadd.f32 %v2068, %v2655
    %v2684 = vmax.f32 %v2656, %v2658
    %v2685 = vmax.f32 %v2657, %v2659
    %v2686 = vmax.f32 %v2660, %v2662
    %v2687 = vmax.f32 %v2661, %v2663
    %v2688 = vmax.f32 %v2664, %v2666
    %v2689 = vmax.f32 %v2665, %v2667
    %v2690 = vmax.f32 %v2668, %v2670
    %v2691 = vmax.f32 %v2669, %v2671
    %v2692 = vmax.f32 %v2672, %v2674
    %v2693 = vmax.f32 %v2673, %v2675
    %v2694 = vmax.f32 %v2676, %v2678
    %v2695 = vmax.f32 %v2677, %v2679
    %v2696 = vmax.f32 %v2680, %v2682
    %v2697 = vmax.f32 %v2681, %v2683
    %v2698 = vrot.slane %v2684, 2
    %v2699 = vrot.slane %v2685, 2
    %v2700 = vrot.slane %v2686, 2
    %v2701 = vrot.slane %v2687, 2
    %v2702 = vrot.slane %v2688, 2
    %v2703 = vrot.slane %v2689, 2
    %v2704 = vrot.slane %v2690, 2
    %v2705 = vrot.slane %v2691, 2
    %v2706 = vrot.slane %v2692, 2
    %v2707 = vrot.slane %v2693, 2
    %v2708 = vrot.slane %v2694, 2
    %v2709 = vrot.slane %v2695, 2
    %v2710 = vrot.slane %v2696, 2
    %v2711 = vrot.slane %v2697, 2
    %v2712 = vsel %vm802, %v2708, %v2710
    %v2713 = vsel %vm802, %v2709, %v2711
    %v2714 = vsel %vm802, %v2706, %v2708
    %v2715 = vsel %vm802, %v2707, %v2709
    %v2716 = vsel %vm802, %v2704, %v2706
    %v2717 = vsel %vm802, %v2705, %v2707
    %v2718 = vsel %vm802, %v2702, %v2704
    %v2719 = vsel %vm802, %v2703, %v2705
    %v2720 = vsel %vm802, %v2700, %v2702
    %v2721 = vsel %vm802, %v2701, %v2703
    %v2722 = vsel %vm802, %v2698, %v2700
    %v2723 = vsel %vm802, %v2699, %v2701
    %v2724 = vsel %vm802, %v2710, %v2698
    %v2725 = vsel %vm802, %v2711, %v2699
    %v2726 = vmax.f32 %v2684, %v2722
    %v2727 = vmax.f32 %v2685, %v2723
    %v2728 = vmax.f32 %v2686, %v2720
    %v2729 = vmax.f32 %v2687, %v2721
    %v2730 = vmax.f32 %v2688, %v2718
    %v2731 = vmax.f32 %v2689, %v2719
    %v2732 = vmax.f32 %v2690, %v2716
    %v2733 = vmax.f32 %v2691, %v2717
    %v2734 = vmax.f32 %v2692, %v2714
    %v2735 = vmax.f32 %v2693, %v2715
    %v2736 = vmax.f32 %v2694, %v2712
    %v2737 = vmax.f32 %v2695, %v2713
    %v2738 = vmax.f32 %v2696, %v2724
    %v2739 = vmax.f32 %v2697, %v2725
    %v2740 = vld [vmem:[%s4] sm:$0x3]
    %v2742 = vlaneseq
    %v2743 = vshrl.u32 %v2742, 7
    %v2744 = vsub.s32 0, %v2743
    %v2745 = vrot.slane %v2740, %v2744
    %v2746 = vlaneseq
    %v2747 = vshrl.u32 %v2746, 7
    %v2748 = vsub.s32 1, %v2747
    %v2749 = vrot.slane %v2740, %v2748
    %v2752 = vadd.f32 %v2726, %v2745
    %v2753 = vadd.f32 %v2727, %v2749
    %v2754 = vadd.f32 %v2728, %v2745
    %v2755 = vadd.f32 %v2729, %v2749
    %v2756 = vadd.f32 %v2730, %v2745
    %v2757 = vadd.f32 %v2731, %v2749
    %v2758 = vadd.f32 %v2732, %v2745
    %v2759 = vadd.f32 %v2733, %v2749
    %v2760 = vadd.f32 %v2734, %v2745
    %v2761 = vadd.f32 %v2735, %v2749
    %v2762 = vadd.f32 %v2736, %v2745
    %v2763 = vadd.f32 %v2737, %v2749
    %v2764 = vadd.f32 %v2738, %v2745
    %v2765 = vadd.f32 %v2739, %v2749
    %v2766 = vmax.f32 %v2752, 0.0
    %v2767 = vmax.f32 %v2753, 0.0
    %v2768 = vmax.f32 %v2754, 0.0
    %v2769 = vmax.f32 %v2755, 0.0
    %v2770 = vmax.f32 %v2756, 0.0
    %v2771 = vmax.f32 %v2757, 0.0
    %v2772 = vmax.f32 %v2758, 0.0
    %v2773 = vmax.f32 %v2759, 0.0
    %v2774 = vmax.f32 %v2760, 0.0
    %v2775 = vmax.f32 %v2761, 0.0
    %v2776 = vmax.f32 %v2762, 0.0
    %v2777 = vmax.f32 %v2763, 0.0
    %v2778 = vmax.f32 %v2764, 0.0
    %v2779 = vmax.f32 %v2765, 0.0
    %v2780 = vpack.c.bf16 %v2768, %v2766
    %v2781 = vpack.c.bf16 %v2769, %v2767
    %v2782 = vpack.c.bf16 %v2772, %v2770
    %v2783 = vpack.c.bf16 %v2773, %v2771
    %v2784 = vpack.c.bf16 %v2776, %v2774
    %v2785 = vpack.c.bf16 %v2777, %v2775
    %v2786 = vpack.c.bf16 %v2778, %v2778
    %v2787 = vpack.c.bf16 %v2779, %v2779
    %v2788 = vld [vmem:[#allocation6] sm:$0xf]
    %v2789 = vld [vmem:[#allocation6 + $0x4] sm:$0xf]
    %v2790 = vld [vmem:[#allocation6 + $0x8] sm:$0xf]
    %v2791 = vld [vmem:[#allocation6 + $0xc] sm:$0xf]
    %v2792 = vld [vmem:[#allocation6 + $0x10] sm:$0xf]
    %v2793 = vld [vmem:[#allocation6 + $0x14] sm:$0xf]
    %v2794 = vld [vmem:[#allocation6 + $0x18] sm:$0xf]
    %v2795 = vld [vmem:[#allocation6 + $0x1c] sm:$0xf]
    %v2796 = vld [vmem:[#allocation6 + $0x20] sm:$0xf]
    %v2797 = vld [vmem:[#allocation6 + $0x24] sm:$0xf]
    %v2798 = vld [vmem:[#allocation6 + $0x28] sm:$0xf]
    %v2799 = vld [vmem:[#allocation6 + $0x2c] sm:$0xf]
    %v2800 = vld [vmem:[#allocation6 + $0x30] sm:$0xf]
    %v2801 = vld [vmem:[#allocation6 + $0x34] sm:$0xf]
    %v2802 = vld [vmem:[#allocation6 + $0x38] sm:$0xf]
    %v2803 = vld [vmem:[#allocation6 + $0x3c] sm:$0xf]
    %v2804 = vld [vmem:[#allocation6 + $0x40] sm:$0xf]
    %v2805 = vld [vmem:[#allocation6 + $0x44] sm:$0xf]
    %v2806 = vld [vmem:[#allocation6 + $0x48] sm:$0xf]
    %v2807 = vld [vmem:[#allocation6 + $0x4c] sm:$0xf]
    %v2808 = vld [vmem:[#allocation6 + $0x50] sm:$0xf]
    %v2809 = vld [vmem:[#allocation6 + $0x54] sm:$0xf]
    %v2810 = vld [vmem:[#allocation6 + $0x58] sm:$0xf]
    %v2811 = vld [vmem:[#allocation6 + $0x5c] sm:$0xf]
    %v2812 = vld [vmem:[#allocation6 + $0x60] sm:$0xf]
    %v2813 = vld [vmem:[#allocation6 + $0x64] sm:$0xf]
    %v2814 = vld [vmem:[#allocation6 + $0x68] sm:$0xf]
    %v2815 = vld [vmem:[#allocation6 + $0x6c] sm:$0xf]
    %v2816 = vld [vmem:[#allocation6 + $0x70] sm:$0xf]
    %v2817 = vld [vmem:[#allocation6 + $0x74] sm:$0xf]
    %v2818 = vld [vmem:[#allocation6 + $0x78] sm:$0xf]
    %v2819 = vld [vmem:[#allocation6 + $0x7c] sm:$0xf]
    %s2820 = scalar_lea.vmem [#allocation6], 128
    %v2821 = vld [vmem:[%s2820] sm:$0xf]
    %v2822 = vld [vmem:[%s2820 + $0x4] sm:$0xf]
    %v2823 = vld [vmem:[%s2820 + $0x8] sm:$0xf]
    %v2824 = vld [vmem:[%s2820 + $0xc] sm:$0xf]
    %v2825 = vld [vmem:[%s2820 + $0x10] sm:$0xf]
    %v2826 = vld [vmem:[%s2820 + $0x14] sm:$0xf]
    %v2827 = vld [vmem:[%s2820 + $0x18] sm:$0xf]
    %v2828 = vld [vmem:[%s2820 + $0x1c] sm:$0xf]
    %v2829 = vld [vmem:[%s2820 + $0x20] sm:$0xf]
    %v2830 = vld [vmem:[%s2820 + $0x24] sm:$0xf]
    %v2831 = vld [vmem:[%s2820 + $0x28] sm:$0xf]
    %v2832 = vld [vmem:[%s2820 + $0x2c] sm:$0xf]
    %v2833 = vld [vmem:[%s2820 + $0x30] sm:$0xf]
    %v2834 = vld [vmem:[%s2820 + $0x34] sm:$0xf]
    %v2835 = vld [vmem:[%s2820 + $0x38] sm:$0xf]
    %v2836 = vld [vmem:[%s2820 + $0x3c] sm:$0xf]
    %v2837 = vld [vmem:[%s2820 + $0x40] sm:$0xf]
    %v2838 = vld [vmem:[%s2820 + $0x44] sm:$0xf]
    %v2839 = vld [vmem:[%s2820 + $0x48] sm:$0xf]
    %v2840 = vld [vmem:[%s2820 + $0x4c] sm:$0xf]
    %v2841 = vld [vmem:[%s2820 + $0x50] sm:$0xf]
    %v2842 = vld [vmem:[%s2820 + $0x54] sm:$0xf]
    %v2843 = vld [vmem:[%s2820 + $0x58] sm:$0xf]
    %v2844 = vld [vmem:[%s2820 + $0x5c] sm:$0xf]
    %v2845 = vld [vmem:[%s2820 + $0x60] sm:$0xf]
    %v2846 = vld [vmem:[%s2820 + $0x64] sm:$0xf]
    %v2847 = vld [vmem:[%s2820 + $0x68] sm:$0xf]
    %v2848 = vld [vmem:[%s2820 + $0x6c] sm:$0xf]
    %v2849 = vld [vmem:[%s2820 + $0x70] sm:$0xf]
    %v2850 = vld [vmem:[%s2820 + $0x74] sm:$0xf]
    %v2851 = vld [vmem:[%s2820 + $0x78] sm:$0xf]
    %v2852 = vld [vmem:[%s2820 + $0x7c] sm:$0xf]
    %v2885 = vunpack.c.l.b16 %v2821
    %v2886 = vunpack.c.l.b16 %v2822
    %v2887 = vunpack.c.l.b16 %v2823
    %v2888 = vunpack.c.l.b16 %v2824
    %v2889 = vunpack.c.l.b16 %v2825
    %v2890 = vunpack.c.l.b16 %v2826
    %v2891 = vunpack.c.l.b16 %v2827
    %v2892 = vunpack.c.l.b16 %v2828
    %v2893 = vunpack.c.l.b16 %v2829
    %v2894 = vunpack.c.l.b16 %v2830
    %v2895 = vunpack.c.l.b16 %v2831
    %v2896 = vunpack.c.l.b16 %v2832
    %v2897 = vunpack.c.l.b16 %v2833
    %v2898 = vunpack.c.l.b16 %v2834
    %v2899 = vunpack.c.l.b16 %v2835
    %v2900 = vunpack.c.l.b16 %v2836
    %v2901 = vunpack.c.l.b16 %v2837
    %v2902 = vunpack.c.l.b16 %v2838
    %v2903 = vunpack.c.l.b16 %v2839
    %v2904 = vunpack.c.l.b16 %v2840
    %v2905 = vunpack.c.l.b16 %v2841
    %v2906 = vunpack.c.l.b16 %v2842
    %v2907 = vunpack.c.l.b16 %v2843
    %v2908 = vunpack.c.l.b16 %v2844
    %v2909 = vunpack.c.l.b16 %v2845
    %v2910 = vunpack.c.l.b16 %v2846
    %v2911 = vunpack.c.l.b16 %v2847
    %v2912 = vunpack.c.l.b16 %v2848
    %v2913 = vunpack.c.l.b16 %v2849
    %v2914 = vunpack.c.l.b16 %v2850
    %v2915 = vunpack.c.l.b16 %v2851
    %v2916 = vunpack.c.l.b16 %v2852
    %v2917 = vpack.c.b16 %v2886, %v2885
    %v2918 = vpack.c.b16 %v2888, %v2887
    %v2919 = vpack.c.b16 %v2890, %v2889
    %v2920 = vpack.c.b16 %v2892, %v2891
    %v2921 = vpack.c.b16 %v2894, %v2893
    %v2922 = vpack.c.b16 %v2896, %v2895
    %v2923 = vpack.c.b16 %v2898, %v2897
    %v2924 = vpack.c.b16 %v2900, %v2899
    %v2925 = vpack.c.b16 %v2902, %v2901
    %v2926 = vpack.c.b16 %v2904, %v2903
    %v2927 = vpack.c.b16 %v2906, %v2905
    %v2928 = vpack.c.b16 %v2908, %v2907
    %v2929 = vpack.c.b16 %v2910, %v2909
    %v2930 = vpack.c.b16 %v2912, %v2911
    %v2931 = vpack.c.b16 %v2914, %v2913
    %v2932 = vpack.c.b16 %v2916, %v2915
    %2949 = vmatprep.subr.bf16.mxu0 0
    %2950 = vmatpush1.bf16.msra.mxu0 %v2924
    %2951 = vmatprep.subr.bf16.mxu0 0
    %2952 = vmatpush1.bf16.msra.mxu0 %v2923
    %2953 = vmatprep.subr.bf16.mxu0 0
    %2954 = vmatpush1.bf16.msra.mxu0 %v2922
    %2955 = vmatprep.subr.bf16.mxu0 0
    %2956 = vmatpush1.bf16.msra.mxu0 %v2921
    %2957 = vmatprep.subr.bf16.mxu0 0
    %2958 = vmatpush1.bf16.msra.mxu0 %v2920
    %2959 = vmatprep.subr.bf16.mxu0 0
    %2960 = vmatpush1.bf16.msra.mxu0 %v2919
    %2961 = vmatprep.subr.bf16.mxu0 0
    %2962 = vmatpush1.bf16.msra.mxu0 %v2918
    %2963 = vmatprep.subr.bf16.mxu0 0
    %2964 = vmatpush1.bf16.msra.mxu0 %v2917
    %2965 = vmatprep.subr.bf16.mxu0 0
    %2966 = vmatpush2.bf16.msra.mxu0 %v2932
    %2967 = vmatprep.subr.bf16.mxu0 0
    %2968 = vmatpush2.bf16.msra.mxu0 %v2931
    %2969 = vmatprep.subr.bf16.mxu0 0
    %2970 = vmatpush2.bf16.msra.mxu0 %v2930
    %2971 = vmatprep.subr.bf16.mxu0 0
    %2972 = vmatpush2.bf16.msra.mxu0 %v2929
    %2973 = vmatprep.subr.bf16.mxu0 0
    %2974 = vmatpush2.bf16.msra.mxu0 %v2928
    %2975 = vmatprep.subr.bf16.mxu0 0
    %2976 = vmatpush2.bf16.msra.mxu0 %v2927
    %2977 = vmatprep.subr.bf16.mxu0 0
    %2978 = vmatpush2.bf16.msra.mxu0 %v2926
    %2979 = vmatprep.subr.bf16.mxu0 0
    %2980 = vmatpush2.bf16.msra.mxu0 %v2925
    %2981 = vmatprep.mubr.bf16.mxu0 %v2781
    %2982 = vmatmul.mubr.bf16.gmra.mxu0 %v2780
    %v2983 = vpop.f32.mrf.mxu0
    %v2984 = vadd.f32 0.0, %v2983
    %v2985 = vpop.f32.mrf.mxu0
    %v2986 = vpop.f32.mrf.mxu0
    %v2987 = vadd.f32 0.0, %v2986
    %v2988 = vpop.f32.mrf.mxu0
    %2989 = vmatprep.mubr.bf16.mxu0 %v2783
    %2990 = vmatmul.mubr.bf16.gmra.mxu0 %v2782
    %v2991 = vpop.f32.mrf.mxu0
    %v2992 = vadd.f32 0.0, %v2991
    %v2993 = vpop.f32.mrf.mxu0
    %v2994 = vpop.f32.mrf.mxu0
    %v2995 = vadd.f32 0.0, %v2994
    %v2996 = vpop.f32.mrf.mxu0
    %2997 = vmatprep.mubr.bf16.mxu0 %v2785
    %2998 = vmatmul.mubr.bf16.gmra.mxu0 %v2784
    %v2999 = vpop.f32.mrf.mxu0
    %v3000 = vadd.f32 0.0, %v2999
    %v3001 = vpop.f32.mrf.mxu0
    %v3002 = vpop.f32.mrf.mxu0
    %v3003 = vadd.f32 0.0, %v3002
    %v3004 = vpop.f32.mrf.mxu0
    %3005 = vmatprep.mubr.bf16.mxu0 %v2787
    %3006 = vmatmul.mubr.bf16.gmra.mxu0 %v2786
    %v3007 = vpop.f32.mrf.mxu0
    %v3008 = vadd.f32 0.0, %v3007
    %v3009 = vpop.f32.mrf.mxu0
    %v3010 = vpop.f32.mrf.mxu0
    %v3011 = vpop.f32.mrf.mxu0
    %3012 = vdwg.mxu0
    %v3013 = vrot.slane %v2984, 4
    %v3014 = vrot.slane %v2987, 4
    %v3015 = vrot.slane %v2992, 4
    %v3016 = vrot.slane %v2995, 4
    %v3017 = vrot.slane %v3000, 4
    %v3018 = vrot.slane %v3003, 4
    %v3019 = vrot.slane %v3008, 4
    %v3020 = vsel %vm2627, %v3018, %v3019
    %v3021 = vsel %vm2627, %v3017, %v3018
    %v3022 = vsel %vm2627, %v3016, %v3017
    %v3023 = vsel %vm2627, %v3015, %v3016
    %v3024 = vsel %vm2627, %v3014, %v3015
    %v3025 = vsel %vm2627, %v3013, %v3014
    %v3026 = vsel %vm2627, %v3019, %v3013
    %v3059 = vunpack.c.l.b16 %v2788
    %v3060 = vunpack.c.l.b16 %v2789
    %v3061 = vunpack.c.l.b16 %v2790
    %v3062 = vunpack.c.l.b16 %v2791
    %v3063 = vunpack.c.l.b16 %v2792
    %v3064 = vunpack.c.l.b16 %v2793
    %v3065 = vunpack.c.l.b16 %v2794
    %v3066 = vunpack.c.l.b16 %v2795
    %v3067 = vunpack.c.l.b16 %v2796
    %v3068 = vunpack.c.l.b16 %v2797
    %v3069 = vunpack.c.l.b16 %v2798
    %v3070 = vunpack.c.l.b16 %v2799
    %v3071 = vunpack.c.l.b16 %v2800
    %v3072 = vunpack.c.l.b16 %v2801
    %v3073 = vunpack.c.l.b16 %v2802
    %v3074 = vunpack.c.l.b16 %v2803
    %v3075 = vunpack.c.l.b16 %v2804
    %v3076 = vunpack.c.l.b16 %v2805
    %v3077 = vunpack.c.l.b16 %v2806
    %v3078 = vunpack.c.l.b16 %v2807
    %v3079 = vunpack.c.l.b16 %v2808
    %v3080 = vunpack.c.l.b16 %v2809
    %v3081 = vunpack.c.l.b16 %v2810
    %v3082 = vunpack.c.l.b16 %v2811
    %v3083 = vunpack.c.l.b16 %v2812
    %v3084 = vunpack.c.l.b16 %v2813
    %v3085 = vunpack.c.l.b16 %v2814
    %v3086 = vunpack.c.l.b16 %v2815
    %v3087 = vunpack.c.l.b16 %v2816
    %v3088 = vunpack.c.l.b16 %v2817
    %v3089 = vunpack.c.l.b16 %v2818
    %v3090 = vunpack.c.l.b16 %v2819
    %v3091 = vpack.c.b16 %v3060, %v3059
    %v3092 = vpack.c.b16 %v3062, %v3061
    %v3093 = vpack.c.b16 %v3064, %v3063
    %v3094 = vpack.c.b16 %v3066, %v3065
    %v3095 = vpack.c.b16 %v3068, %v3067
    %v3096 = vpack.c.b16 %v3070, %v3069
    %v3097 = vpack.c.b16 %v3072, %v3071
    %v3098 = vpack.c.b16 %v3074, %v3073
    %v3099 = vpack.c.b16 %v3076, %v3075
    %v3100 = vpack.c.b16 %v3078, %v3077
    %v3101 = vpack.c.b16 %v3080, %v3079
    %v3102 = vpack.c.b16 %v3082, %v3081
    %v3103 = vpack.c.b16 %v3084, %v3083
    %v3104 = vpack.c.b16 %v3086, %v3085
    %v3105 = vpack.c.b16 %v3088, %v3087
    %v3106 = vpack.c.b16 %v3090, %v3089
    %3123 = vmatprep.subr.bf16.mxu0 0
    %3124 = vmatpush1.bf16.msra.mxu0 %v3098
    %3125 = vmatprep.subr.bf16.mxu0 0
    %3126 = vmatpush1.bf16.msra.mxu0 %v3097
    %3127 = vmatprep.subr.bf16.mxu0 0
    %3128 = vmatpush1.bf16.msra.mxu0 %v3096
    %3129 = vmatprep.subr.bf16.mxu0 0
    %3130 = vmatpush1.bf16.msra.mxu0 %v3095
    %3131 = vmatprep.subr.bf16.mxu0 0
    %3132 = vmatpush1.bf16.msra.mxu0 %v3094
    %3133 = vmatprep.subr.bf16.mxu0 0
    %3134 = vmatpush1.bf16.msra.mxu0 %v3093
    %3135 = vmatprep.subr.bf16.mxu0 0
    %3136 = vmatpush1.bf16.msra.mxu0 %v3092
    %3137 = vmatprep.subr.bf16.mxu0 0
    %3138 = vmatpush1.bf16.msra.mxu0 %v3091
    %3139 = vmatprep.subr.bf16.mxu0 0
    %3140 = vmatpush2.bf16.msra.mxu0 %v3106
    %3141 = vmatprep.subr.bf16.mxu0 0
    %3142 = vmatpush2.bf16.msra.mxu0 %v3105
    %3143 = vmatprep.subr.bf16.mxu0 0
    %3144 = vmatpush2.bf16.msra.mxu0 %v3104
    %3145 = vmatprep.subr.bf16.mxu0 0
    %3146 = vmatpush2.bf16.msra.mxu0 %v3103
    %3147 = vmatprep.subr.bf16.mxu0 0
    %3148 = vmatpush2.bf16.msra.mxu0 %v3102
    %3149 = vmatprep.subr.bf16.mxu0 0
    %3150 = vmatpush2.bf16.msra.mxu0 %v3101
    %3151 = vmatprep.subr.bf16.mxu0 0
    %3152 = vmatpush2.bf16.msra.mxu0 %v3100
    %3153 = vmatprep.subr.bf16.mxu0 0
    %3154 = vmatpush2.bf16.msra.mxu0 %v3099
    %3155 = vmatprep.mubr.bf16.mxu0 %v2781
    %3156 = vmatmul.mubr.bf16.gmra.mxu0 %v2780
    %v3157 = vpop.f32.mrf.mxu0
    %v3158 = vadd.f32 %v3025, %v3157
    %v3159 = vpop.f32.mrf.mxu0
    %v3160 = vpop.f32.mrf.mxu0
    %v3161 = vadd.f32 %v3024, %v3160
    %v3162 = vpop.f32.mrf.mxu0
    %3163 = vmatprep.mubr.bf16.mxu0 %v2783
    %3164 = vmatmul.mubr.bf16.gmra.mxu0 %v2782
    %v3165 = vpop.f32.mrf.mxu0
    %v3166 = vadd.f32 %v3023, %v3165
    %v3167 = vpop.f32.mrf.mxu0
    %v3168 = vpop.f32.mrf.mxu0
    %v3169 = vadd.f32 %v3022, %v3168
    %v3170 = vpop.f32.mrf.mxu0
    %3171 = vmatprep.mubr.bf16.mxu0 %v2785
    %3172 = vmatmul.mubr.bf16.gmra.mxu0 %v2784
    %v3173 = vpop.f32.mrf.mxu0
    %v3174 = vadd.f32 %v3021, %v3173
    %v3175 = vpop.f32.mrf.mxu0
    %v3176 = vpop.f32.mrf.mxu0
    %v3177 = vadd.f32 %v3020, %v3176
    %v3178 = vpop.f32.mrf.mxu0
    %3179 = vmatprep.mubr.bf16.mxu0 %v2787
    %3180 = vmatmul.mubr.bf16.gmra.mxu0 %v2786
    %v3181 = vpop.f32.mrf.mxu0
    %v3182 = vadd.f32 %v3026, %v3181
    %v3183 = vpop.f32.mrf.mxu0
    %v3184 = vpop.f32.mrf.mxu0
    %v3185 = vpop.f32.mrf.mxu0
    %3186 = vdwg.mxu0
    %s3187 = scalar_lea.vmem [#allocation6], 256
    %v3188 = vld [vmem:[%s3187] sm:$0xf]
    %v3189 = vld [vmem:[%s3187 + $0x4] sm:$0xf]
    %v3190 = vld [vmem:[%s3187 + $0x8] sm:$0xf]
    %v3191 = vld [vmem:[%s3187 + $0xc] sm:$0xf]
    %v3192 = vld [vmem:[%s3187 + $0x10] sm:$0xf]
    %v3193 = vld [vmem:[%s3187 + $0x14] sm:$0xf]
    %v3194 = vld [vmem:[%s3187 + $0x18] sm:$0xf]
    %v3195 = vld [vmem:[%s3187 + $0x1c] sm:$0xf]
    %v3196 = vld [vmem:[%s3187 + $0x20] sm:$0xf]
    %v3197 = vld [vmem:[%s3187 + $0x24] sm:$0xf]
    %v3198 = vld [vmem:[%s3187 + $0x28] sm:$0xf]
    %v3199 = vld [vmem:[%s3187 + $0x2c] sm:$0xf]
    %v3200 = vld [vmem:[%s3187 + $0x30] sm:$0xf]
    %v3201 = vld [vmem:[%s3187 + $0x34] sm:$0xf]
    %v3202 = vld [vmem:[%s3187 + $0x38] sm:$0xf]
    %v3203 = vld [vmem:[%s3187 + $0x3c] sm:$0xf]
    %v3204 = vld [vmem:[%s3187 + $0x40] sm:$0xf]
    %v3205 = vld [vmem:[%s3187 + $0x44] sm:$0xf]
    %v3206 = vld [vmem:[%s3187 + $0x48] sm:$0xf]
    %v3207 = vld [vmem:[%s3187 + $0x4c] sm:$0xf]
    %v3208 = vld [vmem:[%s3187 + $0x50] sm:$0xf]
    %v3209 = vld [vmem:[%s3187 + $0x54] sm:$0xf]
    %v3210 = vld [vmem:[%s3187 + $0x58] sm:$0xf]
    %v3211 = vld [vmem:[%s3187 + $0x5c] sm:$0xf]
    %v3212 = vld [vmem:[%s3187 + $0x60] sm:$0xf]
    %v3213 = vld [vmem:[%s3187 + $0x64] sm:$0xf]
    %v3214 = vld [vmem:[%s3187 + $0x68] sm:$0xf]
    %v3215 = vld [vmem:[%s3187 + $0x6c] sm:$0xf]
    %v3216 = vld [vmem:[%s3187 + $0x70] sm:$0xf]
    %v3217 = vld [vmem:[%s3187 + $0x74] sm:$0xf]
    %v3218 = vld [vmem:[%s3187 + $0x78] sm:$0xf]
    %v3219 = vld [vmem:[%s3187 + $0x7c] sm:$0xf]
    %v3252 = vunpack.c.l.b16 %v3188
    %v3253 = vunpack.c.l.b16 %v3189
    %v3254 = vunpack.c.l.b16 %v3190
    %v3255 = vunpack.c.l.b16 %v3191
    %v3256 = vunpack.c.l.b16 %v3192
    %v3257 = vunpack.c.l.b16 %v3193
    %v3258 = vunpack.c.l.b16 %v3194
    %v3259 = vunpack.c.l.b16 %v3195
    %v3260 = vunpack.c.l.b16 %v3196
    %v3261 = vunpack.c.l.b16 %v3197
    %v3262 = vunpack.c.l.b16 %v3198
    %v3263 = vunpack.c.l.b16 %v3199
    %v3264 = vunpack.c.l.b16 %v3200
    %v3265 = vunpack.c.l.b16 %v3201
    %v3266 = vunpack.c.l.b16 %v3202
    %v3267 = vunpack.c.l.b16 %v3203
    %v3268 = vunpack.c.l.b16 %v3204
    %v3269 = vunpack.c.l.b16 %v3205
    %v3270 = vunpack.c.l.b16 %v3206
    %v3271 = vunpack.c.l.b16 %v3207
    %v3272 = vunpack.c.l.b16 %v3208
    %v3273 = vunpack.c.l.b16 %v3209
    %v3274 = vunpack.c.l.b16 %v3210
    %v3275 = vunpack.c.l.b16 %v3211
    %v3276 = vunpack.c.l.b16 %v3212
    %v3277 = vunpack.c.l.b16 %v3213
    %v3278 = vunpack.c.l.b16 %v3214
    %v3279 = vunpack.c.l.b16 %v3215
    %v3280 = vunpack.c.l.b16 %v3216
    %v3281 = vunpack.c.l.b16 %v3217
    %v3282 = vunpack.c.l.b16 %v3218
    %v3283 = vunpack.c.l.b16 %v3219
    %v3284 = vpack.c.b16 %v3253, %v3252
    %v3285 = vpack.c.b16 %v3255, %v3254
    %v3286 = vpack.c.b16 %v3257, %v3256
    %v3287 = vpack.c.b16 %v3259, %v3258
    %v3288 = vpack.c.b16 %v3261, %v3260
    %v3289 = vpack.c.b16 %v3263, %v3262
    %v3290 = vpack.c.b16 %v3265, %v3264
    %v3291 = vpack.c.b16 %v3267, %v3266
    %v3292 = vpack.c.b16 %v3269, %v3268
    %v3293 = vpack.c.b16 %v3271, %v3270
    %v3294 = vpack.c.b16 %v3273, %v3272
    %v3295 = vpack.c.b16 %v3275, %v3274
    %v3296 = vpack.c.b16 %v3277, %v3276
    %v3297 = vpack.c.b16 %v3279, %v3278
    %v3298 = vpack.c.b16 %v3281, %v3280
    %v3299 = vpack.c.b16 %v3283, %v3282
    %3316 = vmatprep.subr.bf16.mxu0 0
    %3317 = vmatpush1.bf16.msra.mxu0 %v3291
    %3318 = vmatprep.subr.bf16.mxu0 0
    %3319 = vmatpush1.bf16.msra.mxu0 %v3290
    %3320 = vmatprep.subr.bf16.mxu0 0
    %3321 = vmatpush1.bf16.msra.mxu0 %v3289
    %3322 = vmatprep.subr.bf16.mxu0 0
    %3323 = vmatpush1.bf16.msra.mxu0 %v3288
    %3324 = vmatprep.subr.bf16.mxu0 0
    %3325 = vmatpush1.bf16.msra.mxu0 %v3287
    %3326 = vmatprep.subr.bf16.mxu0 0
    %3327 = vmatpush1.bf16.msra.mxu0 %v3286
    %3328 = vmatprep.subr.bf16.mxu0 0
    %3329 = vmatpush1.bf16.msra.mxu0 %v3285
    %3330 = vmatprep.subr.bf16.mxu0 0
    %3331 = vmatpush1.bf16.msra.mxu0 %v3284
    %3332 = vmatprep.subr.bf16.mxu0 0
    %3333 = vmatpush2.bf16.msra.mxu0 %v3299
    %3334 = vmatprep.subr.bf16.mxu0 0
    %3335 = vmatpush2.bf16.msra.mxu0 %v3298
    %3336 = vmatprep.subr.bf16.mxu0 0
    %3337 = vmatpush2.bf16.msra.mxu0 %v3297
    %3338 = vmatprep.subr.bf16.mxu0 0
    %3339 = vmatpush2.bf16.msra.mxu0 %v3296
    %3340 = vmatprep.subr.bf16.mxu0 0
    %3341 = vmatpush2.bf16.msra.mxu0 %v3295
    %3342 = vmatprep.subr.bf16.mxu0 0
    %3343 = vmatpush2.bf16.msra.mxu0 %v3294
    %3344 = vmatprep.subr.bf16.mxu0 0
    %3345 = vmatpush2.bf16.msra.mxu0 %v3293
    %3346 = vmatprep.subr.bf16.mxu0 0
    %3347 = vmatpush2.bf16.msra.mxu0 %v3292
    %3348 = vmatprep.mubr.bf16.mxu0 %v2781
    %3349 = vmatmul.mubr.bf16.gmra.mxu0 %v2780
    %v3350 = vpop.f32.mrf.mxu0
    %v3351 = vadd.f32 0.0, %v3350
    %v3352 = vpop.f32.mrf.mxu0
    %v3353 = vpop.f32.mrf.mxu0
    %v3354 = vadd.f32 0.0, %v3353
    %v3355 = vpop.f32.mrf.mxu0
    %3356 = vmatprep.mubr.bf16.mxu0 %v2783
    %3357 = vmatmul.mubr.bf16.gmra.mxu0 %v2782
    %v3358 = vpop.f32.mrf.mxu0
    %v3359 = vadd.f32 0.0, %v3358
    %v3360 = vpop.f32.mrf.mxu0
    %v3361 = vpop.f32.mrf.mxu0
    %v3362 = vadd.f32 0.0, %v3361
    %v3363 = vpop.f32.mrf.mxu0
    %3364 = vmatprep.mubr.bf16.mxu0 %v2785
    %3365 = vmatmul.mubr.bf16.gmra.mxu0 %v2784
    %v3366 = vpop.f32.mrf.mxu0
    %v3367 = vadd.f32 0.0, %v3366
    %v3368 = vpop.f32.mrf.mxu0
    %v3369 = vpop.f32.mrf.mxu0
    %v3370 = vadd.f32 0.0, %v3369
    %v3371 = vpop.f32.mrf.mxu0
    %3372 = vmatprep.mubr.bf16.mxu0 %v2787
    %3373 = vmatmul.mubr.bf16.gmra.mxu0 %v2786
    %v3374 = vpop.f32.mrf.mxu0
    %v3375 = vadd.f32 0.0, %v3374
    %v3376 = vpop.f32.mrf.mxu0
    %v3377 = vpop.f32.mrf.mxu0
    %v3378 = vpop.f32.mrf.mxu0
    %3379 = vdwg.mxu0
    %v3380 = vadd.f32 %v3158, %v3354
    %v3381 = vadd.f32 %v3161, %v3359
    %v3382 = vadd.f32 %v3166, %v3362
    %v3383 = vadd.f32 %v3169, %v3367
    %v3384 = vadd.f32 %v3174, %v3370
    %v3385 = vadd.f32 %v3177, %v3375
    %v3386 = vadd.f32 %v3182, %v3351
    %s3387 = scalar_lea.vmem [#allocation6], 384
    %v3388 = vld [vmem:[%s3387] sm:$0xf]
    %v3389 = vld [vmem:[%s3387 + $0x4] sm:$0xf]
    %v3390 = vld [vmem:[%s3387 + $0x8] sm:$0xf]
    %v3391 = vld [vmem:[%s3387 + $0xc] sm:$0xf]
    %v3392 = vld [vmem:[%s3387 + $0x10] sm:$0xf]
    %v3393 = vld [vmem:[%s3387 + $0x14] sm:$0xf]
    %v3394 = vld [vmem:[%s3387 + $0x18] sm:$0xf]
    %v3395 = vld [vmem:[%s3387 + $0x1c] sm:$0xf]
    %v3396 = vld [vmem:[%s3387 + $0x20] sm:$0xf]
    %v3397 = vld [vmem:[%s3387 + $0x24] sm:$0xf]
    %v3398 = vld [vmem:[%s3387 + $0x28] sm:$0xf]
    %v3399 = vld [vmem:[%s3387 + $0x2c] sm:$0xf]
    %v3400 = vld [vmem:[%s3387 + $0x30] sm:$0xf]
    %v3401 = vld [vmem:[%s3387 + $0x34] sm:$0xf]
    %v3402 = vld [vmem:[%s3387 + $0x38] sm:$0xf]
    %v3403 = vld [vmem:[%s3387 + $0x3c] sm:$0xf]
    %v3404 = vld [vmem:[%s3387 + $0x40] sm:$0xf]
    %v3405 = vld [vmem:[%s3387 + $0x44] sm:$0xf]
    %v3406 = vld [vmem:[%s3387 + $0x48] sm:$0xf]
    %v3407 = vld [vmem:[%s3387 + $0x4c] sm:$0xf]
    %v3408 = vld [vmem:[%s3387 + $0x50] sm:$0xf]
    %v3409 = vld [vmem:[%s3387 + $0x54] sm:$0xf]
    %v3410 = vld [vmem:[%s3387 + $0x58] sm:$0xf]
    %v3411 = vld [vmem:[%s3387 + $0x5c] sm:$0xf]
    %v3412 = vld [vmem:[%s3387 + $0x60] sm:$0xf]
    %v3413 = vld [vmem:[%s3387 + $0x64] sm:$0xf]
    %v3414 = vld [vmem:[%s3387 + $0x68] sm:$0xf]
    %v3415 = vld [vmem:[%s3387 + $0x6c] sm:$0xf]
    %v3416 = vld [vmem:[%s3387 + $0x70] sm:$0xf]
    %v3417 = vld [vmem:[%s3387 + $0x74] sm:$0xf]
    %v3418 = vld [vmem:[%s3387 + $0x78] sm:$0xf]
    %v3419 = vld [vmem:[%s3387 + $0x7c] sm:$0xf]
    %v3452 = vunpack.c.l.b16 %v3388
    %v3453 = vunpack.c.l.b16 %v3389
    %v3454 = vunpack.c.l.b16 %v3390
    %v3455 = vunpack.c.l.b16 %v3391
    %v3456 = vunpack.c.l.b16 %v3392
    %v3457 = vunpack.c.l.b16 %v3393
    %v3458 = vunpack.c.l.b16 %v3394
    %v3459 = vunpack.c.l.b16 %v3395
    %v3460 = vunpack.c.l.b16 %v3396
    %v3461 = vunpack.c.l.b16 %v3397
    %v3462 = vunpack.c.l.b16 %v3398
    %v3463 = vunpack.c.l.b16 %v3399
    %v3464 = vunpack.c.l.b16 %v3400
    %v3465 = vunpack.c.l.b16 %v3401
    %v3466 = vunpack.c.l.b16 %v3402
    %v3467 = vunpack.c.l.b16 %v3403
    %v3468 = vunpack.c.l.b16 %v3404
    %v3469 = vunpack.c.l.b16 %v3405
    %v3470 = vunpack.c.l.b16 %v3406
    %v3471 = vunpack.c.l.b16 %v3407
    %v3472 = vunpack.c.l.b16 %v3408
    %v3473 = vunpack.c.l.b16 %v3409
    %v3474 = vunpack.c.l.b16 %v3410
    %v3475 = vunpack.c.l.b16 %v3411
    %v3476 = vunpack.c.l.b16 %v3412
    %v3477 = vunpack.c.l.b16 %v3413
    %v3478 = vunpack.c.l.b16 %v3414
    %v3479 = vunpack.c.l.b16 %v3415
    %v3480 = vunpack.c.l.b16 %v3416
    %v3481 = vunpack.c.l.b16 %v3417
    %v3482 = vunpack.c.l.b16 %v3418
    %v3483 = vunpack.c.l.b16 %v3419
    %v3484 = vpack.c.b16 %v3453, %v3452
    %v3485 = vpack.c.b16 %v3455, %v3454
    %v3486 = vpack.c.b16 %v3457, %v3456
    %v3487 = vpack.c.b16 %v3459, %v3458
    %v3488 = vpack.c.b16 %v3461, %v3460
    %v3489 = vpack.c.b16 %v3463, %v3462
    %v3490 = vpack.c.b16 %v3465, %v3464
    %v3491 = vpack.c.b16 %v3467, %v3466
    %v3492 = vpack.c.b16 %v3469, %v3468
    %v3493 = vpack.c.b16 %v3471, %v3470
    %v3494 = vpack.c.b16 %v3473, %v3472
    %v3495 = vpack.c.b16 %v3475, %v3474
    %v3496 = vpack.c.b16 %v3477, %v3476
    %v3497 = vpack.c.b16 %v3479, %v3478
    %v3498 = vpack.c.b16 %v3481, %v3480
    %v3499 = vpack.c.b16 %v3483, %v3482
    %3516 = vmatprep.subr.bf16.mxu0 0
    %3517 = vmatpush1.bf16.msra.mxu0 %v3491
    %3518 = vmatprep.subr.bf16.mxu0 0
    %3519 = vmatpush1.bf16.msra.mxu0 %v3490
    %3520 = vmatprep.subr.bf16.mxu0 0
    %3521 = vmatpush1.bf16.msra.mxu0 %v3489
    %3522 = vmatprep.subr.bf16.mxu0 0
    %3523 = vmatpush1.bf16.msra.mxu0 %v3488
    %3524 = vmatprep.subr.bf16.mxu0 0
    %3525 = vmatpush1.bf16.msra.mxu0 %v3487
    %3526 = vmatprep.subr.bf16.mxu0 0
    %3527 = vmatpush1.bf16.msra.mxu0 %v3486
    %3528 = vmatprep.subr.bf16.mxu0 0
    %3529 = vmatpush1.bf16.msra.mxu0 %v3485
    %3530 = vmatprep.subr.bf16.mxu0 0
    %3531 = vmatpush1.bf16.msra.mxu0 %v3484
    %3532 = vmatprep.subr.bf16.mxu0 0
    %3533 = vmatpush2.bf16.msra.mxu0 %v3499
    %3534 = vmatprep.subr.bf16.mxu0 0
    %3535 = vmatpush2.bf16.msra.mxu0 %v3498
    %3536 = vmatprep.subr.bf16.mxu0 0
    %3537 = vmatpush2.bf16.msra.mxu0 %v3497
    %3538 = vmatprep.subr.bf16.mxu0 0
    %3539 = vmatpush2.bf16.msra.mxu0 %v3496
    %3540 = vmatprep.subr.bf16.mxu0 0
    %3541 = vmatpush2.bf16.msra.mxu0 %v3495
    %3542 = vmatprep.subr.bf16.mxu0 0
    %3543 = vmatpush2.bf16.msra.mxu0 %v3494
    %3544 = vmatprep.subr.bf16.mxu0 0
    %3545 = vmatpush2.bf16.msra.mxu0 %v3493
    %3546 = vmatprep.subr.bf16.mxu0 0
    %3547 = vmatpush2.bf16.msra.mxu0 %v3492
    %3548 = vmatprep.mubr.bf16.mxu0 %v2781
    %3549 = vmatmul.mubr.bf16.gmra.mxu0 %v2780
    %v3550 = vpop.f32.mrf.mxu0
    %v3551 = vadd.f32 0.0, %v3550
    %v3552 = vpop.f32.mrf.mxu0
    %v3553 = vpop.f32.mrf.mxu0
    %v3554 = vadd.f32 0.0, %v3553
    %v3555 = vpop.f32.mrf.mxu0
    %3556 = vmatprep.mubr.bf16.mxu0 %v2783
    %3557 = vmatmul.mubr.bf16.gmra.mxu0 %v2782
    %v3558 = vpop.f32.mrf.mxu0
    %v3559 = vadd.f32 0.0, %v3558
    %v3560 = vpop.f32.mrf.mxu0
    %v3561 = vpop.f32.mrf.mxu0
    %v3562 = vadd.f32 0.0, %v3561
    %v3563 = vpop.f32.mrf.mxu0
    %3564 = vmatprep.mubr.bf16.mxu0 %v2785
    %3565 = vmatmul.mubr.bf16.gmra.mxu0 %v2784
    %v3566 = vpop.f32.mrf.mxu0
    %v3567 = vadd.f32 0.0, %v3566
    %v3568 = vpop.f32.mrf.mxu0
    %v3569 = vpop.f32.mrf.mxu0
    %v3570 = vadd.f32 0.0, %v3569
    %v3571 = vpop.f32.mrf.mxu0
    %3572 = vmatprep.mubr.bf16.mxu0 %v2787
    %3573 = vmatmul.mubr.bf16.gmra.mxu0 %v2786
    %v3574 = vpop.f32.mrf.mxu0
    %v3575 = vadd.f32 0.0, %v3574
    %v3576 = vpop.f32.mrf.mxu0
    %v3577 = vpop.f32.mrf.mxu0
    %v3578 = vpop.f32.mrf.mxu0
    %3579 = vdwg.mxu0
    %v3580 = vrot.slane %v3551, 4
    %v3581 = vrot.slane %v3554, 4
    %v3582 = vrot.slane %v3559, 4
    %v3583 = vrot.slane %v3562, 4
    %v3584 = vrot.slane %v3567, 4
    %v3585 = vrot.slane %v3570, 4
    %v3586 = vrot.slane %v3575, 4
    %v3587 = vsel %vm2627, %v3585, %v3586
    %v3588 = vsel %vm2627, %v3584, %v3585
    %v3589 = vsel %vm2627, %v3583, %v3584
    %v3590 = vsel %vm2627, %v3582, %v3583
    %v3591 = vsel %vm2627, %v3581, %v3582
    %v3592 = vsel %vm2627, %v3580, %v3581
    %v3593 = vsel %vm2627, %v3586, %v3580
    %v3594 = vadd.f32 %v3380, %v3591
    %v3595 = vadd.f32 %v3381, %v3590
    %v3596 = vadd.f32 %v3382, %v3589
    %v3597 = vadd.f32 %v3383, %v3588
    %v3598 = vadd.f32 %v3384, %v3587
    %v3599 = vadd.f32 %v3385, %v3593
    %v3600 = vadd.f32 %v3386, %v3592
    %s3601 = scalar_lea.vmem [#allocation6], 512
    %v3602 = vld [vmem:[%s3601] sm:$0xf]
    %v3603 = vld [vmem:[%s3601 + $0x4] sm:$0xf]
    %v3604 = vld [vmem:[%s3601 + $0x8] sm:$0xf]
    %v3605 = vld [vmem:[%s3601 + $0xc] sm:$0xf]
    %v3606 = vld [vmem:[%s3601 + $0x10] sm:$0xf]
    %v3607 = vld [vmem:[%s3601 + $0x14] sm:$0xf]
    %v3608 = vld [vmem:[%s3601 + $0x18] sm:$0xf]
    %v3609 = vld [vmem:[%s3601 + $0x1c] sm:$0xf]
    %v3610 = vld [vmem:[%s3601 + $0x20] sm:$0xf]
    %v3611 = vld [vmem:[%s3601 + $0x24] sm:$0xf]
    %v3612 = vld [vmem:[%s3601 + $0x28] sm:$0xf]
    %v3613 = vld [vmem:[%s3601 + $0x2c] sm:$0xf]
    %v3614 = vld [vmem:[%s3601 + $0x30] sm:$0xf]
    %v3615 = vld [vmem:[%s3601 + $0x34] sm:$0xf]
    %v3616 = vld [vmem:[%s3601 + $0x38] sm:$0xf]
    %v3617 = vld [vmem:[%s3601 + $0x3c] sm:$0xf]
    %v3618 = vld [vmem:[%s3601 + $0x40] sm:$0xf]
    %v3619 = vld [vmem:[%s3601 + $0x44] sm:$0xf]
    %v3620 = vld [vmem:[%s3601 + $0x48] sm:$0xf]
    %v3621 = vld [vmem:[%s3601 + $0x4c] sm:$0xf]
    %v3622 = vld [vmem:[%s3601 + $0x50] sm:$0xf]
    %v3623 = vld [vmem:[%s3601 + $0x54] sm:$0xf]
    %v3624 = vld [vmem:[%s3601 + $0x58] sm:$0xf]
    %v3625 = vld [vmem:[%s3601 + $0x5c] sm:$0xf]
    %v3626 = vld [vmem:[%s3601 + $0x60] sm:$0xf]
    %v3627 = vld [vmem:[%s3601 + $0x64] sm:$0xf]
    %v3628 = vld [vmem:[%s3601 + $0x68] sm:$0xf]
    %v3629 = vld [vmem:[%s3601 + $0x6c] sm:$0xf]
    %v3630 = vld [vmem:[%s3601 + $0x70] sm:$0xf]
    %v3631 = vld [vmem:[%s3601 + $0x74] sm:$0xf]
    %v3632 = vld [vmem:[%s3601 + $0x78] sm:$0xf]
    %v3633 = vld [vmem:[%s3601 + $0x7c] sm:$0xf]
    %v3666 = vunpack.c.l.b16 %v3602
    %v3667 = vunpack.c.l.b16 %v3603
    %v3668 = vunpack.c.l.b16 %v3604
    %v3669 = vunpack.c.l.b16 %v3605
    %v3670 = vunpack.c.l.b16 %v3606
    %v3671 = vunpack.c.l.b16 %v3607
    %v3672 = vunpack.c.l.b16 %v3608
    %v3673 = vunpack.c.l.b16 %v3609
    %v3674 = vunpack.c.l.b16 %v3610
    %v3675 = vunpack.c.l.b16 %v3611
    %v3676 = vunpack.c.l.b16 %v3612
    %v3677 = vunpack.c.l.b16 %v3613
    %v3678 = vunpack.c.l.b16 %v3614
    %v3679 = vunpack.c.l.b16 %v3615
    %v3680 = vunpack.c.l.b16 %v3616
    %v3681 = vunpack.c.l.b16 %v3617
    %v3682 = vunpack.c.l.b16 %v3618
    %v3683 = vunpack.c.l.b16 %v3619
    %v3684 = vunpack.c.l.b16 %v3620
    %v3685 = vunpack.c.l.b16 %v3621
    %v3686 = vunpack.c.l.b16 %v3622
    %v3687 = vunpack.c.l.b16 %v3623
    %v3688 = vunpack.c.l.b16 %v3624
    %v3689 = vunpack.c.l.b16 %v3625
    %v3690 = vunpack.c.l.b16 %v3626
    %v3691 = vunpack.c.l.b16 %v3627
    %v3692 = vunpack.c.l.b16 %v3628
    %v3693 = vunpack.c.l.b16 %v3629
    %v3694 = vunpack.c.l.b16 %v3630
    %v3695 = vunpack.c.l.b16 %v3631
    %v3696 = vunpack.c.l.b16 %v3632
    %v3697 = vunpack.c.l.b16 %v3633
    %v3698 = vpack.c.b16 %v3667, %v3666
    %v3699 = vpack.c.b16 %v3669, %v3668
    %v3700 = vpack.c.b16 %v3671, %v3670
    %v3701 = vpack.c.b16 %v3673, %v3672
    %v3702 = vpack.c.b16 %v3675, %v3674
    %v3703 = vpack.c.b16 %v3677, %v3676
    %v3704 = vpack.c.b16 %v3679, %v3678
    %v3705 = vpack.c.b16 %v3681, %v3680
    %v3706 = vpack.c.b16 %v3683, %v3682
    %v3707 = vpack.c.b16 %v3685, %v3684
    %v3708 = vpack.c.b16 %v3687, %v3686
    %v3709 = vpack.c.b16 %v3689, %v3688
    %v3710 = vpack.c.b16 %v3691, %v3690
    %v3711 = vpack.c.b16 %v3693, %v3692
    %v3712 = vpack.c.b16 %v3695, %v3694
    %v3713 = vpack.c.b16 %v3697, %v3696
    %3730 = vmatprep.subr.bf16.mxu0 0
    %3731 = vmatpush1.bf16.msra.mxu0 %v3705
    %3732 = vmatprep.subr.bf16.mxu0 0
    %3733 = vmatpush1.bf16.msra.mxu0 %v3704
    %3734 = vmatprep.subr.bf16.mxu0 0
    %3735 = vmatpush1.bf16.msra.mxu0 %v3703
    %3736 = vmatprep.subr.bf16.mxu0 0
    %3737 = vmatpush1.bf16.msra.mxu0 %v3702
    %3738 = vmatprep.subr.bf16.mxu0 0
    %3739 = vmatpush1.bf16.msra.mxu0 %v3701
    %3740 = vmatprep.subr.bf16.mxu0 0
    %3741 = vmatpush1.bf16.msra.mxu0 %v3700
    %3742 = vmatprep.subr.bf16.mxu0 0
    %3743 = vmatpush1.bf16.msra.mxu0 %v3699
    %3744 = vmatprep.subr.bf16.mxu0 0
    %3745 = vmatpush1.bf16.msra.mxu0 %v3698
    %3746 = vmatprep.subr.bf16.mxu0 0
    %3747 = vmatpush2.bf16.msra.mxu0 %v3713
    %3748 = vmatprep.subr.bf16.mxu0 0
    %3749 = vmatpush2.bf16.msra.mxu0 %v3712
    %3750 = vmatprep.subr.bf16.mxu0 0
    %3751 = vmatpush2.bf16.msra.mxu0 %v3711
    %3752 = vmatprep.subr.bf16.mxu0 0
    %3753 = vmatpush2.bf16.msra.mxu0 %v3710
    %3754 = vmatprep.subr.bf16.mxu0 0
    %3755 = vmatpush2.bf16.msra.mxu0 %v3709
    %3756 = vmatprep.subr.bf16.mxu0 0
    %3757 = vmatpush2.bf16.msra.mxu0 %v3708
    %3758 = vmatprep.subr.bf16.mxu0 0
    %3759 = vmatpush2.bf16.msra.mxu0 %v3707
    %3760 = vmatprep.subr.bf16.mxu0 0
    %3761 = vmatpush2.bf16.msra.mxu0 %v3706
    %3762 = vmatprep.mubr.bf16.mxu0 %v2781
    %3763 = vmatmul.mubr.bf16.gmra.mxu0 %v2780
    %v3764 = vpop.f32.mrf.mxu0
    %v3765 = vadd.f32 0.0, %v3764
    %v3766 = vpop.f32.mrf.mxu0
    %v3767 = vpop.f32.mrf.mxu0
    %v3768 = vadd.f32 0.0, %v3767
    %v3769 = vpop.f32.mrf.mxu0
    %3770 = vmatprep.mubr.bf16.mxu0 %v2783
    %3771 = vmatmul.mubr.bf16.gmra.mxu0 %v2782
    %v3772 = vpop.f32.mrf.mxu0
    %v3773 = vadd.f32 0.0, %v3772
    %v3774 = vpop.f32.mrf.mxu0
    %v3775 = vpop.f32.mrf.mxu0
    %v3776 = vadd.f32 0.0, %v3775
    %v3777 = vpop.f32.mrf.mxu0
    %3778 = vmatprep.mubr.bf16.mxu0 %v2785
    %3779 = vmatmul.mubr.bf16.gmra.mxu0 %v2784
    %v3780 = vpop.f32.mrf.mxu0
    %v3781 = vadd.f32 0.0, %v3780
    %v3782 = vpop.f32.mrf.mxu0
    %v3783 = vpop.f32.mrf.mxu0
    %v3784 = vadd.f32 0.0, %v3783
    %v3785 = vpop.f32.mrf.mxu0
    %3786 = vmatprep.mubr.bf16.mxu0 %v2787
    %3787 = vmatmul.mubr.bf16.gmra.mxu0 %v2786
    %v3788 = vpop.f32.mrf.mxu0
    %v3789 = vadd.f32 0.0, %v3788
    %v3790 = vpop.f32.mrf.mxu0
    %v3791 = vpop.f32.mrf.mxu0
    %v3792 = vpop.f32.mrf.mxu0
    %3793 = vdwg.mxu0
    %v3794 = vadd.f32 %v3594, %v3773
    %v3795 = vadd.f32 %v3595, %v3776
    %v3796 = vadd.f32 %v3596, %v3781
    %v3797 = vadd.f32 %v3597, %v3784
    %v3798 = vadd.f32 %v3598, %v3789
    %v3799 = vadd.f32 %v3599, %v3765
    %v3800 = vadd.f32 %v3600, %v3768
    %v3801 = vld [vmem:[%s6] sm:$0x1]
    %v3803 = vlaneseq
    %v3804 = vshrl.u32 %v3803, 7
    %v3805 = vsub.s32 0, %v3804
    %v3806 = vrot.slane %v3801, %v3805
    %v3808 = vadd.f32 %v3794, %v3806
    %v3809 = vadd.f32 %v3795, %v3806
    %v3810 = vadd.f32 %v3796, %v3806
    %v3811 = vadd.f32 %v3797, %v3806
    %v3812 = vadd.f32 %v3798, %v3806
    %v3813 = vadd.f32 %v3799, %v3806
    %v3814 = vadd.f32 %v3800, %v3806
    %v3815 = vmax.f32 %v3808, 0.0
    %v3816 = vmax.f32 %v3809, 0.0
    %v3817 = vmax.f32 %v3810, 0.0
    %v3818 = vmax.f32 %v3811, 0.0
    %v3819 = vmax.f32 %v3812, 0.0
    %v3820 = vmax.f32 %v3813, 0.0
    %v3821 = vmax.f32 %v3814, 0.0
    %v3822 = vpack.c.bf16 %v3816, %v3815
    %v3823 = vpack.c.bf16 %v3818, %v3817
    %v3824 = vpack.c.bf16 %v3820, %v3819
    %v3825 = vpack.c.bf16 %v3821, %v3821
    %v3826 = vld [vmem:[%s7] sm:$0xf]
    %v3827 = vld [vmem:[%s7 + $0x4] sm:$0xf]
    %v3828 = vld [vmem:[%s7 + $0x8] sm:$0xf]
    %v3829 = vld [vmem:[%s7 + $0xc] sm:$0xf]
    %v3830 = vld [vmem:[%s7 + $0x10] sm:$0xf]
    %v3831 = vld [vmem:[%s7 + $0x14] sm:$0xf]
    %v3832 = vld [vmem:[%s7 + $0x18] sm:$0xf]
    %v3833 = vld [vmem:[%s7 + $0x1c] sm:$0xf]
    %v3834 = vld [vmem:[%s7 + $0x20] sm:$0xf]
    %v3835 = vld [vmem:[%s7 + $0x24] sm:$0xf]
    %v3836 = vld [vmem:[%s7 + $0x28] sm:$0xf]
    %v3837 = vld [vmem:[%s7 + $0x2c] sm:$0xf]
    %v3838 = vld [vmem:[%s7 + $0x30] sm:$0xf]
    %v3839 = vld [vmem:[%s7 + $0x34] sm:$0xf]
    %v3840 = vld [vmem:[%s7 + $0x38] sm:$0xf]
    %v3841 = vld [vmem:[%s7 + $0x3c] sm:$0xf]
    %v3842 = vld [vmem:[%s8] sm:$0x1]
    %v3844 = vlaneseq
    %v3845 = vshrl.u32 %v3844, 7
    %v3846 = vsub.s32 0, %v3845
    %v3847 = vrot.slane %v3842, %v3846
    %v3865 = vunpack.c.l.b16 %v3826
    %v3866 = vunpack.c.l.b16 %v3827
    %v3867 = vunpack.c.l.b16 %v3828
    %v3868 = vunpack.c.l.b16 %v3829
    %v3869 = vunpack.c.l.b16 %v3830
    %v3870 = vunpack.c.l.b16 %v3831
    %v3871 = vunpack.c.l.b16 %v3832
    %v3872 = vunpack.c.l.b16 %v3833
    %v3873 = vunpack.c.l.b16 %v3834
    %v3874 = vunpack.c.l.b16 %v3835
    %v3875 = vunpack.c.l.b16 %v3836
    %v3876 = vunpack.c.l.b16 %v3837
    %v3877 = vunpack.c.l.b16 %v3838
    %v3878 = vunpack.c.l.b16 %v3839
    %v3879 = vunpack.c.l.b16 %v3840
    %v3880 = vunpack.c.l.b16 %v3841
    %v3881 = vpack.c.b16 %v3866, %v3865
    %v3882 = vpack.c.b16 %v3868, %v3867
    %v3883 = vpack.c.b16 %v3870, %v3869
    %v3884 = vpack.c.b16 %v3872, %v3871
    %v3885 = vpack.c.b16 %v3874, %v3873
    %v3886 = vpack.c.b16 %v3876, %v3875
    %v3887 = vpack.c.b16 %v3878, %v3877
    %v3888 = vpack.c.b16 %v3880, %v3879
    %3897 = vmatprep.subr.bf16.mxu0 0
    %3898 = vmatpush1.bf16.msra.mxu0 %v3888
    %3899 = vmatprep.subr.bf16.mxu0 0
    %3900 = vmatpush1.bf16.msra.mxu0 %v3887
    %3901 = vmatprep.subr.bf16.mxu0 0
    %3902 = vmatpush1.bf16.msra.mxu0 %v3886
    %3903 = vmatprep.subr.bf16.mxu0 0
    %3904 = vmatpush1.bf16.msra.mxu0 %v3885
    %3905 = vmatprep.subr.bf16.mxu0 0
    %3906 = vmatpush1.bf16.msra.mxu0 %v3884
    %3907 = vmatprep.subr.bf16.mxu0 0
    %3908 = vmatpush1.bf16.msra.mxu0 %v3883
    %3909 = vmatprep.subr.bf16.mxu0 0
    %3910 = vmatpush1.bf16.msra.mxu0 %v3882
    %3911 = vmatprep.subr.bf16.mxu0 0
    %3912 = vmatpush1.bf16.msra.mxu0 %v3881
    %3913 = vmatprep.subr.bf16.mxu0 0
    %3914 = vmatpush2.bf16.msra.mxu0 0
    %3915 = vmatprep.subr.bf16.mxu0 0
    %3916 = vmatpush2.bf16.msra.mxu0 0
    %3917 = vmatprep.subr.bf16.mxu0 0
    %3918 = vmatpush2.bf16.msra.mxu0 0
    %3919 = vmatprep.subr.bf16.mxu0 0
    %3920 = vmatpush2.bf16.msra.mxu0 0
    %3921 = vmatprep.subr.bf16.mxu0 0
    %3922 = vmatpush2.bf16.msra.mxu0 0
    %3923 = vmatprep.subr.bf16.mxu0 0
    %3924 = vmatpush2.bf16.msra.mxu0 0
    %3925 = vmatprep.subr.bf16.mxu0 0
    %3926 = vmatpush2.bf16.msra.mxu0 0
    %3927 = vmatprep.subr.bf16.mxu0 0
    %3928 = vmatpush2.bf16.msra.mxu0 0
    %3929 = vmatprep.mubr.bf16.mxu0 0
    %3930 = vmatmul.mubr.bf16.gmra.mxu0 %v3822
    %v3931 = vpop.f32.mrf.mxu0
    %v3932 = vadd.f32 %v3847, %v3931
    %v3933 = vpop.f32.mrf.mxu0
    %v3934 = vpop.f32.mrf.mxu0
    %v3935 = vadd.f32 %v3847, %v3934
    %v3936 = vpop.f32.mrf.mxu0
    %3937 = vmatprep.mubr.bf16.mxu0 0
    %3938 = vmatmul.mubr.bf16.gmra.mxu0 %v3823
    %v3939 = vpop.f32.mrf.mxu0
    %v3940 = vadd.f32 %v3847, %v3939
    %v3941 = vpop.f32.mrf.mxu0
    %v3942 = vpop.f32.mrf.mxu0
    %v3943 = vadd.f32 %v3847, %v3942
    %v3944 = vpop.f32.mrf.mxu0
    %3945 = vmatprep.mubr.bf16.mxu0 0
    %3946 = vmatmul.mubr.bf16.gmra.mxu0 %v3824
    %v3947 = vpop.f32.mrf.mxu0
    %v3948 = vadd.f32 %v3847, %v3947
    %v3949 = vpop.f32.mrf.mxu0
    %v3950 = vpop.f32.mrf.mxu0
    %v3951 = vadd.f32 %v3847, %v3950
    %v3952 = vpop.f32.mrf.mxu0
    %3953 = vmatprep.mubr.bf16.mxu0 0
    %3954 = vmatmul.mubr.bf16.gmra.mxu0 %v3825
    %v3955 = vpop.f32.mrf.mxu0
    %v3956 = vadd.f32 %v3847, %v3955
    %v3957 = vpop.f32.mrf.mxu0
    %v3958 = vpop.f32.mrf.mxu0
    %v3959 = vpop.f32.mrf.mxu0
    %3960 = vdwg.mxu0
    %v3961 = vmax.f32 %v3932, 0.0
    %v3962 = vmax.f32 %v3935, 0.0
    %v3963 = vmax.f32 %v3940, 0.0
    %v3964 = vmax.f32 %v3943, 0.0
    %v3965 = vmax.f32 %v3948, 0.0
    %v3966 = vmax.f32 %v3951, 0.0
    %v3967 = vmax.f32 %v3956, 0.0
    %v3968 = vpack.c.bf16 %v3962, %v3961
    %v3969 = vpack.c.bf16 %v3964, %v3963
    %v3970 = vpack.c.bf16 %v3966, %v3965
    %v3971 = vpack.c.bf16 %v3967, %v3967
    %v3972 = vld [vmem:[%s9] sm:$0xf]
    %v3973 = vld [vmem:[%s9 + $0x4] sm:$0xf]
    %v3974 = vld [vmem:[%s9 + $0x8] sm:$0xf]
    %v3975 = vld [vmem:[%s9 + $0xc] sm:$0xf]
    %v3976 = vld [vmem:[%s9 + $0x10] sm:$0xf]
    %v3977 = vld [vmem:[%s9 + $0x14] sm:$0xf]
    %v3978 = vld [vmem:[%s9 + $0x18] sm:$0xf]
    %v3979 = vld [vmem:[%s9 + $0x1c] sm:$0xf]
    %v3980 = vld [vmem:[%s9 + $0x20] sm:$0xf]
    %v3981 = vld [vmem:[%s9 + $0x24] sm:$0xf]
    %v3982 = vld [vmem:[%s9 + $0x28] sm:$0xf]
    %v3983 = vld [vmem:[%s9 + $0x2c] sm:$0xf]
    %v3984 = vld [vmem:[%s9 + $0x30] sm:$0xf]
    %v3985 = vld [vmem:[%s9 + $0x34] sm:$0xf]
    %v3986 = vld [vmem:[%s9 + $0x38] sm:$0xf]
    %v3987 = vld [vmem:[%s9 + $0x3c] sm:$0xf]
    %v3988 = vld [vmem:[%s10] sm:$0x1]
    %v3990 = vlaneseq
    %v3991 = vshrl.u32 %v3990, 7
    %v3992 = vsub.s32 0, %v3991
    %v3993 = vrot.slane %v3988, %v3992
    %v4011 = vunpack.c.l.b16 %v3972
    %v4012 = vunpack.c.l.b16 %v3973
    %v4013 = vunpack.c.l.b16 %v3974
    %v4014 = vunpack.c.l.b16 %v3975
    %v4015 = vunpack.c.l.b16 %v3976
    %v4016 = vunpack.c.l.b16 %v3977
    %v4017 = vunpack.c.l.b16 %v3978
    %v4018 = vunpack.c.l.b16 %v3979
    %v4019 = vunpack.c.l.b16 %v3980
    %v4020 = vunpack.c.l.b16 %v3981
    %v4021 = vunpack.c.l.b16 %v3982
    %v4022 = vunpack.c.l.b16 %v3983
    %v4023 = vunpack.c.l.b16 %v3984
    %v4024 = vunpack.c.l.b16 %v3985
    %v4025 = vunpack.c.l.b16 %v3986
    %v4026 = vunpack.c.l.b16 %v3987
    %v4027 = vpack.c.b16 %v4012, %v4011
    %v4028 = vpack.c.b16 %v4014, %v4013
    %v4029 = vpack.c.b16 %v4016, %v4015
    %v4030 = vpack.c.b16 %v4018, %v4017
    %v4031 = vpack.c.b16 %v4020, %v4019
    %v4032 = vpack.c.b16 %v4022, %v4021
    %v4033 = vpack.c.b16 %v4024, %v4023
    %v4034 = vpack.c.b16 %v4026, %v4025
    %4043 = vmatprep.subr.bf16.mxu0 0
    %4044 = vmatpush1.bf16.msra.mxu0 %v4034
    %4045 = vmatprep.subr.bf16.mxu0 0
    %4046 = vmatpush1.bf16.msra.mxu0 %v4033
    %4047 = vmatprep.subr.bf16.mxu0 0
    %4048 = vmatpush1.bf16.msra.mxu0 %v4032
    %4049 = vmatprep.subr.bf16.mxu0 0
    %4050 = vmatpush1.bf16.msra.mxu0 %v4031
    %4051 = vmatprep.subr.bf16.mxu0 0
    %4052 = vmatpush1.bf16.msra.mxu0 %v4030
    %4053 = vmatprep.subr.bf16.mxu0 0
    %4054 = vmatpush1.bf16.msra.mxu0 %v4029
    %4055 = vmatprep.subr.bf16.mxu0 0
    %4056 = vmatpush1.bf16.msra.mxu0 %v4028
    %4057 = vmatprep.subr.bf16.mxu0 0
    %4058 = vmatpush1.bf16.msra.mxu0 %v4027
    %4059 = vmatprep.subr.bf16.mxu0 0
    %4060 = vmatpush2.bf16.msra.mxu0 0
    %4061 = vmatprep.subr.bf16.mxu0 0
    %4062 = vmatpush2.bf16.msra.mxu0 0
    %4063 = vmatprep.subr.bf16.mxu0 0
    %4064 = vmatpush2.bf16.msra.mxu0 0
    %4065 = vmatprep.subr.bf16.mxu0 0
    %4066 = vmatpush2.bf16.msra.mxu0 0
    %4067 = vmatprep.subr.bf16.mxu0 0
    %4068 = vmatpush2.bf16.msra.mxu0 0
    %4069 = vmatprep.subr.bf16.mxu0 0
    %4070 = vmatpush2.bf16.msra.mxu0 0
    %4071 = vmatprep.subr.bf16.mxu0 0
    %4072 = vmatpush2.bf16.msra.mxu0 0
    %4073 = vmatprep.subr.bf16.mxu0 0
    %4074 = vmatpush2.bf16.msra.mxu0 0
    %4075 = vmatprep.mubr.bf16.mxu0 0
    %4076 = vmatmul.mubr.bf16.gmra.mxu0 %v3968
    %v4077 = vpop.f32.mrf.mxu0
    %v4078 = vadd.f32 %v3993, %v4077
    %v4079 = vpop.f32.mrf.mxu0
    %v4080 = vpop.f32.mrf.mxu0
    %v4081 = vadd.f32 %v3993, %v4080
    %v4082 = vpop.f32.mrf.mxu0
    %4083 = vmatprep.mubr.bf16.mxu0 0
    %4084 = vmatmul.mubr.bf16.gmra.mxu0 %v3969
    %v4085 = vpop.f32.mrf.mxu0
    %v4086 = vadd.f32 %v3993, %v4085
    %v4087 = vpop.f32.mrf.mxu0
    %v4088 = vpop.f32.mrf.mxu0
    %v4089 = vadd.f32 %v3993, %v4088
    %v4090 = vpop.f32.mrf.mxu0
    %4091 = vmatprep.mubr.bf16.mxu0 0
    %4092 = vmatmul.mubr.bf16.gmra.mxu0 %v3970
    %v4093 = vpop.f32.mrf.mxu0
    %v4094 = vadd.f32 %v3993, %v4093
    %v4095 = vpop.f32.mrf.mxu0
    %v4096 = vpop.f32.mrf.mxu0
    %v4097 = vadd.f32 %v3993, %v4096
    %v4098 = vpop.f32.mrf.mxu0
    %4099 = vmatprep.mubr.bf16.mxu0 0
    %4100 = vmatmul.mubr.bf16.gmra.mxu0 %v3971
    %v4101 = vpop.f32.mrf.mxu0
    %v4102 = vadd.f32 %v3993, %v4101
    %v4103 = vpop.f32.mrf.mxu0
    %v4104 = vpop.f32.mrf.mxu0
    %v4105 = vpop.f32.mrf.mxu0
    %4106 = vdwg.mxu0
    %4107 = vmax.xlane.f32.xlu0 %v4078
    %v4108 = vpop.xlane.xlu0 %4107
    %4109 = vmax.xlane.f32.xlu0 %v4081
    %v4110 = vpop.xlane.xlu0 %4109
    %4111 = vmax.xlane.f32.xlu0 %v4086
    %v4112 = vpop.xlane.xlu0 %4111
    %4113 = vmax.xlane.f32.xlu0 %v4089
    %v4114 = vpop.xlane.xlu0 %4113
    %4115 = vmax.xlane.f32.xlu0 %v4094
    %v4116 = vpop.xlane.xlu0 %4115
    %4117 = vmax.xlane.f32.xlu0 %v4097
    %v4118 = vpop.xlane.xlu0 %4117
    %4119 = vmax.xlane.f32.xlu0 %v4102
    %v4120 = vpop.xlane.xlu0 %4119
    %v4121 = vsub.f32 %v4078, %v4108
    %v4122 = vsub.f32 %v4081, %v4110
    %v4123 = vsub.f32 %v4086, %v4112
    %v4124 = vsub.f32 %v4089, %v4114
    %v4125 = vsub.f32 %v4094, %v4116
    %v4126 = vsub.f32 %v4097, %v4118
    %v4127 = vsub.f32 %v4102, %v4120
    %v4128 = vmul.f32 %v4121, 1.442695
    %v4129 = vpow.pop %v4128
    %v4130 = vmul.f32 %v4122, 1.442695
    %v4131 = vpow.pop %v4130
    %v4132 = vmul.f32 %v4123, 1.442695
    %v4133 = vpow.pop %v4132
    %v4134 = vmul.f32 %v4124, 1.442695
    %v4135 = vpow.pop %v4134
    %v4136 = vmul.f32 %v4125, 1.442695
    %v4137 = vpow.pop %v4136
    %v4138 = vmul.f32 %v4126, 1.442695
    %v4139 = vpow.pop %v4138
    %v4140 = vmul.f32 %v4127, 1.442695
    %v4141 = vpow.pop %v4140
    %4142 = vadd.xlane.f32.xlu0 %v4129
    %v4143 = vpop.xlane.xlu0 %4142
    %4144 = vadd.xlane.f32.xlu0 %v4131
    %v4145 = vpop.xlane.xlu0 %4144
    %4146 = vadd.xlane.f32.xlu0 %v4133
    %v4147 = vpop.xlane.xlu0 %4146
    %4148 = vadd.xlane.f32.xlu0 %v4135
    %v4149 = vpop.xlane.xlu0 %4148
    %4150 = vadd.xlane.f32.xlu0 %v4137
    %v4151 = vpop.xlane.xlu0 %4150
    %4152 = vadd.xlane.f32.xlu0 %v4139
    %v4153 = vpop.xlane.xlu0 %4152
    %4154 = vadd.xlane.f32.xlu0 %v4141
    %v4155 = vpop.xlane.xlu0 %4154
    %v4156 = vlog2.pop %v4143
    %v4157 = vmul.f32 %v4156, 0.6931472
    %v4158 = vlog2.pop %v4145
    %v4159 = vmul.f32 %v4158, 0.6931472
    %v4160 = vlog2.pop %v4147
    %v4161 = vmul.f32 %v4160, 0.6931472
    %v4162 = vlog2.pop %v4149
    %v4163 = vmul.f32 %v4162, 0.6931472
    %v4164 = vlog2.pop %v4151
    %v4165 = vmul.f32 %v4164, 0.6931472
    %v4166 = vlog2.pop %v4153
    %v4167 = vmul.f32 %v4166, 0.6931472
    %v4168 = vlog2.pop %v4155
    %v4169 = vmul.f32 %v4168, 0.6931472
    %v4170 = vsub.f32 %v4121, %v4157
    %v4171 = vsub.f32 %v4122, %v4159
    %v4172 = vsub.f32 %v4123, %v4161
    %v4173 = vsub.f32 %v4124, %v4163
    %v4174 = vsub.f32 %v4125, %v4165
    %v4175 = vsub.f32 %v4126, %v4167
    %v4176 = vsub.f32 %v4127, %v4169
    %4177 = vst [vmem:[%s11] sm:$0xff] %v4170
    %4178 = vst [vmem:[%s11 + $0x8] sm:$0xff] %v4171
    %4179 = vst [vmem:[%s11 + $0x10] sm:$0xff] %v4172
    %4180 = vst [vmem:[%s11 + $0x18] sm:$0xff] %v4173
    %4181 = vst [vmem:[%s11 + $0x20] sm:$0xff] %v4174
    %4182 = vst [vmem:[%s11 + $0x28] sm:$0xff] %v4175
    %4183 = vst [vmem:[%s11 + $0x30] sm:$0xff] %v4176
    // Predicated region
    $region58: #{net_forward.1} parent=1 // pred_check
      _
    $region59: #{net_forward.1} parent=1 // pred_check_branch
      %4185 = sbr.rel (0) target = $region61
    $region60: #{net_forward.1} parent=1 // pred_region
      _
    $region61: #{net_forward.1} parent=1 // pred_fallthru
      _
    // Predicated region
    $region62: #{net_forward.1} parent=1 // pred_check
      _
    $region63: #{net_forward.1} parent=1 // pred_check_branch
      %4187 = sbr.rel (0) target = $region65
    $region64: #{net_forward.1} parent=1 // pred_region
      _
    $region65: #{net_forward.1} parent=1 // pred_fallthru
      _
    %4188 = vsyncpa [#allocation3], 1
    %4189 = vsyncpa [#allocation5], 1

</llo_original>
